<compile_context>
chip_gen: v7x
topology: tpu7x:2x2x1
jax: 0.10.0
libtpu: 0.0.40
codegen_flags: <defaults>
</compile_context>

<pallas_src>
import functools

import jax
import jax.numpy as jnp
from jax import lax
from jax.experimental import pallas as pl
from jax.experimental.pallas import tpu as pltpu


# ----------------------- fused RNN + MLP-head kernel -------------------------
def _fused_kernel(num_layers, *refs):
    # refs layout (inputs, then output):
    #   seq      (T, B, 1)     time-major scalar sequence
    #   w_ih0    (1, H)        layer-0 input weight row (W_ih^T, input_dim=1)
    #  [w_ih_rest (L-1, H, H)  W_ih^T for layers >= 1, only if L > 1]
    #   w_hh     (L, H, H)     W_hh^T per layer
    #   b        (L, 1, H)     b_ih + b_hh per layer
    #   fc: 8 x (w (in,out), b (1,out))        -> 16 refs
    #   ln: 3 x (gamma (1,d), beta (1,d))      -> 6 refs
    #   out      (B, output_dim)
    i = 0
    seq_ref = refs[i]; i += 1
    w_ih0_ref = refs[i]; i += 1
    if num_layers > 1:
        w_ih_rest_ref = refs[i]; i += 1
    w_hh_ref = refs[i]; i += 1
    b_ref = refs[i]; i += 1
    fc_refs = refs[i:i + 16]; i += 16
    ln_refs = refs[i:i + 6]; i += 6
    out_ref = refs[i]

    T, B, _ = seq_ref.shape
    H = w_hh_ref.shape[-1]

    # ---- hoist all recurrent weights / biases out of the timestep loop ----
    w_ih0 = w_ih0_ref[...]                                           # (1, H)
    w_hh = [w_hh_ref[l] for l in range(num_layers)]                  # (H, H) each
    w_ih = ([w_ih_rest_ref[l] for l in range(num_layers - 1)]
            if num_layers > 1 else [])
    bias = [jnp.broadcast_to(b_ref[l], (B, H)) for l in range(num_layers)]

    def step(t, hs):
        x_t = seq_ref[t]                                             # (B, 1)
        # layer 0: input contribution is a rank-1 broadcast (VPU), no MXU pass
        pre0 = (x_t * w_ih0
                + jnp.dot(hs[0], w_hh[0], preferred_element_type=jnp.float32)
                + bias[0])
        new_hs = [jnp.tanh(pre0)]
        for l in range(1, num_layers):
            pre = (jnp.dot(new_hs[-1], w_ih[l - 1],
                           preferred_element_type=jnp.float32)
                   + jnp.dot(hs[l], w_hh[l], preferred_element_type=jnp.float32)
                   + bias[l])
            new_hs.append(jnp.tanh(pre))
        return tuple(new_hs)

    init = tuple(jnp.zeros((B, H), jnp.float32) for _ in range(num_layers))
    hs = lax.fori_loop(0, T, step, init, unroll=True)
    a = hs[-1]                                                       # (B, H)

    # --------------------------- fused FC head ------------------------------
    def linear(a, w_r, b_r, relu):
        y = jnp.dot(a, w_r[...], preferred_element_type=jnp.float32) + b_r[...]
        return jnp.maximum(y, 0.0) if relu else y

    def layernorm_relu(a, g_r, beta_r):
        mean = jnp.mean(a, axis=-1, keepdims=True)
        var = jnp.mean((a - mean) ** 2, axis=-1, keepdims=True)  # biased, like PyTorch
        y = (a - mean) * lax.rsqrt(var + 1e-5) * g_r[...] + beta_r[...]
        return jnp.maximum(y, 0.0)

    a = linear(a, fc_refs[0], fc_refs[1], True)        # Linear(H,H)    + ReLU
    a = linear(a, fc_refs[2], fc_refs[3], False)       # Linear(H,H/2)
    a = layernorm_relu(a, ln_refs[0], ln_refs[1])      # LN + ReLU
    a = linear(a, fc_refs[4], fc_refs[5], True)        # Linear         + ReLU
    a = linear(a, fc_refs[6], fc_refs[7], False)       # Linear
    a = layernorm_relu(a, ln_refs[2], ln_refs[3])      # LN + ReLU
    a = linear(a, fc_refs[8], fc_refs[9], True)        # Linear         + ReLU
    a = linear(a, fc_refs[10], fc_refs[11], False)     # Linear
    a = layernorm_relu(a, ln_refs[4], ln_refs[5])      # LN + ReLU
    a = linear(a, fc_refs[12], fc_refs[13], True)      # Linear         + ReLU
    out_ref[...] = linear(a, fc_refs[14], fc_refs[15], False)  # Linear(H/2, O)


# --------------------------- Parameter init ----------------------------------
def init_params(key, input_dim, hidden_dim, num_layers, output_dim):
    assert input_dim == 1, "forward() squeezes to a scalar feature per step"
    keys = iter(jax.random.split(key, 64))

    def u(shape, bound):
        return jax.random.uniform(next(keys), shape, jnp.float32, -bound, bound)

    H = hidden_dim
    half = H // 2
    k_rnn = 1.0 / (H ** 0.5)

    w_ih0 = None
    w_ih_rest, w_hh_stack, b_stack = [], [], []
    for l in range(num_layers):
        in_l = input_dim if l == 0 else H
        w_ih = u((H, in_l), k_rnn)            # PyTorch shape (H, in)
        w_hh = u((H, H), k_rnn)               # PyTorch shape (H, H)
        b_ih = u((H,), k_rnn)
        b_hh = u((H,), k_rnn)
        if l == 0:
            w_ih0 = w_ih.T                    # (1, H)
        else:
            w_ih_rest.append(w_ih.T)          # (H, H) stored as (in, out)
        w_hh_stack.append(w_hh.T)
        b_stack.append((b_ih + b_hh)[None, :])

    def lin(fan_in, fan_out):
        bound = 1.0 / (fan_in ** 0.5)
        w = u((fan_out, fan_in), bound)       # PyTorch shape (out, in)
        b = u((fan_out,), bound)
        return (w.T, b[None, :])              # stored as (in, out), (1, out)

    def ln(dim):
        return (jnp.ones((1, dim), jnp.float32), jnp.zeros((1, dim), jnp.float32))

    params = {
        "hidden_dim": H,
        "num_layers": num_layers,
        "w_ih0": w_ih0,                                   # (1, H)
        "w_ih_rest": (jnp.stack(w_ih_rest)                # (L-1, H, H) or None
                      if num_layers > 1 else None),
        "w_hh": jnp.stack(w_hh_stack),                    # (L, H, H)
        "b": jnp.stack(b_stack),                          # (L, 1, H)
        "fc": [
            lin(H, H),              # 0: Linear(H, H)      + ReLU
            lin(H, half),           # 1: Linear(H, H/2)    -> LN0 + ReLU
            lin(half, half),        # 2: Linear(H/2, H/2)  + ReLU
            lin(half, half),        # 3: Linear(H/2, H/2)  -> LN1 + ReLU
            lin(half, half),        # 4: Linear(H/2, H/2)  + ReLU
            lin(half, half),        # 5: Linear(H/2, H/2)  -> LN2 + ReLU
            lin(half, half),        # 6: Linear(H/2, H/2)  + ReLU
            lin(half, output_dim),  # 7: Linear(H/2, O)
        ],
        "ln": [ln(half), ln(half), ln(half)],
    }
    return params


# ------------------------------ Forward --------------------------------------
def rnn_regressor_forward(x, params):
    # x: (B, 1, T) float32  (same tensor PyTorch's forward receives)
    seq = jnp.squeeze(x, axis=1)                 # (B, T)   == x.squeeze(1)
    B, T = seq.shape
    H = params["hidden_dim"]
    L = params["num_layers"]
    half = H // 2
    O = params["fc"][-1][0].shape[1]

    x_tb1 = jnp.transpose(seq)[:, :, None]       # (T, B, 1), time-major

    inputs = [x_tb1, params["w_ih0"]]
    if L > 1:
        inputs.append(params["w_ih_rest"])
    inputs += [params["w_hh"], params["b"]]
    for w, b in params["fc"]:
        inputs += [w, b]
    for g, b in params["ln"]:
        inputs += [g, b]

    # Advisory cost estimate so XLA overlaps the custom call with other work.
    rnn_flops = T * (2 * B * H * H + (L - 1) * 4 * B * H * H + 2 * B * H)
    head_flops = 2 * B * (H * H + H * half + 5 * half * half + half * O)
    transcendentals = T * L * B * H + 3 * B
    bytes_accessed = sum(int(a.size) * 4 for a in inputs) + B * O * 4

    return pl.pallas_call(
        functools.partial(_fused_kernel, L),
        out_shape=jax.ShapeDtypeStruct((B, O), jnp.float32),
        in_specs=[pl.BlockSpec(memory_space=pltpu.MemorySpace.VMEM)] * len(inputs),
        out_specs=pl.BlockSpec(memory_space=pltpu.MemorySpace.VMEM),
        cost_estimate=pl.CostEstimate(
            flops=rnn_flops + head_flops,
            transcendentals=transcendentals,
            bytes_accessed=bytes_accessed,
        ),
        # Tiny working set; 32 MiB scoped limit is safe on v5e/v6e/v7x alike.
        compiler_params=pltpu.CompilerParams(vmem_limit_bytes=32 * 1024 * 1024),
    )(*inputs)


if __name__ == "__main__":
    key = jax.random.PRNGKey(0)
    pkey, xkey = jax.random.split(key)

    B, T = 4, 8
    input_dim, hidden_dim, num_layers, output_dim = 1, 32, 2, 1

    params = init_params(pkey, input_dim, hidden_dim, num_layers, output_dim)
    x = jax.random.normal(xkey, (B, 1, T), jnp.float32)

    out = rnn_regressor_forward(x, params)
    out = jax.block_until_ready(out)
    assert out.shape == (B, output_dim), out.shape
    print("KERNEL_OK")
</pallas_src>

<mosaic_0001>
module attributes {stable_mosaic.version = 11 : i64} {
  func.func @_fused_kernel(%arg0: memref<8x4x1xf32, #tpu.memory_space<vmem>>, %arg1: memref<1x32xf32, #tpu.memory_space<vmem>>, %arg2: memref<1x32x32xf32, #tpu.memory_space<vmem>>, %arg3: memref<2x32x32xf32, #tpu.memory_space<vmem>>, %arg4: memref<2x1x32xf32, #tpu.memory_space<vmem>>, %arg5: memref<32x32xf32, #tpu.memory_space<vmem>>, %arg6: memref<1x32xf32, #tpu.memory_space<vmem>>, %arg7: memref<32x16xf32, #tpu.memory_space<vmem>>, %arg8: memref<1x16xf32, #tpu.memory_space<vmem>>, %arg9: memref<16x16xf32, #tpu.memory_space<vmem>>, %arg10: memref<1x16xf32, #tpu.memory_space<vmem>>, %arg11: memref<16x16xf32, #tpu.memory_space<vmem>>, %arg12: memref<1x16xf32, #tpu.memory_space<vmem>>, %arg13: memref<16x16xf32, #tpu.memory_space<vmem>>, %arg14: memref<1x16xf32, #tpu.memory_space<vmem>>, %arg15: memref<16x16xf32, #tpu.memory_space<vmem>>, %arg16: memref<1x16xf32, #tpu.memory_space<vmem>>, %arg17: memref<16x16xf32, #tpu.memory_space<vmem>>, %arg18: memref<1x16xf32, #tpu.memory_space<vmem>>, %arg19: memref<16x1xf32, #tpu.memory_space<vmem>>, %arg20: memref<1x1xf32, #tpu.memory_space<vmem>>, %arg21: memref<1x16xf32, #tpu.memory_space<vmem>>, %arg22: memref<1x16xf32, #tpu.memory_space<vmem>>, %arg23: memref<1x16xf32, #tpu.memory_space<vmem>>, %arg24: memref<1x16xf32, #tpu.memory_space<vmem>>, %arg25: memref<1x16xf32, #tpu.memory_space<vmem>>, %arg26: memref<1x16xf32, #tpu.memory_space<vmem>>, %arg27: memref<4x1xf32, #tpu.memory_space<vmem>>) attributes {dimension_semantics = [], scalar_prefetch = 0 : i64, scratch_operands = 0 : i64, tpu.core_type = #tpu.core_type<tc>} {
    %c0 = arith.constant 0 : index
    %c0_0 = arith.constant 0 : index
    %0 = vector.load %arg1[%c0, %c0_0] : memref<1x32xf32, #tpu.memory_space<vmem>>, vector<1x32xf32>
    %c0_1 = arith.constant 0 : index
    %c0_2 = arith.constant 0 : index
    %c0_3 = arith.constant 0 : index
    %1 = vector.load %arg3[%c0_1, %c0_2, %c0_3] : memref<2x32x32xf32, #tpu.memory_space<vmem>>, vector<1x32x32xf32>
    %2 = vector.shape_cast %1 : vector<1x32x32xf32> to vector<32x32xf32>
    %c1 = arith.constant 1 : index
    %c0_4 = arith.constant 0 : index
    %c0_5 = arith.constant 0 : index
    %3 = vector.load %arg3[%c1, %c0_4, %c0_5] : memref<2x32x32xf32, #tpu.memory_space<vmem>>, vector<1x32x32xf32>
    %4 = vector.shape_cast %3 : vector<1x32x32xf32> to vector<32x32xf32>
    %c0_6 = arith.constant 0 : index
    %c0_7 = arith.constant 0 : index
    %c0_8 = arith.constant 0 : index
    %5 = vector.load %arg2[%c0_6, %c0_7, %c0_8] : memref<1x32x32xf32, #tpu.memory_space<vmem>>, vector<1x32x32xf32>
    %6 = vector.shape_cast %5 : vector<1x32x32xf32> to vector<32x32xf32>
    %c0_9 = arith.constant 0 : index
    %c0_10 = arith.constant 0 : index
    %c0_11 = arith.constant 0 : index
    %7 = vector.load %arg4[%c0_9, %c0_10, %c0_11] : memref<2x1x32xf32, #tpu.memory_space<vmem>>, vector<1x1x32xf32>
    %8 = vector.shape_cast %7 : vector<1x1x32xf32> to vector<1x32xf32>
    %9 = vector.shape_cast %8 : vector<1x32xf32> to vector<1x32xf32>
    %10 = vector.broadcast %9 : vector<1x32xf32> to vector<4x32xf32>
    %c1_12 = arith.constant 1 : index
    %c0_13 = arith.constant 0 : index
    %c0_14 = arith.constant 0 : index
    %11 = vector.load %arg4[%c1_12, %c0_13, %c0_14] : memref<2x1x32xf32, #tpu.memory_space<vmem>>, vector<1x1x32xf32>
    %12 = vector.shape_cast %11 : vector<1x1x32xf32> to vector<1x32xf32>
    %13 = vector.shape_cast %12 : vector<1x32xf32> to vector<1x32xf32>
    %14 = vector.broadcast %13 : vector<1x32xf32> to vector<4x32xf32>
    %cst = arith.constant 0.000000e+00 : f32
    %15 = vector.broadcast %cst : f32 to vector<4x32xf32>
    %cst_15 = arith.constant 0.000000e+00 : f32
    %16 = vector.broadcast %cst_15 : f32 to vector<4x32xf32>
    %c0_i32 = arith.constant 0 : i32
    %17 = arith.index_cast %c0_i32 : i32 to index
    %c0_16 = arith.constant 0 : index
    %c0_17 = arith.constant 0 : index
    %18 = vector.load %arg0[%17, %c0_16, %c0_17] : memref<8x4x1xf32, #tpu.memory_space<vmem>>, vector<1x4x1xf32>
    %19 = vector.shape_cast %18 : vector<1x4x1xf32> to vector<4x1xf32>
    %20 = vector.broadcast %19 : vector<4x1xf32> to vector<4x32xf32>
    %21 = vector.broadcast %0 : vector<1x32xf32> to vector<4x32xf32>
    %22 = arith.mulf %20, %21 : vector<4x32xf32>
    %cst_18 = arith.constant dense<0.000000e+00> : vector<4x32xf32>
    %23 = tpu.matmul %15, %2, %cst_18 {dimension_numbers = #tpu.dot_dimension_numbers<[1], [0], [0], [1], [0, 0, 1, 1], [], []>} : vector<4x32xf32>, vector<32x32xf32>, vector<4x32xf32> -> vector<4x32xf32>
    %24 = arith.addf %22, %23 : vector<4x32xf32>
    %25 = arith.addf %24, %10 : vector<4x32xf32>
    %26 = math.tanh %25 : vector<4x32xf32>
    %cst_19 = arith.constant dense<0.000000e+00> : vector<4x32xf32>
    %27 = tpu.matmul %26, %6, %cst_19 {dimension_numbers = #tpu.dot_dimension_numbers<[1], [0], [0], [1], [0, 0, 1, 1], [], []>} : vector<4x32xf32>, vector<32x32xf32>, vector<4x32xf32> -> vector<4x32xf32>
    %cst_20 = arith.constant dense<0.000000e+00> : vector<4x32xf32>
    %28 = tpu.matmul %16, %4, %cst_20 {dimension_numbers = #tpu.dot_dimension_numbers<[1], [0], [0], [1], [0, 0, 1, 1], [], []>} : vector<4x32xf32>, vector<32x32xf32>, vector<4x32xf32> -> vector<4x32xf32>
    %29 = arith.addf %27, %28 : vector<4x32xf32>
    %30 = arith.addf %29, %14 : vector<4x32xf32>
    %31 = math.tanh %30 : vector<4x32xf32>
    %c1_i32 = arith.constant 1 : i32
    %32 = arith.index_cast %c1_i32 : i32 to index
    %c0_21 = arith.constant 0 : index
    %c0_22 = arith.constant 0 : index
    %33 = vector.load %arg0[%32, %c0_21, %c0_22] : memref<8x4x1xf32, #tpu.memory_space<vmem>>, vector<1x4x1xf32>
    %34 = vector.shape_cast %33 : vector<1x4x1xf32> to vector<4x1xf32>
    %35 = vector.broadcast %34 : vector<4x1xf32> to vector<4x32xf32>
    %36 = vector.broadcast %0 : vector<1x32xf32> to vector<4x32xf32>
    %37 = arith.mulf %35, %36 : vector<4x32xf32>
    %cst_23 = arith.constant dense<0.000000e+00> : vector<4x32xf32>
    %38 = tpu.matmul %26, %2, %cst_23 {dimension_numbers = #tpu.dot_dimension_numbers<[1], [0], [0], [1], [0, 0, 1, 1], [], []>} : vector<4x32xf32>, vector<32x32xf32>, vector<4x32xf32> -> vector<4x32xf32>
    %39 = arith.addf %37, %38 : vector<4x32xf32>
    %40 = arith.addf %39, %10 : vector<4x32xf32>
    %41 = math.tanh %40 : vector<4x32xf32>
    %cst_24 = arith.constant dense<0.000000e+00> : vector<4x32xf32>
    %42 = tpu.matmul %41, %6, %cst_24 {dimension_numbers = #tpu.dot_dimension_numbers<[1], [0], [0], [1], [0, 0, 1, 1], [], []>} : vector<4x32xf32>, vector<32x32xf32>, vector<4x32xf32> -> vector<4x32xf32>
    %cst_25 = arith.constant dense<0.000000e+00> : vector<4x32xf32>
    %43 = tpu.matmul %31, %4, %cst_25 {dimension_numbers = #tpu.dot_dimension_numbers<[1], [0], [0], [1], [0, 0, 1, 1], [], []>} : vector<4x32xf32>, vector<32x32xf32>, vector<4x32xf32> -> vector<4x32xf32>
    %44 = arith.addf %42, %43 : vector<4x32xf32>
    %45 = arith.addf %44, %14 : vector<4x32xf32>
    %46 = math.tanh %45 : vector<4x32xf32>
    %c2_i32 = arith.constant 2 : i32
    %47 = arith.index_cast %c2_i32 : i32 to index
    %c0_26 = arith.constant 0 : index
    %c0_27 = arith.constant 0 : index
    %48 = vector.load %arg0[%47, %c0_26, %c0_27] : memref<8x4x1xf32, #tpu.memory_space<vmem>>, vector<1x4x1xf32>
    %49 = vector.shape_cast %48 : vector<1x4x1xf32> to vector<4x1xf32>
    %50 = vector.broadcast %49 : vector<4x1xf32> to vector<4x32xf32>
    %51 = vector.broadcast %0 : vector<1x32xf32> to vector<4x32xf32>
    %52 = arith.mulf %50, %51 : vector<4x32xf32>
    %cst_28 = arith.constant dense<0.000000e+00> : vector<4x32xf32>
    %53 = tpu.matmul %41, %2, %cst_28 {dimension_numbers = #tpu.dot_dimension_numbers<[1], [0], [0], [1], [0, 0, 1, 1], [], []>} : vector<4x32xf32>, vector<32x32xf32>, vector<4x32xf32> -> vector<4x32xf32>
    %54 = arith.addf %52, %53 : vector<4x32xf32>
    %55 = arith.addf %54, %10 : vector<4x32xf32>
    %56 = math.tanh %55 : vector<4x32xf32>
    %cst_29 = arith.constant dense<0.000000e+00> : vector<4x32xf32>
    %57 = tpu.matmul %56, %6, %cst_29 {dimension_numbers = #tpu.dot_dimension_numbers<[1], [0], [0], [1], [0, 0, 1, 1], [], []>} : vector<4x32xf32>, vector<32x32xf32>, vector<4x32xf32> -> vector<4x32xf32>
    %cst_30 = arith.constant dense<0.000000e+00> : vector<4x32xf32>
    %58 = tpu.matmul %46, %4, %cst_30 {dimension_numbers = #tpu.dot_dimension_numbers<[1], [0], [0], [1], [0, 0, 1, 1], [], []>} : vector<4x32xf32>, vector<32x32xf32>, vector<4x32xf32> -> vector<4x32xf32>
    %59 = arith.addf %57, %58 : vector<4x32xf32>
    %60 = arith.addf %59, %14 : vector<4x32xf32>
    %61 = math.tanh %60 : vector<4x32xf32>
    %c3_i32 = arith.constant 3 : i32
    %62 = arith.index_cast %c3_i32 : i32 to index
    %c0_31 = arith.constant 0 : index
    %c0_32 = arith.constant 0 : index
    %63 = vector.load %arg0[%62, %c0_31, %c0_32] : memref<8x4x1xf32, #tpu.memory_space<vmem>>, vector<1x4x1xf32>
    %64 = vector.shape_cast %63 : vector<1x4x1xf32> to vector<4x1xf32>
    %65 = vector.broadcast %64 : vector<4x1xf32> to vector<4x32xf32>
    %66 = vector.broadcast %0 : vector<1x32xf32> to vector<4x32xf32>
    %67 = arith.mulf %65, %66 : vector<4x32xf32>
    %cst_33 = arith.constant dense<0.000000e+00> : vector<4x32xf32>
    %68 = tpu.matmul %56, %2, %cst_33 {dimension_numbers = #tpu.dot_dimension_numbers<[1], [0], [0], [1], [0, 0, 1, 1], [], []>} : vector<4x32xf32>, vector<32x32xf32>, vector<4x32xf32> -> vector<4x32xf32>
    %69 = arith.addf %67, %68 : vector<4x32xf32>
    %70 = arith.addf %69, %10 : vector<4x32xf32>
    %71 = math.tanh %70 : vector<4x32xf32>
    %cst_34 = arith.constant dense<0.000000e+00> : vector<4x32xf32>
    %72 = tpu.matmul %71, %6, %cst_34 {dimension_numbers = #tpu.dot_dimension_numbers<[1], [0], [0], [1], [0, 0, 1, 1], [], []>} : vector<4x32xf32>, vector<32x32xf32>, vector<4x32xf32> -> vector<4x32xf32>
    %cst_35 = arith.constant dense<0.000000e+00> : vector<4x32xf32>
    %73 = tpu.matmul %61, %4, %cst_35 {dimension_numbers = #tpu.dot_dimension_numbers<[1], [0], [0], [1], [0, 0, 1, 1], [], []>} : vector<4x32xf32>, vector<32x32xf32>, vector<4x32xf32> -> vector<4x32xf32>
    %74 = arith.addf %72, %73 : vector<4x32xf32>
    %75 = arith.addf %74, %14 : vector<4x32xf32>
    %76 = math.tanh %75 : vector<4x32xf32>
    %c4_i32 = arith.constant 4 : i32
    %77 = arith.index_cast %c4_i32 : i32 to index
    %c0_36 = arith.constant 0 : index
    %c0_37 = arith.constant 0 : index
    %78 = vector.load %arg0[%77, %c0_36, %c0_37] : memref<8x4x1xf32, #tpu.memory_space<vmem>>, vector<1x4x1xf32>
    %79 = vector.shape_cast %78 : vector<1x4x1xf32> to vector<4x1xf32>
    %80 = vector.broadcast %79 : vector<4x1xf32> to vector<4x32xf32>
    %81 = vector.broadcast %0 : vector<1x32xf32> to vector<4x32xf32>
    %82 = arith.mulf %80, %81 : vector<4x32xf32>
    %cst_38 = arith.constant dense<0.000000e+00> : vector<4x32xf32>
    %83 = tpu.matmul %71, %2, %cst_38 {dimension_numbers = #tpu.dot_dimension_numbers<[1], [0], [0], [1], [0, 0, 1, 1], [], []>} : vector<4x32xf32>, vector<32x32xf32>, vector<4x32xf32> -> vector<4x32xf32>
    %84 = arith.addf %82, %83 : vector<4x32xf32>
    %85 = arith.addf %84, %10 : vector<4x32xf32>
    %86 = math.tanh %85 : vector<4x32xf32>
    %cst_39 = arith.constant dense<0.000000e+00> : vector<4x32xf32>
    %87 = tpu.matmul %86, %6, %cst_39 {dimension_numbers = #tpu.dot_dimension_numbers<[1], [0], [0], [1], [0, 0, 1, 1], [], []>} : vector<4x32xf32>, vector<32x32xf32>, vector<4x32xf32> -> vector<4x32xf32>
    %cst_40 = arith.constant dense<0.000000e+00> : vector<4x32xf32>
    %88 = tpu.matmul %76, %4, %cst_40 {dimension_numbers = #tpu.dot_dimension_numbers<[1], [0], [0], [1], [0, 0, 1, 1], [], []>} : vector<4x32xf32>, vector<32x32xf32>, vector<4x32xf32> -> vector<4x32xf32>
    %89 = arith.addf %87, %88 : vector<4x32xf32>
    %90 = arith.addf %89, %14 : vector<4x32xf32>
    %91 = math.tanh %90 : vector<4x32xf32>
    %c5_i32 = arith.constant 5 : i32
    %92 = arith.index_cast %c5_i32 : i32 to index
    %c0_41 = arith.constant 0 : index
    %c0_42 = arith.constant 0 : index
    %93 = vector.load %arg0[%92, %c0_41, %c0_42] : memref<8x4x1xf32, #tpu.memory_space<vmem>>, vector<1x4x1xf32>
    %94 = vector.shape_cast %93 : vector<1x4x1xf32> to vector<4x1xf32>
    %95 = vector.broadcast %94 : vector<4x1xf32> to vector<4x32xf32>
    %96 = vector.broadcast %0 : vector<1x32xf32> to vector<4x32xf32>
    %97 = arith.mulf %95, %96 : vector<4x32xf32>
    %cst_43 = arith.constant dense<0.000000e+00> : vector<4x32xf32>
    %98 = tpu.matmul %86, %2, %cst_43 {dimension_numbers = #tpu.dot_dimension_numbers<[1], [0], [0], [1], [0, 0, 1, 1], [], []>} : vector<4x32xf32>, vector<32x32xf32>, vector<4x32xf32> -> vector<4x32xf32>
    %99 = arith.addf %97, %98 : vector<4x32xf32>
    %100 = arith.addf %99, %10 : vector<4x32xf32>
    %101 = math.tanh %100 : vector<4x32xf32>
    %cst_44 = arith.constant dense<0.000000e+00> : vector<4x32xf32>
    %102 = tpu.matmul %101, %6, %cst_44 {dimension_numbers = #tpu.dot_dimension_numbers<[1], [0], [0], [1], [0, 0, 1, 1], [], []>} : vector<4x32xf32>, vector<32x32xf32>, vector<4x32xf32> -> vector<4x32xf32>
    %cst_45 = arith.constant dense<0.000000e+00> : vector<4x32xf32>
    %103 = tpu.matmul %91, %4, %cst_45 {dimension_numbers = #tpu.dot_dimension_numbers<[1], [0], [0], [1], [0, 0, 1, 1], [], []>} : vector<4x32xf32>, vector<32x32xf32>, vector<4x32xf32> -> vector<4x32xf32>
    %104 = arith.addf %102, %103 : vector<4x32xf32>
    %105 = arith.addf %104, %14 : vector<4x32xf32>
    %106 = math.tanh %105 : vector<4x32xf32>
    %c6_i32 = arith.constant 6 : i32
    %107 = arith.index_cast %c6_i32 : i32 to index
    %c0_46 = arith.constant 0 : index
    %c0_47 = arith.constant 0 : index
    %108 = vector.load %arg0[%107, %c0_46, %c0_47] : memref<8x4x1xf32, #tpu.memory_space<vmem>>, vector<1x4x1xf32>
    %109 = vector.shape_cast %108 : vector<1x4x1xf32> to vector<4x1xf32>
    %110 = vector.broadcast %109 : vector<4x1xf32> to vector<4x32xf32>
    %111 = vector.broadcast %0 : vector<1x32xf32> to vector<4x32xf32>
    %112 = arith.mulf %110, %111 : vector<4x32xf32>
    %cst_48 = arith.constant dense<0.000000e+00> : vector<4x32xf32>
    %113 = tpu.matmul %101, %2, %cst_48 {dimension_numbers = #tpu.dot_dimension_numbers<[1], [0], [0], [1], [0, 0, 1, 1], [], []>} : vector<4x32xf32>, vector<32x32xf32>, vector<4x32xf32> -> vector<4x32xf32>
    %114 = arith.addf %112, %113 : vector<4x32xf32>
    %115 = arith.addf %114, %10 : vector<4x32xf32>
    %116 = math.tanh %115 : vector<4x32xf32>
    %cst_49 = arith.constant dense<0.000000e+00> : vector<4x32xf32>
    %117 = tpu.matmul %116, %6, %cst_49 {dimension_numbers = #tpu.dot_dimension_numbers<[1], [0], [0], [1], [0, 0, 1, 1], [], []>} : vector<4x32xf32>, vector<32x32xf32>, vector<4x32xf32> -> vector<4x32xf32>
    %cst_50 = arith.constant dense<0.000000e+00> : vector<4x32xf32>
    %118 = tpu.matmul %106, %4, %cst_50 {dimension_numbers = #tpu.dot_dimension_numbers<[1], [0], [0], [1], [0, 0, 1, 1], [], []>} : vector<4x32xf32>, vector<32x32xf32>, vector<4x32xf32> -> vector<4x32xf32>
    %119 = arith.addf %117, %118 : vector<4x32xf32>
    %120 = arith.addf %119, %14 : vector<4x32xf32>
    %121 = math.tanh %120 : vector<4x32xf32>
    %c7_i32 = arith.constant 7 : i32
    %122 = arith.index_cast %c7_i32 : i32 to index
    %c0_51 = arith.constant 0 : index
    %c0_52 = arith.constant 0 : index
    %123 = vector.load %arg0[%122, %c0_51, %c0_52] : memref<8x4x1xf32, #tpu.memory_space<vmem>>, vector<1x4x1xf32>
    %124 = vector.shape_cast %123 : vector<1x4x1xf32> to vector<4x1xf32>
    %125 = vector.broadcast %124 : vector<4x1xf32> to vector<4x32xf32>
    %126 = vector.broadcast %0 : vector<1x32xf32> to vector<4x32xf32>
    %127 = arith.mulf %125, %126 : vector<4x32xf32>
    %cst_53 = arith.constant dense<0.000000e+00> : vector<4x32xf32>
    %128 = tpu.matmul %116, %2, %cst_53 {dimension_numbers = #tpu.dot_dimension_numbers<[1], [0], [0], [1], [0, 0, 1, 1], [], []>} : vector<4x32xf32>, vector<32x32xf32>, vector<4x32xf32> -> vector<4x32xf32>
    %129 = arith.addf %127, %128 : vector<4x32xf32>
    %130 = arith.addf %129, %10 : vector<4x32xf32>
    %131 = math.tanh %130 : vector<4x32xf32>
    %cst_54 = arith.constant dense<0.000000e+00> : vector<4x32xf32>
    %132 = tpu.matmul %131, %6, %cst_54 {dimension_numbers = #tpu.dot_dimension_numbers<[1], [0], [0], [1], [0, 0, 1, 1], [], []>} : vector<4x32xf32>, vector<32x32xf32>, vector<4x32xf32> -> vector<4x32xf32>
    %cst_55 = arith.constant dense<0.000000e+00> : vector<4x32xf32>
    %133 = tpu.matmul %121, %4, %cst_55 {dimension_numbers = #tpu.dot_dimension_numbers<[1], [0], [0], [1], [0, 0, 1, 1], [], []>} : vector<4x32xf32>, vector<32x32xf32>, vector<4x32xf32> -> vector<4x32xf32>
    %134 = arith.addf %132, %133 : vector<4x32xf32>
    %135 = arith.addf %134, %14 : vector<4x32xf32>
    %136 = math.tanh %135 : vector<4x32xf32>
    %c8_i32 = arith.constant 8 : i32
    %c0_56 = arith.constant 0 : index
    %c0_57 = arith.constant 0 : index
    %137 = vector.load %arg5[%c0_56, %c0_57] : memref<32x32xf32, #tpu.memory_space<vmem>>, vector<32x32xf32>
    %cst_58 = arith.constant dense<0.000000e+00> : vector<4x32xf32>
    %138 = tpu.matmul %136, %137, %cst_58 {dimension_numbers = #tpu.dot_dimension_numbers<[1], [0], [0], [1], [0, 0, 1, 1], [], []>} : vector<4x32xf32>, vector<32x32xf32>, vector<4x32xf32> -> vector<4x32xf32>
    %c0_59 = arith.constant 0 : index
    %c0_60 = arith.constant 0 : index
    %139 = vector.load %arg6[%c0_59, %c0_60] : memref<1x32xf32, #tpu.memory_space<vmem>>, vector<1x32xf32>
    %140 = vector.broadcast %139 : vector<1x32xf32> to vector<4x32xf32>
    %141 = arith.addf %138, %140 : vector<4x32xf32>
    %cst_61 = arith.constant 0.000000e+00 : f32
    %142 = vector.broadcast %cst_61 : f32 to vector<4x32xf32>
    %143 = arith.maximumf %141, %142 : vector<4x32xf32>
    %c0_62 = arith.constant 0 : index
    %c0_63 = arith.constant 0 : index
    %144 = vector.load %arg7[%c0_62, %c0_63] : memref<32x16xf32, #tpu.memory_space<vmem>>, vector<32x16xf32>
    %cst_64 = arith.constant dense<0.000000e+00> : vector<4x16xf32>
    %145 = tpu.matmul %143, %144, %cst_64 {dimension_numbers = #tpu.dot_dimension_numbers<[1], [0], [0], [1], [0, 0, 1, 1], [], []>} : vector<4x32xf32>, vector<32x16xf32>, vector<4x16xf32> -> vector<4x16xf32>
    %c0_65 = arith.constant 0 : index
    %c0_66 = arith.constant 0 : index
    %146 = vector.load %arg8[%c0_65, %c0_66] : memref<1x16xf32, #tpu.memory_space<vmem>>, vector<1x16xf32>
    %147 = vector.broadcast %146 : vector<1x16xf32> to vector<4x16xf32>
    %148 = arith.addf %145, %147 : vector<4x16xf32>
    %cst_67 = arith.constant dense<0.000000e+00> : vector<4xf32>
    %149 = vector.multi_reduction <add>, %148, %cst_67 [1] : vector<4x16xf32> to vector<4xf32>
    %150 = vector.shape_cast %149 : vector<4xf32> to vector<4x1xf32>
    %cst_68 = arith.constant 1.600000e+01 : f32
    %151 = vector.broadcast %cst_68 : f32 to vector<4x1xf32>
    %152 = arith.divf %150, %151 : vector<4x1xf32>
    %153 = vector.broadcast %152 : vector<4x1xf32> to vector<4x16xf32>
    %154 = arith.subf %148, %153 : vector<4x16xf32>
    %155 = arith.mulf %154, %154 : vector<4x16xf32>
    %cst_69 = arith.constant dense<0.000000e+00> : vector<4xf32>
    %156 = vector.multi_reduction <add>, %155, %cst_69 [1] : vector<4x16xf32> to vector<4xf32>
    %157 = vector.shape_cast %156 : vector<4xf32> to vector<4x1xf32>
    %cst_70 = arith.constant 1.600000e+01 : f32
    %158 = vector.broadcast %cst_70 : f32 to vector<4x1xf32>
    %159 = arith.divf %157, %158 : vector<4x1xf32>
    %160 = vector.broadcast %152 : vector<4x1xf32> to vector<4x16xf32>
    %161 = arith.subf %148, %160 : vector<4x16xf32>
    %cst_71 = arith.constant 9.99999974E-6 : f32
    %162 = vector.broadcast %cst_71 : f32 to vector<4x1xf32>
    %163 = arith.addf %159, %162 : vector<4x1xf32>
    %164 = math.rsqrt %163 : vector<4x1xf32>
    %165 = vector.broadcast %164 : vector<4x1xf32> to vector<4x16xf32>
    %166 = arith.mulf %161, %165 : vector<4x16xf32>
    %c0_72 = arith.constant 0 : index
    %c0_73 = arith.constant 0 : index
    %167 = vector.load %arg21[%c0_72, %c0_73] : memref<1x16xf32, #tpu.memory_space<vmem>>, vector<1x16xf32>
    %168 = vector.broadcast %167 : vector<1x16xf32> to vector<4x16xf32>
    %169 = arith.mulf %166, %168 : vector<4x16xf32>
    %c0_74 = arith.constant 0 : index
    %c0_75 = arith.constant 0 : index
    %170 = vector.load %arg22[%c0_74, %c0_75] : memref<1x16xf32, #tpu.memory_space<vmem>>, vector<1x16xf32>
    %171 = vector.broadcast %170 : vector<1x16xf32> to vector<4x16xf32>
    %172 = arith.addf %169, %171 : vector<4x16xf32>
    %cst_76 = arith.constant 0.000000e+00 : f32
    %173 = vector.broadcast %cst_76 : f32 to vector<4x16xf32>
    %174 = arith.maximumf %172, %173 : vector<4x16xf32>
    %c0_77 = arith.constant 0 : index
    %c0_78 = arith.constant 0 : index
    %175 = vector.load %arg9[%c0_77, %c0_78] : memref<16x16xf32, #tpu.memory_space<vmem>>, vector<16x16xf32>
    %cst_79 = arith.constant dense<0.000000e+00> : vector<4x16xf32>
    %176 = tpu.matmul %174, %175, %cst_79 {dimension_numbers = #tpu.dot_dimension_numbers<[1], [0], [0], [1], [0, 0, 1, 1], [], []>} : vector<4x16xf32>, vector<16x16xf32>, vector<4x16xf32> -> vector<4x16xf32>
    %c0_80 = arith.constant 0 : index
    %c0_81 = arith.constant 0 : index
    %177 = vector.load %arg10[%c0_80, %c0_81] : memref<1x16xf32, #tpu.memory_space<vmem>>, vector<1x16xf32>
    %178 = vector.broadcast %177 : vector<1x16xf32> to vector<4x16xf32>
    %179 = arith.addf %176, %178 : vector<4x16xf32>
    %cst_82 = arith.constant 0.000000e+00 : f32
    %180 = vector.broadcast %cst_82 : f32 to vector<4x16xf32>
    %181 = arith.maximumf %179, %180 : vector<4x16xf32>
    %c0_83 = arith.constant 0 : index
    %c0_84 = arith.constant 0 : index
    %182 = vector.load %arg11[%c0_83, %c0_84] : memref<16x16xf32, #tpu.memory_space<vmem>>, vector<16x16xf32>
    %cst_85 = arith.constant dense<0.000000e+00> : vector<4x16xf32>
    %183 = tpu.matmul %181, %182, %cst_85 {dimension_numbers = #tpu.dot_dimension_numbers<[1], [0], [0], [1], [0, 0, 1, 1], [], []>} : vector<4x16xf32>, vector<16x16xf32>, vector<4x16xf32> -> vector<4x16xf32>
    %c0_86 = arith.constant 0 : index
    %c0_87 = arith.constant 0 : index
    %184 = vector.load %arg12[%c0_86, %c0_87] : memref<1x16xf32, #tpu.memory_space<vmem>>, vector<1x16xf32>
    %185 = vector.broadcast %184 : vector<1x16xf32> to vector<4x16xf32>
    %186 = arith.addf %183, %185 : vector<4x16xf32>
    %cst_88 = arith.constant dense<0.000000e+00> : vector<4xf32>
    %187 = vector.multi_reduction <add>, %186, %cst_88 [1] : vector<4x16xf32> to vector<4xf32>
    %188 = vector.shape_cast %187 : vector<4xf32> to vector<4x1xf32>
    %cst_89 = arith.constant 1.600000e+01 : f32
    %189 = vector.broadcast %cst_89 : f32 to vector<4x1xf32>
    %190 = arith.divf %188, %189 : vector<4x1xf32>
    %191 = vector.broadcast %190 : vector<4x1xf32> to vector<4x16xf32>
    %192 = arith.subf %186, %191 : vector<4x16xf32>
    %193 = arith.mulf %192, %192 : vector<4x16xf32>
    %cst_90 = arith.constant dense<0.000000e+00> : vector<4xf32>
    %194 = vector.multi_reduction <add>, %193, %cst_90 [1] : vector<4x16xf32> to vector<4xf32>
    %195 = vector.shape_cast %194 : vector<4xf32> to vector<4x1xf32>
    %cst_91 = arith.constant 1.600000e+01 : f32
    %196 = vector.broadcast %cst_91 : f32 to vector<4x1xf32>
    %197 = arith.divf %195, %196 : vector<4x1xf32>
    %198 = vector.broadcast %190 : vector<4x1xf32> to vector<4x16xf32>
    %199 = arith.subf %186, %198 : vector<4x16xf32>
    %cst_92 = arith.constant 9.99999974E-6 : f32
    %200 = vector.broadcast %cst_92 : f32 to vector<4x1xf32>
    %201 = arith.addf %197, %200 : vector<4x1xf32>
    %202 = math.rsqrt %201 : vector<4x1xf32>
    %203 = vector.broadcast %202 : vector<4x1xf32> to vector<4x16xf32>
    %204 = arith.mulf %199, %203 : vector<4x16xf32>
    %c0_93 = arith.constant 0 : index
    %c0_94 = arith.constant 0 : index
    %205 = vector.load %arg23[%c0_93, %c0_94] : memref<1x16xf32, #tpu.memory_space<vmem>>, vector<1x16xf32>
    %206 = vector.broadcast %205 : vector<1x16xf32> to vector<4x16xf32>
    %207 = arith.mulf %204, %206 : vector<4x16xf32>
    %c0_95 = arith.constant 0 : index
    %c0_96 = arith.constant 0 : index
    %208 = vector.load %arg24[%c0_95, %c0_96] : memref<1x16xf32, #tpu.memory_space<vmem>>, vector<1x16xf32>
    %209 = vector.broadcast %208 : vector<1x16xf32> to vector<4x16xf32>
    %210 = arith.addf %207, %209 : vector<4x16xf32>
    %cst_97 = arith.constant 0.000000e+00 : f32
    %211 = vector.broadcast %cst_97 : f32 to vector<4x16xf32>
    %212 = arith.maximumf %210, %211 : vector<4x16xf32>
    %c0_98 = arith.constant 0 : index
    %c0_99 = arith.constant 0 : index
    %213 = vector.load %arg13[%c0_98, %c0_99] : memref<16x16xf32, #tpu.memory_space<vmem>>, vector<16x16xf32>
    %cst_100 = arith.constant dense<0.000000e+00> : vector<4x16xf32>
    %214 = tpu.matmul %212, %213, %cst_100 {dimension_numbers = #tpu.dot_dimension_numbers<[1], [0], [0], [1], [0, 0, 1, 1], [], []>} : vector<4x16xf32>, vector<16x16xf32>, vector<4x16xf32> -> vector<4x16xf32>
    %c0_101 = arith.constant 0 : index
    %c0_102 = arith.constant 0 : index
    %215 = vector.load %arg14[%c0_101, %c0_102] : memref<1x16xf32, #tpu.memory_space<vmem>>, vector<1x16xf32>
    %216 = vector.broadcast %215 : vector<1x16xf32> to vector<4x16xf32>
    %217 = arith.addf %214, %216 : vector<4x16xf32>
    %cst_103 = arith.constant 0.000000e+00 : f32
    %218 = vector.broadcast %cst_103 : f32 to vector<4x16xf32>
    %219 = arith.maximumf %217, %218 : vector<4x16xf32>
    %c0_104 = arith.constant 0 : index
    %c0_105 = arith.constant 0 : index
    %220 = vector.load %arg15[%c0_104, %c0_105] : memref<16x16xf32, #tpu.memory_space<vmem>>, vector<16x16xf32>
    %cst_106 = arith.constant dense<0.000000e+00> : vector<4x16xf32>
    %221 = tpu.matmul %219, %220, %cst_106 {dimension_numbers = #tpu.dot_dimension_numbers<[1], [0], [0], [1], [0, 0, 1, 1], [], []>} : vector<4x16xf32>, vector<16x16xf32>, vector<4x16xf32> -> vector<4x16xf32>
    %c0_107 = arith.constant 0 : index
    %c0_108 = arith.constant 0 : index
    %222 = vector.load %arg16[%c0_107, %c0_108] : memref<1x16xf32, #tpu.memory_space<vmem>>, vector<1x16xf32>
    %223 = vector.broadcast %222 : vector<1x16xf32> to vector<4x16xf32>
    %224 = arith.addf %221, %223 : vector<4x16xf32>
    %cst_109 = arith.constant dense<0.000000e+00> : vector<4xf32>
    %225 = vector.multi_reduction <add>, %224, %cst_109 [1] : vector<4x16xf32> to vector<4xf32>
    %226 = vector.shape_cast %225 : vector<4xf32> to vector<4x1xf32>
    %cst_110 = arith.constant 1.600000e+01 : f32
    %227 = vector.broadcast %cst_110 : f32 to vector<4x1xf32>
    %228 = arith.divf %226, %227 : vector<4x1xf32>
    %229 = vector.broadcast %228 : vector<4x1xf32> to vector<4x16xf32>
    %230 = arith.subf %224, %229 : vector<4x16xf32>
    %231 = arith.mulf %230, %230 : vector<4x16xf32>
    %cst_111 = arith.constant dense<0.000000e+00> : vector<4xf32>
    %232 = vector.multi_reduction <add>, %231, %cst_111 [1] : vector<4x16xf32> to vector<4xf32>
    %233 = vector.shape_cast %232 : vector<4xf32> to vector<4x1xf32>
    %cst_112 = arith.constant 1.600000e+01 : f32
    %234 = vector.broadcast %cst_112 : f32 to vector<4x1xf32>
    %235 = arith.divf %233, %234 : vector<4x1xf32>
    %236 = vector.broadcast %228 : vector<4x1xf32> to vector<4x16xf32>
    %237 = arith.subf %224, %236 : vector<4x16xf32>
    %cst_113 = arith.constant 9.99999974E-6 : f32
    %238 = vector.broadcast %cst_113 : f32 to vector<4x1xf32>
    %239 = arith.addf %235, %238 : vector<4x1xf32>
    %240 = math.rsqrt %239 : vector<4x1xf32>
    %241 = vector.broadcast %240 : vector<4x1xf32> to vector<4x16xf32>
    %242 = arith.mulf %237, %241 : vector<4x16xf32>
    %c0_114 = arith.constant 0 : index
    %c0_115 = arith.constant 0 : index
    %243 = vector.load %arg25[%c0_114, %c0_115] : memref<1x16xf32, #tpu.memory_space<vmem>>, vector<1x16xf32>
    %244 = vector.broadcast %243 : vector<1x16xf32> to vector<4x16xf32>
    %245 = arith.mulf %242, %244 : vector<4x16xf32>
    %c0_116 = arith.constant 0 : index
    %c0_117 = arith.constant 0 : index
    %246 = vector.load %arg26[%c0_116, %c0_117] : memref<1x16xf32, #tpu.memory_space<vmem>>, vector<1x16xf32>
    %247 = vector.broadcast %246 : vector<1x16xf32> to vector<4x16xf32>
    %248 = arith.addf %245, %247 : vector<4x16xf32>
    %cst_118 = arith.constant 0.000000e+00 : f32
    %249 = vector.broadcast %cst_118 : f32 to vector<4x16xf32>
    %250 = arith.maximumf %248, %249 : vector<4x16xf32>
    %c0_119 = arith.constant 0 : index
    %c0_120 = arith.constant 0 : index
    %251 = vector.load %arg17[%c0_119, %c0_120] : memref<16x16xf32, #tpu.memory_space<vmem>>, vector<16x16xf32>
    %cst_121 = arith.constant dense<0.000000e+00> : vector<4x16xf32>
    %252 = tpu.matmul %250, %251, %cst_121 {dimension_numbers = #tpu.dot_dimension_numbers<[1], [0], [0], [1], [0, 0, 1, 1], [], []>} : vector<4x16xf32>, vector<16x16xf32>, vector<4x16xf32> -> vector<4x16xf32>
    %c0_122 = arith.constant 0 : index
    %c0_123 = arith.constant 0 : index
    %253 = vector.load %arg18[%c0_122, %c0_123] : memref<1x16xf32, #tpu.memory_space<vmem>>, vector<1x16xf32>
    %254 = vector.broadcast %253 : vector<1x16xf32> to vector<4x16xf32>
    %255 = arith.addf %252, %254 : vector<4x16xf32>
    %cst_124 = arith.constant 0.000000e+00 : f32
    %256 = vector.broadcast %cst_124 : f32 to vector<4x16xf32>
    %257 = arith.maximumf %255, %256 : vector<4x16xf32>
    %c0_125 = arith.constant 0 : index
    %c0_126 = arith.constant 0 : index
    %258 = vector.load %arg19[%c0_125, %c0_126] : memref<16x1xf32, #tpu.memory_space<vmem>>, vector<16x1xf32>
    %cst_127 = arith.constant dense<0.000000e+00> : vector<4x1xf32>
    %259 = tpu.matmul %257, %258, %cst_127 {dimension_numbers = #tpu.dot_dimension_numbers<[1], [0], [0], [1], [0, 0, 1, 1], [], []>} : vector<4x16xf32>, vector<16x1xf32>, vector<4x1xf32> -> vector<4x1xf32>
    %c0_128 = arith.constant 0 : index
    %c0_129 = arith.constant 0 : index
    %260 = vector.load %arg20[%c0_128, %c0_129] : memref<1x1xf32, #tpu.memory_space<vmem>>, vector<1x1xf32>
    %261 = vector.broadcast %260 : vector<1x1xf32> to vector<4x1xf32>
    %262 = arith.addf %259, %261 : vector<4x1xf32>
    %c0_130 = arith.constant 0 : index
    %c0_131 = arith.constant 0 : index
    %263 = vector.load %arg27[%c0_130, %c0_131] : memref<4x1xf32, #tpu.memory_space<vmem>>, vector<4x1xf32>
    tpu.vector_store %arg27[%c0_130, %c0_131], %262 {strides = array<i32>} : memref<4x1xf32, #tpu.memory_space<vmem>>, vector<4x1xf32>,
    return
  }
}

</mosaic_0001>

<llo_original>
// kernel: tpu_custom_call.1
$region0: #{tpu_custom_call.1}
  #allocation0 [shape = 'u32[]', space=smem, size = 0x4, offset = 0x4, fixed_abs, tag = 'smem constant byte address 0x4 - core index']
  #allocation1 [shape = 'u32[144,128]{1,0:T(1,128)}', space=vmem, size = 0x12000, scoped, tag = 'internal scratch']
  #allocation2 [shape = 'f32[1,1]{1,0:T(1,128)S(1)}', space=vmem, size = 0x200, scoped, tag = 'scoped memory for tpu_custom_call.1']
  %s0 = inlined_call_operand.vmem [shape: f32[8,4,1], index: 0, kind: input, shape index: {}]
  %s1 = inlined_call_operand.vmem [shape: f32[1,32], index: 1, kind: input, shape index: {}]
  %s2 = inlined_call_operand.vmem [shape: f32[1,32,32], index: 2, kind: input, shape index: {}]
  %s3 = inlined_call_operand.vmem [shape: f32[2,32,32], index: 3, kind: input, shape index: {}]
  %s4 = inlined_call_operand.hbm [shape: f32[2,1,32], index: 4, kind: input, shape index: {}]
  %s5 = inlined_call_operand.hbm [shape: f32[32,32], index: 5, kind: input, shape index: {}]
  %s6 = inlined_call_operand.hbm [shape: f32[1,32], index: 6, kind: input, shape index: {}]
  %s7 = inlined_call_operand.vmem [shape: f32[32,16], index: 7, kind: input, shape index: {}]
  %s8 = inlined_call_operand.hbm [shape: f32[1,16], index: 8, kind: input, shape index: {}]
  %s9 = inlined_call_operand.vmem [shape: f32[16,16], index: 9, kind: input, shape index: {}]
  %s10 = inlined_call_operand.hbm [shape: f32[1,16], index: 10, kind: input, shape index: {}]
  %s11 = inlined_call_operand.vmem [shape: f32[16,16], index: 11, kind: input, shape index: {}]
  %s12 = inlined_call_operand.hbm [shape: f32[1,16], index: 12, kind: input, shape index: {}]
  %s13 = inlined_call_operand.hbm [shape: f32[16,16], index: 13, kind: input, shape index: {}]
  %s14 = inlined_call_operand.hbm [shape: f32[1,16], index: 14, kind: input, shape index: {}]
  %s15 = inlined_call_operand.vmem [shape: f32[16,16], index: 15, kind: input, shape index: {}]
  %s16 = inlined_call_operand.vmem [shape: f32[1,16], index: 16, kind: input, shape index: {}]
  %s17 = inlined_call_operand.hbm [shape: f32[16,16], index: 17, kind: input, shape index: {}]
  %s18 = inlined_call_operand.vmem [shape: f32[1,16], index: 18, kind: input, shape index: {}]
  %s19 = inlined_call_operand.vmem [shape: f32[16,1], index: 19, kind: input, shape index: {}]
  %s20 = inlined_call_operand.<no memory space> [shape: f32[1,1], index: 20, kind: input, shape index: {}]
  %s21 = inlined_call_operand.vmem [shape: f32[1,16], index: 21, kind: input, shape index: {}]
  %s22 = inlined_call_operand.vmem [shape: f32[1,16], index: 22, kind: input, shape index: {}]
  %s23 = inlined_call_operand.vmem [shape: f32[1,16], index: 23, kind: input, shape index: {}]
  %s24 = inlined_call_operand.vmem [shape: f32[1,16], index: 24, kind: input, shape index: {}]
  %s25 = inlined_call_operand.vmem [shape: f32[1,16], index: 25, kind: input, shape index: {}]
  %s26 = inlined_call_operand.vmem [shape: f32[1,16], index: 26, kind: input, shape index: {}]
  %s27 = inlined_call_operand.vmem [shape: f32[4,1], index: 27, kind: output, shape index: {}]
  %s28 = sld [smem:[#allocation0]]
  $region154: #{tpu_custom_call.1} parent=0
    _
  %s30 = ssub.s32 1, %s28
  %s31 = scalar_select 0, %s30, %s28
  %v32 = vstv %s20
  %33 = vst [vmem:[#allocation2] sm:$0x1] %v32
  $region1: #{tpu_custom_call.1} parent=0
    #allocation3 [shape = 'u8[1024]{0}', space=vmem, size = 0x400, scoped, tag = 'input window, operand 4, single buffered']
    #allocation4 [shape = 's32[1]{0}', space=sflag, size = 0x4, scoped, tag = 'scoped memory for tpu_custom_call.1']
    #allocation5 [shape = 'u8[16384]{0}', space=vmem, size = 0x4000, scoped, tag = 'input window, operand 5, single buffered']
    #allocation6 [shape = 's32[1]{0}', space=sflag, size = 0x4, scoped, tag = 'scoped memory for tpu_custom_call.1']
    #allocation7 [shape = 'u8[512]{0}', space=vmem, size = 0x400, scoped, tag = 'input window, operand 6, single buffered']
    #allocation8 [shape = 'u8[512]{0}', space=vmem, size = 0x400, scoped, tag = 'input window, operand 8, single buffered']
    #allocation9 [shape = 's32[1]{0}', space=sflag, size = 0x4, scoped, tag = 'scoped memory for tpu_custom_call.1']
    #allocation10 [shape = 'u8[512]{0}', space=vmem, size = 0x400, scoped, tag = 'input window, operand 10, single buffered']
    #allocation11 [shape = 'u8[512]{0}', space=vmem, size = 0x400, scoped, tag = 'input window, operand 12, single buffered']
    #allocation12 [shape = 's32[1]{0}', space=sflag, size = 0x4, scoped, tag = 'scoped memory for tpu_custom_call.1']
    #allocation13 [shape = 'u8[8192]{0}', space=vmem, size = 0x2000, scoped, tag = 'input window, operand 13, single buffered']
    #allocation14 [shape = 'u8[512]{0}', space=vmem, size = 0x400, scoped, tag = 'input window, operand 14, single buffered']
    #allocation15 [shape = 's32[1]{0}', space=sflag, size = 0x4, scoped, tag = 'scoped memory for tpu_custom_call.1']
    #allocation16 [shape = 'u8[8192]{0}', space=vmem, size = 0x2000, scoped, tag = 'input window, operand 17, single buffered']
    %34 = vsyncpa [#allocation4], 0
    %35 = vsyncpa [#allocation6], 0
    %36 = vsyncpa [#allocation9], 0
    %37 = vsyncpa [#allocation12], 0
    %38 = vsyncpa [#allocation15], 0
    // Predicated region
    $region2: #{tpu_custom_call.1} parent=1 // pred_check
      _
    $region3: #{tpu_custom_call.1} parent=1 // pred_check_branch
      %40 = sbr.rel (0) target = $region5
    $region4: #{tpu_custom_call.1} parent=1 // pred_region
      _
    $region5: #{tpu_custom_call.1} parent=1 // pred_fallthru
      _
    // Predicated region
    $region6: #{tpu_custom_call.1} parent=1 // pred_check
      _
    $region7: #{tpu_custom_call.1} parent=1 // pred_check_branch
      %42 = sbr.rel (0) target = $region9
    $region8: #{tpu_custom_call.1} parent=1 // pred_region
      _
    $region9: #{tpu_custom_call.1} parent=1 // pred_fallthru
      _
    // Predicated region
    $region10: #{tpu_custom_call.1} parent=1 // pred_check
      _
    $region11: #{tpu_custom_call.1} parent=1 // pred_check_branch
      %44 = sbr.rel (0) target = $region13
    $region12: #{tpu_custom_call.1} parent=1 // pred_region
      _
    $region13: #{tpu_custom_call.1} parent=1 // pred_fallthru
      _
    // Predicated region
    $region14: #{tpu_custom_call.1} parent=1 // pred_check
      _
    $region15: #{tpu_custom_call.1} parent=1 // pred_check_branch
      %46 = sbr.rel (0) target = $region17
    $region16: #{tpu_custom_call.1} parent=1 // pred_region
      _
    $region17: #{tpu_custom_call.1} parent=1 // pred_fallthru
      _
    // Predicated region
    $region18: #{tpu_custom_call.1} parent=1 // pred_check
      _
    $region19: #{tpu_custom_call.1} parent=1 // pred_check_branch
      %48 = sbr.rel (0) target = $region21
    $region20: #{tpu_custom_call.1} parent=1 // pred_region
      %s50 = ssub.s32 32, 32
      %51 = vsyncadd [#allocation4], %s50
      %s52 = sshll.u32 [#allocation3], 4
      %s53 = int_to_ptr.vmem [resolvable:$true] %s52
      %58 = dma.hbm_to_vmem [thread:$0]  %s4, 32, %s53, [#allocation4], 16, 16, 1
    $region21: #{tpu_custom_call.1} parent=1 // pred_fallthru
      _
    // Predicated region
    $region22: #{tpu_custom_call.1} parent=1 // pred_check
      _
    $region23: #{tpu_custom_call.1} parent=1 // pred_check_branch
      %60 = sbr.rel (0) target = $region25
    $region24: #{tpu_custom_call.1} parent=1 // pred_region
      %s62 = ssub.s32 512, 512
      %63 = vsyncadd [#allocation6], %s62
      %s64 = sshll.u32 [#allocation5], 4
      %s65 = int_to_ptr.vmem [resolvable:$true] %s64
      %70 = dma.hbm_to_vmem [thread:$0]  %s5, 512, %s65, [#allocation6], 128, 128, 8
    $region25: #{tpu_custom_call.1} parent=1 // pred_fallthru
      _
    // Predicated region
    $region26: #{tpu_custom_call.1} parent=1 // pred_check
      _
    $region27: #{tpu_custom_call.1} parent=1 // pred_check_branch
      %72 = sbr.rel (0) target = $region29
    $region28: #{tpu_custom_call.1} parent=1 // pred_region
      %s74 = ssub.s32 16, 16
      %75 = vsyncadd [#allocation6], %s74
      %s77 = sshll.u32 [#allocation7], 4
      %s78 = int_to_ptr.vmem [resolvable:$true] %s77
      %80 = dma.hbm_to_vmem [thread:$0]  %s6, 16, %s78, [#allocation6]
    $region29: #{tpu_custom_call.1} parent=1 // pred_fallthru
      _
    // Predicated region
    $region30: #{tpu_custom_call.1} parent=1 // pred_check
      _
    $region31: #{tpu_custom_call.1} parent=1 // pred_check_branch
      %82 = sbr.rel (0) target = $region33
    $region32: #{tpu_custom_call.1} parent=1 // pred_region
      _
    $region33: #{tpu_custom_call.1} parent=1 // pred_fallthru
      _
    // Predicated region
    $region34: #{tpu_custom_call.1} parent=1 // pred_check
      _
    $region35: #{tpu_custom_call.1} parent=1 // pred_check_branch
      %84 = sbr.rel (0) target = $region37
    $region36: #{tpu_custom_call.1} parent=1 // pred_region
      %s86 = ssub.s32 16, 16
      %87 = vsyncadd [#allocation9], %s86
      %s89 = sshll.u32 [#allocation8], 4
      %s90 = int_to_ptr.vmem [resolvable:$true] %s89
      %92 = dma.hbm_to_vmem [thread:$0]  %s8, 16, %s90, [#allocation9]
    $region37: #{tpu_custom_call.1} parent=1 // pred_fallthru
      _
    // Predicated region
    $region38: #{tpu_custom_call.1} parent=1 // pred_check
      _
    $region39: #{tpu_custom_call.1} parent=1 // pred_check_branch
      %94 = sbr.rel (0) target = $region41
    $region40: #{tpu_custom_call.1} parent=1 // pred_region
      _
    $region41: #{tpu_custom_call.1} parent=1 // pred_fallthru
      _
    // Predicated region
    $region42: #{tpu_custom_call.1} parent=1 // pred_check
      _
    $region43: #{tpu_custom_call.1} parent=1 // pred_check_branch
      %96 = sbr.rel (0) target = $region45
    $region44: #{tpu_custom_call.1} parent=1 // pred_region
      %s98 = ssub.s32 16, 16
      %99 = vsyncadd [#allocation9], %s98
      %s101 = sshll.u32 [#allocation10], 4
      %s102 = int_to_ptr.vmem [resolvable:$true] %s101
      %104 = dma.hbm_to_vmem [thread:$0]  %s10, 16, %s102, [#allocation9]
    $region45: #{tpu_custom_call.1} parent=1 // pred_fallthru
      _
    // Predicated region
    $region46: #{tpu_custom_call.1} parent=1 // pred_check
      _
    $region47: #{tpu_custom_call.1} parent=1 // pred_check_branch
      %106 = sbr.rel (0) target = $region49
    $region48: #{tpu_custom_call.1} parent=1 // pred_region
      _
    $region49: #{tpu_custom_call.1} parent=1 // pred_fallthru
      _
    // Predicated region
    $region50: #{tpu_custom_call.1} parent=1 // pred_check
      _
    $region51: #{tpu_custom_call.1} parent=1 // pred_check_branch
      %108 = sbr.rel (0) target = $region53
    $region52: #{tpu_custom_call.1} parent=1 // pred_region
      %s110 = ssub.s32 16, 16
      %111 = vsyncadd [#allocation12], %s110
      %s113 = sshll.u32 [#allocation11], 4
      %s114 = int_to_ptr.vmem [resolvable:$true] %s113
      %116 = dma.hbm_to_vmem [thread:$0]  %s12, 16, %s114, [#allocation12]
    $region53: #{tpu_custom_call.1} parent=1 // pred_fallthru
      _
    // Predicated region
    $region54: #{tpu_custom_call.1} parent=1 // pred_check
      _
    $region55: #{tpu_custom_call.1} parent=1 // pred_check_branch
      %118 = sbr.rel (0) target = $region57
    $region56: #{tpu_custom_call.1} parent=1 // pred_region
      %s120 = ssub.s32 256, 256
      %121 = vsyncadd [#allocation12], %s120
      %s122 = sshll.u32 [#allocation13], 4
      %s123 = int_to_ptr.vmem [resolvable:$true] %s122
      %128 = dma.hbm_to_vmem [thread:$0]  %s13, 256, %s123, [#allocation12], 128, 128, 8
    $region57: #{tpu_custom_call.1} parent=1 // pred_fallthru
      _
    // Predicated region
    $region58: #{tpu_custom_call.1} parent=1 // pred_check
      _
    $region59: #{tpu_custom_call.1} parent=1 // pred_check_branch
      %130 = sbr.rel (0) target = $region61
    $region60: #{tpu_custom_call.1} parent=1 // pred_region
      %s132 = ssub.s32 16, 16
      %133 = vsyncadd [#allocation15], %s132
      %s135 = sshll.u32 [#allocation14], 4
      %s136 = int_to_ptr.vmem [resolvable:$true] %s135
      %138 = dma.hbm_to_vmem [thread:$0]  %s14, 16, %s136, [#allocation15]
    $region61: #{tpu_custom_call.1} parent=1 // pred_fallthru
      _
    // Predicated region
    $region62: #{tpu_custom_call.1} parent=1 // pred_check
      _
    $region63: #{tpu_custom_call.1} parent=1 // pred_check_branch
      %140 = sbr.rel (0) target = $region65
    $region64: #{tpu_custom_call.1} parent=1 // pred_region
      _
    $region65: #{tpu_custom_call.1} parent=1 // pred_fallthru
      _
    // Predicated region
    $region66: #{tpu_custom_call.1} parent=1 // pred_check
      _
    $region67: #{tpu_custom_call.1} parent=1 // pred_check_branch
      %142 = sbr.rel (0) target = $region69
    $region68: #{tpu_custom_call.1} parent=1 // pred_region
      _
    $region69: #{tpu_custom_call.1} parent=1 // pred_fallthru
      _
    // Predicated region
    $region70: #{tpu_custom_call.1} parent=1 // pred_check
      _
    $region71: #{tpu_custom_call.1} parent=1 // pred_check_branch
      %144 = sbr.rel (0) target = $region73
    $region72: #{tpu_custom_call.1} parent=1 // pred_region
      %s146 = ssub.s32 256, 256
      %147 = vsyncadd [#allocation15], %s146
      %s148 = sshll.u32 [#allocation16], 4
      %s149 = int_to_ptr.vmem [resolvable:$true] %s148
      %154 = dma.hbm_to_vmem [thread:$0]  %s17, 256, %s149, [#allocation15], 128, 128, 8
    $region73: #{tpu_custom_call.1} parent=1 // pred_fallthru
      _
    // Predicated region
    $region74: #{tpu_custom_call.1} parent=1 // pred_check
      _
    $region75: #{tpu_custom_call.1} parent=1 // pred_check_branch
      %156 = sbr.rel (0) target = $region77
    $region76: #{tpu_custom_call.1} parent=1 // pred_region
      _
    $region77: #{tpu_custom_call.1} parent=1 // pred_fallthru
      _
    // Predicated region
    $region78: #{tpu_custom_call.1} parent=1 // pred_check
      _
    $region79: #{tpu_custom_call.1} parent=1 // pred_check_branch
      %158 = sbr.rel (0) target = $region81
    $region80: #{tpu_custom_call.1} parent=1 // pred_region
      _
    $region81: #{tpu_custom_call.1} parent=1 // pred_fallthru
      _
    // Predicated region
    $region82: #{tpu_custom_call.1} parent=1 // pred_check
      _
    $region83: #{tpu_custom_call.1} parent=1 // pred_check_branch
      %160 = sbr.rel (0) target = $region85
    $region84: #{tpu_custom_call.1} parent=1 // pred_region
      _
    $region85: #{tpu_custom_call.1} parent=1 // pred_fallthru
      _
    // Predicated region
    $region86: #{tpu_custom_call.1} parent=1 // pred_check
      _
    $region87: #{tpu_custom_call.1} parent=1 // pred_check_branch
      %162 = sbr.rel (0) target = $region89
    $region88: #{tpu_custom_call.1} parent=1 // pred_region
      _
    $region89: #{tpu_custom_call.1} parent=1 // pred_fallthru
      _
    // Predicated region
    $region90: #{tpu_custom_call.1} parent=1 // pred_check
      _
    $region91: #{tpu_custom_call.1} parent=1 // pred_check_branch
      %164 = sbr.rel (0) target = $region93
    $region92: #{tpu_custom_call.1} parent=1 // pred_region
      _
    $region93: #{tpu_custom_call.1} parent=1 // pred_fallthru
      _
    // Predicated region
    $region94: #{tpu_custom_call.1} parent=1 // pred_check
      _
    $region95: #{tpu_custom_call.1} parent=1 // pred_check_branch
      %166 = sbr.rel (0) target = $region97
    $region96: #{tpu_custom_call.1} parent=1 // pred_region
      _
    $region97: #{tpu_custom_call.1} parent=1 // pred_fallthru
      _
    // Predicated region
    $region98: #{tpu_custom_call.1} parent=1 // pred_check
      _
    $region99: #{tpu_custom_call.1} parent=1 // pred_check_branch
      %168 = sbr.rel (0) target = $region101
    $region100: #{tpu_custom_call.1} parent=1 // pred_region
      _
    $region101: #{tpu_custom_call.1} parent=1 // pred_fallthru
      _
    // Predicated region
    $region102: #{tpu_custom_call.1} parent=1 // pred_check
      _
    $region103: #{tpu_custom_call.1} parent=1 // pred_check_branch
      %170 = sbr.rel (0) target = $region105
    $region104: #{tpu_custom_call.1} parent=1 // pred_region
      _
    $region105: #{tpu_custom_call.1} parent=1 // pred_fallthru
      _
    // Predicated region
    $region106: #{tpu_custom_call.1} parent=1 // pred_check
      _
    $region107: #{tpu_custom_call.1} parent=1 // pred_check_branch
      %172 = sbr.rel (0) target = $region109
    $region108: #{tpu_custom_call.1} parent=1 // pred_region
      _
    $region109: #{tpu_custom_call.1} parent=1 // pred_fallthru
      _
    // Predicated region
    $region110: #{tpu_custom_call.1} parent=1 // pred_check
      _
    $region111: #{tpu_custom_call.1} parent=1 // pred_check_branch
      %174 = sbr.rel (0) target = $region113
    $region112: #{tpu_custom_call.1} parent=1 // pred_region
      %175 = dma.done [#allocation4], 32
    $region113: #{tpu_custom_call.1} parent=1 // pred_fallthru
      _
    // Predicated region
    $region114: #{tpu_custom_call.1} parent=1 // pred_check
      _
    $region115: #{tpu_custom_call.1} parent=1 // pred_check_branch
      %177 = sbr.rel (0) target = $region117
    $region116: #{tpu_custom_call.1} parent=1 // pred_region
      %178 = dma.done [#allocation6], 512
    $region117: #{tpu_custom_call.1} parent=1 // pred_fallthru
      _
    // Predicated region
    $region118: #{tpu_custom_call.1} parent=1 // pred_check
      _
    $region119: #{tpu_custom_call.1} parent=1 // pred_check_branch
      %180 = sbr.rel (0) target = $region121
    $region120: #{tpu_custom_call.1} parent=1 // pred_region
      %181 = dma.done [#allocation6], 16
    $region121: #{tpu_custom_call.1} parent=1 // pred_fallthru
      _
    // Predicated region
    $region122: #{tpu_custom_call.1} parent=1 // pred_check
      _
    $region123: #{tpu_custom_call.1} parent=1 // pred_check_branch
      %183 = sbr.rel (0) target = $region125
    $region124: #{tpu_custom_call.1} parent=1 // pred_region
      %184 = dma.done [#allocation9], 16
    $region125: #{tpu_custom_call.1} parent=1 // pred_fallthru
      _
    // Predicated region
    $region126: #{tpu_custom_call.1} parent=1 // pred_check
      _
    $region127: #{tpu_custom_call.1} parent=1 // pred_check_branch
      %186 = sbr.rel (0) target = $region129
    $region128: #{tpu_custom_call.1} parent=1 // pred_region
      %187 = dma.done [#allocation9], 16
    $region129: #{tpu_custom_call.1} parent=1 // pred_fallthru
      _
    // Predicated region
    $region130: #{tpu_custom_call.1} parent=1 // pred_check
      _
    $region131: #{tpu_custom_call.1} parent=1 // pred_check_branch
      %189 = sbr.rel (0) target = $region133
    $region132: #{tpu_custom_call.1} parent=1 // pred_region
      %190 = dma.done [#allocation12], 16
    $region133: #{tpu_custom_call.1} parent=1 // pred_fallthru
      _
    // Predicated region
    $region134: #{tpu_custom_call.1} parent=1 // pred_check
      _
    $region135: #{tpu_custom_call.1} parent=1 // pred_check_branch
      %192 = sbr.rel (0) target = $region137
    $region136: #{tpu_custom_call.1} parent=1 // pred_region
      %193 = dma.done [#allocation12], 256
    $region137: #{tpu_custom_call.1} parent=1 // pred_fallthru
      _
    // Predicated region
    $region138: #{tpu_custom_call.1} parent=1 // pred_check
      _
    $region139: #{tpu_custom_call.1} parent=1 // pred_check_branch
      %195 = sbr.rel (0) target = $region141
    $region140: #{tpu_custom_call.1} parent=1 // pred_region
      %196 = dma.done [#allocation15], 16
    $region141: #{tpu_custom_call.1} parent=1 // pred_fallthru
      _
    // Predicated region
    $region142: #{tpu_custom_call.1} parent=1 // pred_check
      _
    $region143: #{tpu_custom_call.1} parent=1 // pred_check_branch
      %198 = sbr.rel (0) target = $region145
    $region144: #{tpu_custom_call.1} parent=1 // pred_region
      %199 = dma.done [#allocation15], 256
    $region145: #{tpu_custom_call.1} parent=1 // pred_fallthru
      _
    %v200 = vld [vmem:[%s1] sm:$0x1]
    %v201 = vld [vmem:[%s3] sm:$0xff]
    %v202 = vld [vmem:[%s3 + $0x8] sm:$0xff]
    %v203 = vld [vmem:[%s3 + $0x10] sm:$0xff]
    %v204 = vld [vmem:[%s3 + $0x18] sm:$0xff]
    %s205 = scalar_lea.vmem %s3, 32
    %v206 = vld [vmem:[%s205] sm:$0xff]
    %v207 = vld [vmem:[%s205 + $0x8] sm:$0xff]
    %v208 = vld [vmem:[%s205 + $0x10] sm:$0xff]
    %v209 = vld [vmem:[%s205 + $0x18] sm:$0xff]
    %v210 = vld [vmem:[%s2] sm:$0xff]
    %v211 = vld [vmem:[%s2 + $0x8] sm:$0xff]
    %v212 = vld [vmem:[%s2 + $0x10] sm:$0xff]
    %v213 = vld [vmem:[%s2 + $0x18] sm:$0xff]
    %v214 = vld [vmem:[#allocation3] sm:$0x1]
    %v216 = vlaneseq
    %v217 = vshrl.u32 %v216, 7
    %v218 = vsub.s32 0, %v217
    %v219 = vrot.slane %v214, %v218
    %s221 = scalar_lea.vmem [#allocation3], 1
    %v222 = vld [vmem:[%s221] sm:$0x1]
    %v224 = vlaneseq
    %v225 = vshrl.u32 %v224, 7
    %v226 = vsub.s32 0, %v225
    %v227 = vrot.slane %v222, %v226
    %v229 = vld [vmem:[%s0] sm:$0xf]
    %231 = vset.pattern.permute.xlu0 0
    %232 = vperm.xlu0 %231, %v229
    %v233 = vpop.permute.xlu0 %232
    %v236 = vlaneseq
    %v237 = vshrl.u32 %v236, 7
    %v238 = vsub.s32 0, %v237
    %v239 = vrot.slane %v200, %v238
    %v241 = vmul.f32 %v233, %v239
    %vm242 = vcmask 261120
    %v244 = vsel %vm242, 0.0, 0
    %246 = vmatprep.subr.mxu0 0.0
    %247 = vmatpush1.msra.mxu0 %v201
    %248 = vmatprep.subr.mxu0 0.0
    %249 = vmatpush1.msra.mxu0 %v202
    %250 = vmatprep.subr.mxu0 0.0
    %251 = vmatpush1.msra.mxu0 %v203
    %252 = vmatprep.subr.mxu0 0.0
    %253 = vmatpush1.msra.mxu0 %v204
    %254 = vmatprep.subr.mxu0 0.0
    %255 = vmatpush1.msra.mxu0 0.0
    %256 = vmatprep.subr.mxu0 0.0
    %257 = vmatpush1.msra.mxu0 0.0
    %258 = vmatprep.subr.mxu0 0.0
    %259 = vmatpush1.msra.mxu0 0.0
    %260 = vmatprep.subr.mxu0 0.0
    %261 = vmatpush1.msra.mxu0 0.0
    %262 = vmatprep.subr.mxu0 0.0
    %263 = vmatpush1.msra.mxu0 0.0
    %264 = vmatprep.subr.mxu0 0.0
    %265 = vmatpush1.msra.mxu0 0.0
    %266 = vmatprep.subr.mxu0 0.0
    %267 = vmatpush1.msra.mxu0 0.0
    %268 = vmatprep.subr.mxu0 0.0
    %269 = vmatpush1.msra.mxu0 0.0
    %270 = vmatprep.subr.mxu0 0.0
    %271 = vmatpush1.msra.mxu0 0.0
    %272 = vmatprep.subr.mxu0 0.0
    %273 = vmatpush1.msra.mxu0 0.0
    %274 = vmatprep.subr.mxu0 0.0
    %275 = vmatpush1.msra.mxu0 0.0
    %276 = vmatprep.subr.mxu0 0.0
    %277 = vmatpush1.msra.mxu0 0.0
    %278 = vmatprep.subr.mxu0 0.0
    %279 = vmatpush1.msra.mxu0 0.0
    %280 = vmatprep.subr.mxu0 0.0
    %281 = vmatpush1.msra.mxu0 0.0
    %282 = vmatprep.subr.mxu0 0.0
    %283 = vmatpush1.msra.mxu0 0.0
    %284 = vmatprep.subr.mxu0 0.0
    %285 = vmatpush1.msra.mxu0 0.0
    %286 = vmatprep.subr.mxu0 0.0
    %287 = vmatpush1.msra.mxu0 0.0
    %288 = vmatprep.subr.mxu0 0.0
    %289 = vmatpush1.msra.mxu0 0.0
    %290 = vmatprep.subr.mxu0 0.0
    %291 = vmatpush1.msra.mxu0 0.0
    %292 = vmatprep.subr.mxu0 0.0
    %293 = vmatpush1.msra.mxu0 0.0
    %294 = vmatprep.subr.mxu0 0.0
    %295 = vmatpush1.msra.mxu0 0.0
    %296 = vmatprep.subr.mxu0 0.0
    %297 = vmatpush1.msra.mxu0 0.0
    %298 = vmatprep.subr.mxu0 0.0
    %299 = vmatpush1.msra.mxu0 0.0
    %300 = vmatprep.subr.mxu0 0.0
    %301 = vmatpush1.msra.mxu0 0.0
    %302 = vmatprep.subr.mxu0 0.0
    %303 = vmatpush1.msra.mxu0 0.0
    %304 = vmatprep.subr.mxu0 0.0
    %305 = vmatpush1.msra.mxu0 0.0
    %306 = vmatprep.subr.mxu0 0.0
    %307 = vmatpush1.msra.mxu0 0.0
    %308 = vmatprep.subr.mxu0 0.0
    %309 = vmatpush1.msra.mxu0 0.0
    %310 = vmatprep.mubr.f32.mxu0 0.0
    %311 = vmatmul.mubr.f32.gmra.mrb[0].mxu0 %v244
    %v312 = vpop.f32.mrb[0].mxu0
    %v313 = vadd.f32 0.0, %v312
    %v314 = vpop.f32.mrb[0].mxu0
    %315 = vdwg.mxu0
    %v316 = vadd.f32 %v241, %v313
    %v317 = vadd.f32 %v316, %v219
    %v318 = vtanh.pop %v317
    %319 = vmatprep.subr.mxu0 0.0
    %320 = vmatpush1.msra.mxu0 %v206
    %321 = vmatprep.subr.mxu0 0.0
    %322 = vmatpush1.msra.mxu0 %v207
    %323 = vmatprep.subr.mxu0 0.0
    %324 = vmatpush1.msra.mxu0 %v208
    %325 = vmatprep.subr.mxu0 0.0
    %326 = vmatpush1.msra.mxu0 %v209
    %327 = vmatprep.subr.mxu0 0.0
    %328 = vmatpush1.msra.mxu0 0.0
    %329 = vmatprep.subr.mxu0 0.0
    %330 = vmatpush1.msra.mxu0 0.0
    %331 = vmatprep.subr.mxu0 0.0
    %332 = vmatpush1.msra.mxu0 0.0
    %333 = vmatprep.subr.mxu0 0.0
    %334 = vmatpush1.msra.mxu0 0.0
    %335 = vmatprep.subr.mxu0 0.0
    %336 = vmatpush1.msra.mxu0 0.0
    %337 = vmatprep.subr.mxu0 0.0
    %338 = vmatpush1.msra.mxu0 0.0
    %339 = vmatprep.subr.mxu0 0.0
    %340 = vmatpush1.msra.mxu0 0.0
    %341 = vmatprep.subr.mxu0 0.0
    %342 = vmatpush1.msra.mxu0 0.0
    %343 = vmatprep.subr.mxu0 0.0
    %344 = vmatpush1.msra.mxu0 0.0
    %345 = vmatprep.subr.mxu0 0.0
    %346 = vmatpush1.msra.mxu0 0.0
    %347 = vmatprep.subr.mxu0 0.0
    %348 = vmatpush1.msra.mxu0 0.0
    %349 = vmatprep.subr.mxu0 0.0
    %350 = vmatpush1.msra.mxu0 0.0
    %351 = vmatprep.subr.mxu0 0.0
    %352 = vmatpush1.msra.mxu0 0.0
    %353 = vmatprep.subr.mxu0 0.0
    %354 = vmatpush1.msra.mxu0 0.0
    %355 = vmatprep.subr.mxu0 0.0
    %356 = vmatpush1.msra.mxu0 0.0
    %357 = vmatprep.subr.mxu0 0.0
    %358 = vmatpush1.msra.mxu0 0.0
    %359 = vmatprep.subr.mxu0 0.0
    %360 = vmatpush1.msra.mxu0 0.0
    %361 = vmatprep.subr.mxu0 0.0
    %362 = vmatpush1.msra.mxu0 0.0
    %363 = vmatprep.subr.mxu0 0.0
    %364 = vmatpush1.msra.mxu0 0.0
    %365 = vmatprep.subr.mxu0 0.0
    %366 = vmatpush1.msra.mxu0 0.0
    %367 = vmatprep.subr.mxu0 0.0
    %368 = vmatpush1.msra.mxu0 0.0
    %369 = vmatprep.subr.mxu0 0.0
    %370 = vmatpush1.msra.mxu0 0.0
    %371 = vmatprep.subr.mxu0 0.0
    %372 = vmatpush1.msra.mxu0 0.0
    %373 = vmatprep.subr.mxu0 0.0
    %374 = vmatpush1.msra.mxu0 0.0
    %375 = vmatprep.subr.mxu0 0.0
    %376 = vmatpush1.msra.mxu0 0.0
    %377 = vmatprep.subr.mxu0 0.0
    %378 = vmatpush1.msra.mxu0 0.0
    %379 = vmatprep.subr.mxu0 0.0
    %380 = vmatpush1.msra.mxu0 0.0
    %381 = vmatprep.subr.mxu0 0.0
    %382 = vmatpush1.msra.mxu0 0.0
    %383 = vmatprep.mubr.f32.mxu0 0.0
    %384 = vmatmul.mubr.f32.gmra.mrb[0].mxu0 %v244
    %v385 = vpop.f32.mrb[0].mxu0
    %v386 = vadd.f32 0.0, %v385
    %v387 = vpop.f32.mrb[0].mxu0
    %388 = vdwg.mxu0
    %v390 = vsel %vm242, %v318, 0
    %392 = vmatprep.subr.mxu0 0.0
    %393 = vmatpush1.msra.mxu0 %v210
    %394 = vmatprep.subr.mxu0 0.0
    %395 = vmatpush1.msra.mxu0 %v211
    %396 = vmatprep.subr.mxu0 0.0
    %397 = vmatpush1.msra.mxu0 %v212
    %398 = vmatprep.subr.mxu0 0.0
    %399 = vmatpush1.msra.mxu0 %v213
    %400 = vmatprep.subr.mxu0 0.0
    %401 = vmatpush1.msra.mxu0 0.0
    %402 = vmatprep.subr.mxu0 0.0
    %403 = vmatpush1.msra.mxu0 0.0
    %404 = vmatprep.subr.mxu0 0.0
    %405 = vmatpush1.msra.mxu0 0.0
    %406 = vmatprep.subr.mxu0 0.0
    %407 = vmatpush1.msra.mxu0 0.0
    %408 = vmatprep.subr.mxu0 0.0
    %409 = vmatpush1.msra.mxu0 0.0
    %410 = vmatprep.subr.mxu0 0.0
    %411 = vmatpush1.msra.mxu0 0.0
    %412 = vmatprep.subr.mxu0 0.0
    %413 = vmatpush1.msra.mxu0 0.0
    %414 = vmatprep.subr.mxu0 0.0
    %415 = vmatpush1.msra.mxu0 0.0
    %416 = vmatprep.subr.mxu0 0.0
    %417 = vmatpush1.msra.mxu0 0.0
    %418 = vmatprep.subr.mxu0 0.0
    %419 = vmatpush1.msra.mxu0 0.0
    %420 = vmatprep.subr.mxu0 0.0
    %421 = vmatpush1.msra.mxu0 0.0
    %422 = vmatprep.subr.mxu0 0.0
    %423 = vmatpush1.msra.mxu0 0.0
    %424 = vmatprep.subr.mxu0 0.0
    %425 = vmatpush1.msra.mxu0 0.0
    %426 = vmatprep.subr.mxu0 0.0
    %427 = vmatpush1.msra.mxu0 0.0
    %428 = vmatprep.subr.mxu0 0.0
    %429 = vmatpush1.msra.mxu0 0.0
    %430 = vmatprep.subr.mxu0 0.0
    %431 = vmatpush1.msra.mxu0 0.0
    %432 = vmatprep.subr.mxu0 0.0
    %433 = vmatpush1.msra.mxu0 0.0
    %434 = vmatprep.subr.mxu0 0.0
    %435 = vmatpush1.msra.mxu0 0.0
    %436 = vmatprep.subr.mxu0 0.0
    %437 = vmatpush1.msra.mxu0 0.0
    %438 = vmatprep.subr.mxu0 0.0
    %439 = vmatpush1.msra.mxu0 0.0
    %440 = vmatprep.subr.mxu0 0.0
    %441 = vmatpush1.msra.mxu0 0.0
    %442 = vmatprep.subr.mxu0 0.0
    %443 = vmatpush1.msra.mxu0 0.0
    %444 = vmatprep.subr.mxu0 0.0
    %445 = vmatpush1.msra.mxu0 0.0
    %446 = vmatprep.subr.mxu0 0.0
    %447 = vmatpush1.msra.mxu0 0.0
    %448 = vmatprep.subr.mxu0 0.0
    %449 = vmatpush1.msra.mxu0 0.0
    %450 = vmatprep.subr.mxu0 0.0
    %451 = vmatpush1.msra.mxu0 0.0
    %452 = vmatprep.subr.mxu0 0.0
    %453 = vmatpush1.msra.mxu0 0.0
    %454 = vmatprep.subr.mxu0 0.0
    %455 = vmatpush1.msra.mxu0 0.0
    %456 = vmatprep.mubr.f32.mxu0 0.0
    %457 = vmatmul.mubr.f32.gmra.mrb[0].mxu0 %v390
    %v458 = vpop.f32.mrb[0].mxu0
    %v459 = vadd.f32 %v386, %v458
    %v460 = vpop.f32.mrb[0].mxu0
    %461 = vdwg.mxu0
    %v462 = vadd.f32 %v459, %v227
    %v463 = vtanh.pop %v462
    %s464 = scalar_lea.vmem %s0, 4
    %v465 = vld [vmem:[%s464] sm:$0xf]
    %467 = vset.pattern.permute.xlu0 0
    %468 = vperm.xlu0 %467, %v465
    %v469 = vpop.permute.xlu0 %468
    %v471 = vmul.f32 %v469, %v239
    %472 = vmatprep.subr.mxu0 0.0
    %473 = vmatpush1.msra.mxu0 %v201
    %474 = vmatprep.subr.mxu0 0.0
    %475 = vmatpush1.msra.mxu0 %v202
    %476 = vmatprep.subr.mxu0 0.0
    %477 = vmatpush1.msra.mxu0 %v203
    %478 = vmatprep.subr.mxu0 0.0
    %479 = vmatpush1.msra.mxu0 %v204
    %480 = vmatprep.subr.mxu0 0.0
    %481 = vmatpush1.msra.mxu0 0.0
    %482 = vmatprep.subr.mxu0 0.0
    %483 = vmatpush1.msra.mxu0 0.0
    %484 = vmatprep.subr.mxu0 0.0
    %485 = vmatpush1.msra.mxu0 0.0
    %486 = vmatprep.subr.mxu0 0.0
    %487 = vmatpush1.msra.mxu0 0.0
    %488 = vmatprep.subr.mxu0 0.0
    %489 = vmatpush1.msra.mxu0 0.0
    %490 = vmatprep.subr.mxu0 0.0
    %491 = vmatpush1.msra.mxu0 0.0
    %492 = vmatprep.subr.mxu0 0.0
    %493 = vmatpush1.msra.mxu0 0.0
    %494 = vmatprep.subr.mxu0 0.0
    %495 = vmatpush1.msra.mxu0 0.0
    %496 = vmatprep.subr.mxu0 0.0
    %497 = vmatpush1.msra.mxu0 0.0
    %498 = vmatprep.subr.mxu0 0.0
    %499 = vmatpush1.msra.mxu0 0.0
    %500 = vmatprep.subr.mxu0 0.0
    %501 = vmatpush1.msra.mxu0 0.0
    %502 = vmatprep.subr.mxu0 0.0
    %503 = vmatpush1.msra.mxu0 0.0
    %504 = vmatprep.subr.mxu0 0.0
    %505 = vmatpush1.msra.mxu0 0.0
    %506 = vmatprep.subr.mxu0 0.0
    %507 = vmatpush1.msra.mxu0 0.0
    %508 = vmatprep.subr.mxu0 0.0
    %509 = vmatpush1.msra.mxu0 0.0
    %510 = vmatprep.subr.mxu0 0.0
    %511 = vmatpush1.msra.mxu0 0.0
    %512 = vmatprep.subr.mxu0 0.0
    %513 = vmatpush1.msra.mxu0 0.0
    %514 = vmatprep.subr.mxu0 0.0
    %515 = vmatpush1.msra.mxu0 0.0
    %516 = vmatprep.subr.mxu0 0.0
    %517 = vmatpush1.msra.mxu0 0.0
    %518 = vmatprep.subr.mxu0 0.0
    %519 = vmatpush1.msra.mxu0 0.0
    %520 = vmatprep.subr.mxu0 0.0
    %521 = vmatpush1.msra.mxu0 0.0
    %522 = vmatprep.subr.mxu0 0.0
    %523 = vmatpush1.msra.mxu0 0.0
    %524 = vmatprep.subr.mxu0 0.0
    %525 = vmatpush1.msra.mxu0 0.0
    %526 = vmatprep.subr.mxu0 0.0
    %527 = vmatpush1.msra.mxu0 0.0
    %528 = vmatprep.subr.mxu0 0.0
    %529 = vmatpush1.msra.mxu0 0.0
    %530 = vmatprep.subr.mxu0 0.0
    %531 = vmatpush1.msra.mxu0 0.0
    %532 = vmatprep.subr.mxu0 0.0
    %533 = vmatpush1.msra.mxu0 0.0
    %534 = vmatprep.subr.mxu0 0.0
    %535 = vmatpush1.msra.mxu0 0.0
    %536 = vmatprep.mubr.f32.mxu0 0.0
    %537 = vmatmul.mubr.f32.gmra.mrb[0].mxu0 %v390
    %v538 = vpop.f32.mrb[0].mxu0
    %v539 = vadd.f32 0.0, %v538
    %v540 = vpop.f32.mrb[0].mxu0
    %541 = vdwg.mxu0
    %v542 = vadd.f32 %v471, %v539
    %v543 = vadd.f32 %v542, %v219
    %v544 = vtanh.pop %v543
    %v546 = vsel %vm242, %v463, 0
    %548 = vmatprep.subr.mxu0 0.0
    %549 = vmatpush1.msra.mxu0 %v206
    %550 = vmatprep.subr.mxu0 0.0
    %551 = vmatpush1.msra.mxu0 %v207
    %552 = vmatprep.subr.mxu0 0.0
    %553 = vmatpush1.msra.mxu0 %v208
    %554 = vmatprep.subr.mxu0 0.0
    %555 = vmatpush1.msra.mxu0 %v209
    %556 = vmatprep.subr.mxu0 0.0
    %557 = vmatpush1.msra.mxu0 0.0
    %558 = vmatprep.subr.mxu0 0.0
    %559 = vmatpush1.msra.mxu0 0.0
    %560 = vmatprep.subr.mxu0 0.0
    %561 = vmatpush1.msra.mxu0 0.0
    %562 = vmatprep.subr.mxu0 0.0
    %563 = vmatpush1.msra.mxu0 0.0
    %564 = vmatprep.subr.mxu0 0.0
    %565 = vmatpush1.msra.mxu0 0.0
    %566 = vmatprep.subr.mxu0 0.0
    %567 = vmatpush1.msra.mxu0 0.0
    %568 = vmatprep.subr.mxu0 0.0
    %569 = vmatpush1.msra.mxu0 0.0
    %570 = vmatprep.subr.mxu0 0.0
    %571 = vmatpush1.msra.mxu0 0.0
    %572 = vmatprep.subr.mxu0 0.0
    %573 = vmatpush1.msra.mxu0 0.0
    %574 = vmatprep.subr.mxu0 0.0
    %575 = vmatpush1.msra.mxu0 0.0
    %576 = vmatprep.subr.mxu0 0.0
    %577 = vmatpush1.msra.mxu0 0.0
    %578 = vmatprep.subr.mxu0 0.0
    %579 = vmatpush1.msra.mxu0 0.0
    %580 = vmatprep.subr.mxu0 0.0
    %581 = vmatpush1.msra.mxu0 0.0
    %582 = vmatprep.subr.mxu0 0.0
    %583 = vmatpush1.msra.mxu0 0.0
    %584 = vmatprep.subr.mxu0 0.0
    %585 = vmatpush1.msra.mxu0 0.0
    %586 = vmatprep.subr.mxu0 0.0
    %587 = vmatpush1.msra.mxu0 0.0
    %588 = vmatprep.subr.mxu0 0.0
    %589 = vmatpush1.msra.mxu0 0.0
    %590 = vmatprep.subr.mxu0 0.0
    %591 = vmatpush1.msra.mxu0 0.0
    %592 = vmatprep.subr.mxu0 0.0
    %593 = vmatpush1.msra.mxu0 0.0
    %594 = vmatprep.subr.mxu0 0.0
    %595 = vmatpush1.msra.mxu0 0.0
    %596 = vmatprep.subr.mxu0 0.0
    %597 = vmatpush1.msra.mxu0 0.0
    %598 = vmatprep.subr.mxu0 0.0
    %599 = vmatpush1.msra.mxu0 0.0
    %600 = vmatprep.subr.mxu0 0.0
    %601 = vmatpush1.msra.mxu0 0.0
    %602 = vmatprep.subr.mxu0 0.0
    %603 = vmatpush1.msra.mxu0 0.0
    %604 = vmatprep.subr.mxu0 0.0
    %605 = vmatpush1.msra.mxu0 0.0
    %606 = vmatprep.subr.mxu0 0.0
    %607 = vmatpush1.msra.mxu0 0.0
    %608 = vmatprep.subr.mxu0 0.0
    %609 = vmatpush1.msra.mxu0 0.0
    %610 = vmatprep.subr.mxu0 0.0
    %611 = vmatpush1.msra.mxu0 0.0
    %612 = vmatprep.mubr.f32.mxu0 0.0
    %613 = vmatmul.mubr.f32.gmra.mrb[0].mxu0 %v546
    %v614 = vpop.f32.mrb[0].mxu0
    %v615 = vadd.f32 0.0, %v614
    %v616 = vpop.f32.mrb[0].mxu0
    %617 = vdwg.mxu0
    %v619 = vsel %vm242, %v544, 0
    %621 = vmatprep.subr.mxu0 0.0
    %622 = vmatpush1.msra.mxu0 %v210
    %623 = vmatprep.subr.mxu0 0.0
    %624 = vmatpush1.msra.mxu0 %v211
    %625 = vmatprep.subr.mxu0 0.0
    %626 = vmatpush1.msra.mxu0 %v212
    %627 = vmatprep.subr.mxu0 0.0
    %628 = vmatpush1.msra.mxu0 %v213
    %629 = vmatprep.subr.mxu0 0.0
    %630 = vmatpush1.msra.mxu0 0.0
    %631 = vmatprep.subr.mxu0 0.0
    %632 = vmatpush1.msra.mxu0 0.0
    %633 = vmatprep.subr.mxu0 0.0
    %634 = vmatpush1.msra.mxu0 0.0
    %635 = vmatprep.subr.mxu0 0.0
    %636 = vmatpush1.msra.mxu0 0.0
    %637 = vmatprep.subr.mxu0 0.0
    %638 = vmatpush1.msra.mxu0 0.0
    %639 = vmatprep.subr.mxu0 0.0
    %640 = vmatpush1.msra.mxu0 0.0
    %641 = vmatprep.subr.mxu0 0.0
    %642 = vmatpush1.msra.mxu0 0.0
    %643 = vmatprep.subr.mxu0 0.0
    %644 = vmatpush1.msra.mxu0 0.0
    %645 = vmatprep.subr.mxu0 0.0
    %646 = vmatpush1.msra.mxu0 0.0
    %647 = vmatprep.subr.mxu0 0.0
    %648 = vmatpush1.msra.mxu0 0.0
    %649 = vmatprep.subr.mxu0 0.0
    %650 = vmatpush1.msra.mxu0 0.0
    %651 = vmatprep.subr.mxu0 0.0
    %652 = vmatpush1.msra.mxu0 0.0
    %653 = vmatprep.subr.mxu0 0.0
    %654 = vmatpush1.msra.mxu0 0.0
    %655 = vmatprep.subr.mxu0 0.0
    %656 = vmatpush1.msra.mxu0 0.0
    %657 = vmatprep.subr.mxu0 0.0
    %658 = vmatpush1.msra.mxu0 0.0
    %659 = vmatprep.subr.mxu0 0.0
    %660 = vmatpush1.msra.mxu0 0.0
    %661 = vmatprep.subr.mxu0 0.0
    %662 = vmatpush1.msra.mxu0 0.0
    %663 = vmatprep.subr.mxu0 0.0
    %664 = vmatpush1.msra.mxu0 0.0
    %665 = vmatprep.subr.mxu0 0.0
    %666 = vmatpush1.msra.mxu0 0.0
    %667 = vmatprep.subr.mxu0 0.0
    %668 = vmatpush1.msra.mxu0 0.0
    %669 = vmatprep.subr.mxu0 0.0
    %670 = vmatpush1.msra.mxu0 0.0
    %671 = vmatprep.subr.mxu0 0.0
    %672 = vmatpush1.msra.mxu0 0.0
    %673 = vmatprep.subr.mxu0 0.0
    %674 = vmatpush1.msra.mxu0 0.0
    %675 = vmatprep.subr.mxu0 0.0
    %676 = vmatpush1.msra.mxu0 0.0
    %677 = vmatprep.subr.mxu0 0.0
    %678 = vmatpush1.msra.mxu0 0.0
    %679 = vmatprep.subr.mxu0 0.0
    %680 = vmatpush1.msra.mxu0 0.0
    %681 = vmatprep.subr.mxu0 0.0
    %682 = vmatpush1.msra.mxu0 0.0
    %683 = vmatprep.subr.mxu0 0.0
    %684 = vmatpush1.msra.mxu0 0.0
    %685 = vmatprep.mubr.f32.mxu0 0.0
    %686 = vmatmul.mubr.f32.gmra.mrb[0].mxu0 %v619
    %v687 = vpop.f32.mrb[0].mxu0
    %v688 = vadd.f32 %v615, %v687
    %v689 = vpop.f32.mrb[0].mxu0
    %690 = vdwg.mxu0
    %v691 = vadd.f32 %v688, %v227
    %v692 = vtanh.pop %v691
    %s693 = scalar_lea.vmem %s0, 8
    %v694 = vld [vmem:[%s693] sm:$0xf]
    %696 = vset.pattern.permute.xlu0 0
    %697 = vperm.xlu0 %696, %v694
    %v698 = vpop.permute.xlu0 %697
    %v700 = vmul.f32 %v698, %v239
    %701 = vmatprep.subr.mxu0 0.0
    %702 = vmatpush1.msra.mxu0 %v201
    %703 = vmatprep.subr.mxu0 0.0
    %704 = vmatpush1.msra.mxu0 %v202
    %705 = vmatprep.subr.mxu0 0.0
    %706 = vmatpush1.msra.mxu0 %v203
    %707 = vmatprep.subr.mxu0 0.0
    %708 = vmatpush1.msra.mxu0 %v204
    %709 = vmatprep.subr.mxu0 0.0
    %710 = vmatpush1.msra.mxu0 0.0
    %711 = vmatprep.subr.mxu0 0.0
    %712 = vmatpush1.msra.mxu0 0.0
    %713 = vmatprep.subr.mxu0 0.0
    %714 = vmatpush1.msra.mxu0 0.0
    %715 = vmatprep.subr.mxu0 0.0
    %716 = vmatpush1.msra.mxu0 0.0
    %717 = vmatprep.subr.mxu0 0.0
    %718 = vmatpush1.msra.mxu0 0.0
    %719 = vmatprep.subr.mxu0 0.0
    %720 = vmatpush1.msra.mxu0 0.0
    %721 = vmatprep.subr.mxu0 0.0
    %722 = vmatpush1.msra.mxu0 0.0
    %723 = vmatprep.subr.mxu0 0.0
    %724 = vmatpush1.msra.mxu0 0.0
    %725 = vmatprep.subr.mxu0 0.0
    %726 = vmatpush1.msra.mxu0 0.0
    %727 = vmatprep.subr.mxu0 0.0
    %728 = vmatpush1.msra.mxu0 0.0
    %729 = vmatprep.subr.mxu0 0.0
    %730 = vmatpush1.msra.mxu0 0.0
    %731 = vmatprep.subr.mxu0 0.0
    %732 = vmatpush1.msra.mxu0 0.0
    %733 = vmatprep.subr.mxu0 0.0
    %734 = vmatpush1.msra.mxu0 0.0
    %735 = vmatprep.subr.mxu0 0.0
    %736 = vmatpush1.msra.mxu0 0.0
    %737 = vmatprep.subr.mxu0 0.0
    %738 = vmatpush1.msra.mxu0 0.0
    %739 = vmatprep.subr.mxu0 0.0
    %740 = vmatpush1.msra.mxu0 0.0
    %741 = vmatprep.subr.mxu0 0.0
    %742 = vmatpush1.msra.mxu0 0.0
    %743 = vmatprep.subr.mxu0 0.0
    %744 = vmatpush1.msra.mxu0 0.0
    %745 = vmatprep.subr.mxu0 0.0
    %746 = vmatpush1.msra.mxu0 0.0
    %747 = vmatprep.subr.mxu0 0.0
    %748 = vmatpush1.msra.mxu0 0.0
    %749 = vmatprep.subr.mxu0 0.0
    %750 = vmatpush1.msra.mxu0 0.0
    %751 = vmatprep.subr.mxu0 0.0
    %752 = vmatpush1.msra.mxu0 0.0
    %753 = vmatprep.subr.mxu0 0.0
    %754 = vmatpush1.msra.mxu0 0.0
    %755 = vmatprep.subr.mxu0 0.0
    %756 = vmatpush1.msra.mxu0 0.0
    %757 = vmatprep.subr.mxu0 0.0
    %758 = vmatpush1.msra.mxu0 0.0
    %759 = vmatprep.subr.mxu0 0.0
    %760 = vmatpush1.msra.mxu0 0.0
    %761 = vmatprep.subr.mxu0 0.0
    %762 = vmatpush1.msra.mxu0 0.0
    %763 = vmatprep.subr.mxu0 0.0
    %764 = vmatpush1.msra.mxu0 0.0
    %765 = vmatprep.mubr.f32.mxu0 0.0
    %766 = vmatmul.mubr.f32.gmra.mrb[0].mxu0 %v619
    %v767 = vpop.f32.mrb[0].mxu0
    %v768 = vadd.f32 0.0, %v767
    %v769 = vpop.f32.mrb[0].mxu0
    %770 = vdwg.mxu0
    %v771 = vadd.f32 %v700, %v768
    %v772 = vadd.f32 %v771, %v219
    %v773 = vtanh.pop %v772
    %v775 = vsel %vm242, %v692, 0
    %777 = vmatprep.subr.mxu0 0.0
    %778 = vmatpush1.msra.mxu0 %v206
    %779 = vmatprep.subr.mxu0 0.0
    %780 = vmatpush1.msra.mxu0 %v207
    %781 = vmatprep.subr.mxu0 0.0
    %782 = vmatpush1.msra.mxu0 %v208
    %783 = vmatprep.subr.mxu0 0.0
    %784 = vmatpush1.msra.mxu0 %v209
    %785 = vmatprep.subr.mxu0 0.0
    %786 = vmatpush1.msra.mxu0 0.0
    %787 = vmatprep.subr.mxu0 0.0
    %788 = vmatpush1.msra.mxu0 0.0
    %789 = vmatprep.subr.mxu0 0.0
    %790 = vmatpush1.msra.mxu0 0.0
    %791 = vmatprep.subr.mxu0 0.0
    %792 = vmatpush1.msra.mxu0 0.0
    %793 = vmatprep.subr.mxu0 0.0
    %794 = vmatpush1.msra.mxu0 0.0
    %795 = vmatprep.subr.mxu0 0.0
    %796 = vmatpush1.msra.mxu0 0.0
    %797 = vmatprep.subr.mxu0 0.0
    %798 = vmatpush1.msra.mxu0 0.0
    %799 = vmatprep.subr.mxu0 0.0
    %800 = vmatpush1.msra.mxu0 0.0
    %801 = vmatprep.subr.mxu0 0.0
    %802 = vmatpush1.msra.mxu0 0.0
    %803 = vmatprep.subr.mxu0 0.0
    %804 = vmatpush1.msra.mxu0 0.0
    %805 = vmatprep.subr.mxu0 0.0
    %806 = vmatpush1.msra.mxu0 0.0
    %807 = vmatprep.subr.mxu0 0.0
    %808 = vmatpush1.msra.mxu0 0.0
    %809 = vmatprep.subr.mxu0 0.0
    %810 = vmatpush1.msra.mxu0 0.0
    %811 = vmatprep.subr.mxu0 0.0
    %812 = vmatpush1.msra.mxu0 0.0
    %813 = vmatprep.subr.mxu0 0.0
    %814 = vmatpush1.msra.mxu0 0.0
    %815 = vmatprep.subr.mxu0 0.0
    %816 = vmatpush1.msra.mxu0 0.0
    %817 = vmatprep.subr.mxu0 0.0
    %818 = vmatpush1.msra.mxu0 0.0
    %819 = vmatprep.subr.mxu0 0.0
    %820 = vmatpush1.msra.mxu0 0.0
    %821 = vmatprep.subr.mxu0 0.0
    %822 = vmatpush1.msra.mxu0 0.0
    %823 = vmatprep.subr.mxu0 0.0
    %824 = vmatpush1.msra.mxu0 0.0
    %825 = vmatprep.subr.mxu0 0.0
    %826 = vmatpush1.msra.mxu0 0.0
    %827 = vmatprep.subr.mxu0 0.0
    %828 = vmatpush1.msra.mxu0 0.0
    %829 = vmatprep.subr.mxu0 0.0
    %830 = vmatpush1.msra.mxu0 0.0
    %831 = vmatprep.subr.mxu0 0.0
    %832 = vmatpush1.msra.mxu0 0.0
    %833 = vmatprep.subr.mxu0 0.0
    %834 = vmatpush1.msra.mxu0 0.0
    %835 = vmatprep.subr.mxu0 0.0
    %836 = vmatpush1.msra.mxu0 0.0
    %837 = vmatprep.subr.mxu0 0.0
    %838 = vmatpush1.msra.mxu0 0.0
    %839 = vmatprep.subr.mxu0 0.0
    %840 = vmatpush1.msra.mxu0 0.0
    %841 = vmatprep.mubr.f32.mxu0 0.0
    %842 = vmatmul.mubr.f32.gmra.mrb[0].mxu0 %v775
    %v843 = vpop.f32.mrb[0].mxu0
    %v844 = vadd.f32 0.0, %v843
    %v845 = vpop.f32.mrb[0].mxu0
    %846 = vdwg.mxu0
    %v848 = vsel %vm242, %v773, 0
    %850 = vmatprep.subr.mxu0 0.0
    %851 = vmatpush1.msra.mxu0 %v210
    %852 = vmatprep.subr.mxu0 0.0
    %853 = vmatpush1.msra.mxu0 %v211
    %854 = vmatprep.subr.mxu0 0.0
    %855 = vmatpush1.msra.mxu0 %v212
    %856 = vmatprep.subr.mxu0 0.0
    %857 = vmatpush1.msra.mxu0 %v213
    %858 = vmatprep.subr.mxu0 0.0
    %859 = vmatpush1.msra.mxu0 0.0
    %860 = vmatprep.subr.mxu0 0.0
    %861 = vmatpush1.msra.mxu0 0.0
    %862 = vmatprep.subr.mxu0 0.0
    %863 = vmatpush1.msra.mxu0 0.0
    %864 = vmatprep.subr.mxu0 0.0
    %865 = vmatpush1.msra.mxu0 0.0
    %866 = vmatprep.subr.mxu0 0.0
    %867 = vmatpush1.msra.mxu0 0.0
    %868 = vmatprep.subr.mxu0 0.0
    %869 = vmatpush1.msra.mxu0 0.0
    %870 = vmatprep.subr.mxu0 0.0
    %871 = vmatpush1.msra.mxu0 0.0
    %872 = vmatprep.subr.mxu0 0.0
    %873 = vmatpush1.msra.mxu0 0.0
    %874 = vmatprep.subr.mxu0 0.0
    %875 = vmatpush1.msra.mxu0 0.0
    %876 = vmatprep.subr.mxu0 0.0
    %877 = vmatpush1.msra.mxu0 0.0
    %878 = vmatprep.subr.mxu0 0.0
    %879 = vmatpush1.msra.mxu0 0.0
    %880 = vmatprep.subr.mxu0 0.0
    %881 = vmatpush1.msra.mxu0 0.0
    %882 = vmatprep.subr.mxu0 0.0
    %883 = vmatpush1.msra.mxu0 0.0
    %884 = vmatprep.subr.mxu0 0.0
    %885 = vmatpush1.msra.mxu0 0.0
    %886 = vmatprep.subr.mxu0 0.0
    %887 = vmatpush1.msra.mxu0 0.0
    %888 = vmatprep.subr.mxu0 0.0
    %889 = vmatpush1.msra.mxu0 0.0
    %890 = vmatprep.subr.mxu0 0.0
    %891 = vmatpush1.msra.mxu0 0.0
    %892 = vmatprep.subr.mxu0 0.0
    %893 = vmatpush1.msra.mxu0 0.0
    %894 = vmatprep.subr.mxu0 0.0
    %895 = vmatpush1.msra.mxu0 0.0
    %896 = vmatprep.subr.mxu0 0.0
    %897 = vmatpush1.msra.mxu0 0.0
    %898 = vmatprep.subr.mxu0 0.0
    %899 = vmatpush1.msra.mxu0 0.0
    %900 = vmatprep.subr.mxu0 0.0
    %901 = vmatpush1.msra.mxu0 0.0
    %902 = vmatprep.subr.mxu0 0.0
    %903 = vmatpush1.msra.mxu0 0.0
    %904 = vmatprep.subr.mxu0 0.0
    %905 = vmatpush1.msra.mxu0 0.0
    %906 = vmatprep.subr.mxu0 0.0
    %907 = vmatpush1.msra.mxu0 0.0
    %908 = vmatprep.subr.mxu0 0.0
    %909 = vmatpush1.msra.mxu0 0.0
    %910 = vmatprep.subr.mxu0 0.0
    %911 = vmatpush1.msra.mxu0 0.0
    %912 = vmatprep.subr.mxu0 0.0
    %913 = vmatpush1.msra.mxu0 0.0
    %914 = vmatprep.mubr.f32.mxu0 0.0
    %915 = vmatmul.mubr.f32.gmra.mrb[0].mxu0 %v848
    %v916 = vpop.f32.mrb[0].mxu0
    %v917 = vadd.f32 %v844, %v916
    %v918 = vpop.f32.mrb[0].mxu0
    %919 = vdwg.mxu0
    %v920 = vadd.f32 %v917, %v227
    %v921 = vtanh.pop %v920
    %s922 = scalar_lea.vmem %s0, 12
    %v923 = vld [vmem:[%s922] sm:$0xf]
    %925 = vset.pattern.permute.xlu0 0
    %926 = vperm.xlu0 %925, %v923
    %v927 = vpop.permute.xlu0 %926
    %v929 = vmul.f32 %v927, %v239
    %930 = vmatprep.subr.mxu0 0.0
    %931 = vmatpush1.msra.mxu0 %v201
    %932 = vmatprep.subr.mxu0 0.0
    %933 = vmatpush1.msra.mxu0 %v202
    %934 = vmatprep.subr.mxu0 0.0
    %935 = vmatpush1.msra.mxu0 %v203
    %936 = vmatprep.subr.mxu0 0.0
    %937 = vmatpush1.msra.mxu0 %v204
    %938 = vmatprep.subr.mxu0 0.0
    %939 = vmatpush1.msra.mxu0 0.0
    %940 = vmatprep.subr.mxu0 0.0
    %941 = vmatpush1.msra.mxu0 0.0
    %942 = vmatprep.subr.mxu0 0.0
    %943 = vmatpush1.msra.mxu0 0.0
    %944 = vmatprep.subr.mxu0 0.0
    %945 = vmatpush1.msra.mxu0 0.0
    %946 = vmatprep.subr.mxu0 0.0
    %947 = vmatpush1.msra.mxu0 0.0
    %948 = vmatprep.subr.mxu0 0.0
    %949 = vmatpush1.msra.mxu0 0.0
    %950 = vmatprep.subr.mxu0 0.0
    %951 = vmatpush1.msra.mxu0 0.0
    %952 = vmatprep.subr.mxu0 0.0
    %953 = vmatpush1.msra.mxu0 0.0
    %954 = vmatprep.subr.mxu0 0.0
    %955 = vmatpush1.msra.mxu0 0.0
    %956 = vmatprep.subr.mxu0 0.0
    %957 = vmatpush1.msra.mxu0 0.0
    %958 = vmatprep.subr.mxu0 0.0
    %959 = vmatpush1.msra.mxu0 0.0
    %960 = vmatprep.subr.mxu0 0.0
    %961 = vmatpush1.msra.mxu0 0.0
    %962 = vmatprep.subr.mxu0 0.0
    %963 = vmatpush1.msra.mxu0 0.0
    %964 = vmatprep.subr.mxu0 0.0
    %965 = vmatpush1.msra.mxu0 0.0
    %966 = vmatprep.subr.mxu0 0.0
    %967 = vmatpush1.msra.mxu0 0.0
    %968 = vmatprep.subr.mxu0 0.0
    %969 = vmatpush1.msra.mxu0 0.0
    %970 = vmatprep.subr.mxu0 0.0
    %971 = vmatpush1.msra.mxu0 0.0
    %972 = vmatprep.subr.mxu0 0.0
    %973 = vmatpush1.msra.mxu0 0.0
    %974 = vmatprep.subr.mxu0 0.0
    %975 = vmatpush1.msra.mxu0 0.0
    %976 = vmatprep.subr.mxu0 0.0
    %977 = vmatpush1.msra.mxu0 0.0
    %978 = vmatprep.subr.mxu0 0.0
    %979 = vmatpush1.msra.mxu0 0.0
    %980 = vmatprep.subr.mxu0 0.0
    %981 = vmatpush1.msra.mxu0 0.0
    %982 = vmatprep.subr.mxu0 0.0
    %983 = vmatpush1.msra.mxu0 0.0
    %984 = vmatprep.subr.mxu0 0.0
    %985 = vmatpush1.msra.mxu0 0.0
    %986 = vmatprep.subr.mxu0 0.0
    %987 = vmatpush1.msra.mxu0 0.0
    %988 = vmatprep.subr.mxu0 0.0
    %989 = vmatpush1.msra.mxu0 0.0
    %990 = vmatprep.subr.mxu0 0.0
    %991 = vmatpush1.msra.mxu0 0.0
    %992 = vmatprep.subr.mxu0 0.0
    %993 = vmatpush1.msra.mxu0 0.0
    %994 = vmatprep.mubr.f32.mxu0 0.0
    %995 = vmatmul.mubr.f32.gmra.mrb[0].mxu0 %v848
    %v996 = vpop.f32.mrb[0].mxu0
    %v997 = vadd.f32 0.0, %v996
    %v998 = vpop.f32.mrb[0].mxu0
    %999 = vdwg.mxu0
    %v1000 = vadd.f32 %v929, %v997
    %v1001 = vadd.f32 %v1000, %v219
    %v1002 = vtanh.pop %v1001
    %v1004 = vsel %vm242, %v921, 0
    %1006 = vmatprep.subr.mxu0 0.0
    %1007 = vmatpush1.msra.mxu0 %v206
    %1008 = vmatprep.subr.mxu0 0.0
    %1009 = vmatpush1.msra.mxu0 %v207
    %1010 = vmatprep.subr.mxu0 0.0
    %1011 = vmatpush1.msra.mxu0 %v208
    %1012 = vmatprep.subr.mxu0 0.0
    %1013 = vmatpush1.msra.mxu0 %v209
    %1014 = vmatprep.subr.mxu0 0.0
    %1015 = vmatpush1.msra.mxu0 0.0
    %1016 = vmatprep.subr.mxu0 0.0
    %1017 = vmatpush1.msra.mxu0 0.0
    %1018 = vmatprep.subr.mxu0 0.0
    %1019 = vmatpush1.msra.mxu0 0.0
    %1020 = vmatprep.subr.mxu0 0.0
    %1021 = vmatpush1.msra.mxu0 0.0
    %1022 = vmatprep.subr.mxu0 0.0
    %1023 = vmatpush1.msra.mxu0 0.0
    %1024 = vmatprep.subr.mxu0 0.0
    %1025 = vmatpush1.msra.mxu0 0.0
    %1026 = vmatprep.subr.mxu0 0.0
    %1027 = vmatpush1.msra.mxu0 0.0
    %1028 = vmatprep.subr.mxu0 0.0
    %1029 = vmatpush1.msra.mxu0 0.0
    %1030 = vmatprep.subr.mxu0 0.0
    %1031 = vmatpush1.msra.mxu0 0.0
    %1032 = vmatprep.subr.mxu0 0.0
    %1033 = vmatpush1.msra.mxu0 0.0
    %1034 = vmatprep.subr.mxu0 0.0
    %1035 = vmatpush1.msra.mxu0 0.0
    %1036 = vmatprep.subr.mxu0 0.0
    %1037 = vmatpush1.msra.mxu0 0.0
    %1038 = vmatprep.subr.mxu0 0.0
    %1039 = vmatpush1.msra.mxu0 0.0
    %1040 = vmatprep.subr.mxu0 0.0
    %1041 = vmatpush1.msra.mxu0 0.0
    %1042 = vmatprep.subr.mxu0 0.0
    %1043 = vmatpush1.msra.mxu0 0.0
    %1044 = vmatprep.subr.mxu0 0.0
    %1045 = vmatpush1.msra.mxu0 0.0
    %1046 = vmatprep.subr.mxu0 0.0
    %1047 = vmatpush1.msra.mxu0 0.0
    %1048 = vmatprep.subr.mxu0 0.0
    %1049 = vmatpush1.msra.mxu0 0.0
    %1050 = vmatprep.subr.mxu0 0.0
    %1051 = vmatpush1.msra.mxu0 0.0
    %1052 = vmatprep.subr.mxu0 0.0
    %1053 = vmatpush1.msra.mxu0 0.0
    %1054 = vmatprep.subr.mxu0 0.0
    %1055 = vmatpush1.msra.mxu0 0.0
    %1056 = vmatprep.subr.mxu0 0.0
    %1057 = vmatpush1.msra.mxu0 0.0
    %1058 = vmatprep.subr.mxu0 0.0
    %1059 = vmatpush1.msra.mxu0 0.0
    %1060 = vmatprep.subr.mxu0 0.0
    %1061 = vmatpush1.msra.mxu0 0.0
    %1062 = vmatprep.subr.mxu0 0.0
    %1063 = vmatpush1.msra.mxu0 0.0
    %1064 = vmatprep.subr.mxu0 0.0
    %1065 = vmatpush1.msra.mxu0 0.0
    %1066 = vmatprep.subr.mxu0 0.0
    %1067 = vmatpush1.msra.mxu0 0.0
    %1068 = vmatprep.subr.mxu0 0.0
    %1069 = vmatpush1.msra.mxu0 0.0
    %1070 = vmatprep.mubr.f32.mxu0 0.0
    %1071 = vmatmul.mubr.f32.gmra.mrb[0].mxu0 %v1004
    %v1072 = vpop.f32.mrb[0].mxu0
    %v1073 = vadd.f32 0.0, %v1072
    %v1074 = vpop.f32.mrb[0].mxu0
    %1075 = vdwg.mxu0
    %v1077 = vsel %vm242, %v1002, 0
    %1079 = vmatprep.subr.mxu0 0.0
    %1080 = vmatpush1.msra.mxu0 %v210
    %1081 = vmatprep.subr.mxu0 0.0
    %1082 = vmatpush1.msra.mxu0 %v211
    %1083 = vmatprep.subr.mxu0 0.0
    %1084 = vmatpush1.msra.mxu0 %v212
    %1085 = vmatprep.subr.mxu0 0.0
    %1086 = vmatpush1.msra.mxu0 %v213
    %1087 = vmatprep.subr.mxu0 0.0
    %1088 = vmatpush1.msra.mxu0 0.0
    %1089 = vmatprep.subr.mxu0 0.0
    %1090 = vmatpush1.msra.mxu0 0.0
    %1091 = vmatprep.subr.mxu0 0.0
    %1092 = vmatpush1.msra.mxu0 0.0
    %1093 = vmatprep.subr.mxu0 0.0
    %1094 = vmatpush1.msra.mxu0 0.0
    %1095 = vmatprep.subr.mxu0 0.0
    %1096 = vmatpush1.msra.mxu0 0.0
    %1097 = vmatprep.subr.mxu0 0.0
    %1098 = vmatpush1.msra.mxu0 0.0
    %1099 = vmatprep.subr.mxu0 0.0
    %1100 = vmatpush1.msra.mxu0 0.0
    %1101 = vmatprep.subr.mxu0 0.0
    %1102 = vmatpush1.msra.mxu0 0.0
    %1103 = vmatprep.subr.mxu0 0.0
    %1104 = vmatpush1.msra.mxu0 0.0
    %1105 = vmatprep.subr.mxu0 0.0
    %1106 = vmatpush1.msra.mxu0 0.0
    %1107 = vmatprep.subr.mxu0 0.0
    %1108 = vmatpush1.msra.mxu0 0.0
    %1109 = vmatprep.subr.mxu0 0.0
    %1110 = vmatpush1.msra.mxu0 0.0
    %1111 = vmatprep.subr.mxu0 0.0
    %1112 = vmatpush1.msra.mxu0 0.0
    %1113 = vmatprep.subr.mxu0 0.0
    %1114 = vmatpush1.msra.mxu0 0.0
    %1115 = vmatprep.subr.mxu0 0.0
    %1116 = vmatpush1.msra.mxu0 0.0
    %1117 = vmatprep.subr.mxu0 0.0
    %1118 = vmatpush1.msra.mxu0 0.0
    %1119 = vmatprep.subr.mxu0 0.0
    %1120 = vmatpush1.msra.mxu0 0.0
    %1121 = vmatprep.subr.mxu0 0.0
    %1122 = vmatpush1.msra.mxu0 0.0
    %1123 = vmatprep.subr.mxu0 0.0
    %1124 = vmatpush1.msra.mxu0 0.0
    %1125 = vmatprep.subr.mxu0 0.0
    %1126 = vmatpush1.msra.mxu0 0.0
    %1127 = vmatprep.subr.mxu0 0.0
    %1128 = vmatpush1.msra.mxu0 0.0
    %1129 = vmatprep.subr.mxu0 0.0
    %1130 = vmatpush1.msra.mxu0 0.0
    %1131 = vmatprep.subr.mxu0 0.0
    %1132 = vmatpush1.msra.mxu0 0.0
    %1133 = vmatprep.subr.mxu0 0.0
    %1134 = vmatpush1.msra.mxu0 0.0
    %1135 = vmatprep.subr.mxu0 0.0
    %1136 = vmatpush1.msra.mxu0 0.0
    %1137 = vmatprep.subr.mxu0 0.0
    %1138 = vmatpush1.msra.mxu0 0.0
    %1139 = vmatprep.subr.mxu0 0.0
    %1140 = vmatpush1.msra.mxu0 0.0
    %1141 = vmatprep.subr.mxu0 0.0
    %1142 = vmatpush1.msra.mxu0 0.0
    %1143 = vmatprep.mubr.f32.mxu0 0.0
    %1144 = vmatmul.mubr.f32.gmra.mrb[0].mxu0 %v1077
    %v1145 = vpop.f32.mrb[0].mxu0
    %v1146 = vadd.f32 %v1073, %v1145
    %v1147 = vpop.f32.mrb[0].mxu0
    %1148 = vdwg.mxu0
    %v1149 = vadd.f32 %v1146, %v227
    %v1150 = vtanh.pop %v1149
    %s1151 = scalar_lea.vmem %s0, 16
    %v1152 = vld [vmem:[%s1151] sm:$0xf]
    %1154 = vset.pattern.permute.xlu0 0
    %1155 = vperm.xlu0 %1154, %v1152
    %v1156 = vpop.permute.xlu0 %1155
    %v1158 = vmul.f32 %v1156, %v239
    %1159 = vmatprep.subr.mxu0 0.0
    %1160 = vmatpush1.msra.mxu0 %v201
    %1161 = vmatprep.subr.mxu0 0.0
    %1162 = vmatpush1.msra.mxu0 %v202
    %1163 = vmatprep.subr.mxu0 0.0
    %1164 = vmatpush1.msra.mxu0 %v203
    %1165 = vmatprep.subr.mxu0 0.0
    %1166 = vmatpush1.msra.mxu0 %v204
    %1167 = vmatprep.subr.mxu0 0.0
    %1168 = vmatpush1.msra.mxu0 0.0
    %1169 = vmatprep.subr.mxu0 0.0
    %1170 = vmatpush1.msra.mxu0 0.0
    %1171 = vmatprep.subr.mxu0 0.0
    %1172 = vmatpush1.msra.mxu0 0.0
    %1173 = vmatprep.subr.mxu0 0.0
    %1174 = vmatpush1.msra.mxu0 0.0
    %1175 = vmatprep.subr.mxu0 0.0
    %1176 = vmatpush1.msra.mxu0 0.0
    %1177 = vmatprep.subr.mxu0 0.0
    %1178 = vmatpush1.msra.mxu0 0.0
    %1179 = vmatprep.subr.mxu0 0.0
    %1180 = vmatpush1.msra.mxu0 0.0
    %1181 = vmatprep.subr.mxu0 0.0
    %1182 = vmatpush1.msra.mxu0 0.0
    %1183 = vmatprep.subr.mxu0 0.0
    %1184 = vmatpush1.msra.mxu0 0.0
    %1185 = vmatprep.subr.mxu0 0.0
    %1186 = vmatpush1.msra.mxu0 0.0
    %1187 = vmatprep.subr.mxu0 0.0
    %1188 = vmatpush1.msra.mxu0 0.0
    %1189 = vmatprep.subr.mxu0 0.0
    %1190 = vmatpush1.msra.mxu0 0.0
    %1191 = vmatprep.subr.mxu0 0.0
    %1192 = vmatpush1.msra.mxu0 0.0
    %1193 = vmatprep.subr.mxu0 0.0
    %1194 = vmatpush1.msra.mxu0 0.0
    %1195 = vmatprep.subr.mxu0 0.0
    %1196 = vmatpush1.msra.mxu0 0.0
    %1197 = vmatprep.subr.mxu0 0.0
    %1198 = vmatpush1.msra.mxu0 0.0
    %1199 = vmatprep.subr.mxu0 0.0
    %1200 = vmatpush1.msra.mxu0 0.0
    %1201 = vmatprep.subr.mxu0 0.0
    %1202 = vmatpush1.msra.mxu0 0.0
    %1203 = vmatprep.subr.mxu0 0.0
    %1204 = vmatpush1.msra.mxu0 0.0
    %1205 = vmatprep.subr.mxu0 0.0
    %1206 = vmatpush1.msra.mxu0 0.0
    %1207 = vmatprep.subr.mxu0 0.0
    %1208 = vmatpush1.msra.mxu0 0.0
    %1209 = vmatprep.subr.mxu0 0.0
    %1210 = vmatpush1.msra.mxu0 0.0
    %1211 = vmatprep.subr.mxu0 0.0
    %1212 = vmatpush1.msra.mxu0 0.0
    %1213 = vmatprep.subr.mxu0 0.0
    %1214 = vmatpush1.msra.mxu0 0.0
    %1215 = vmatprep.subr.mxu0 0.0
    %1216 = vmatpush1.msra.mxu0 0.0
    %1217 = vmatprep.subr.mxu0 0.0
    %1218 = vmatpush1.msra.mxu0 0.0
    %1219 = vmatprep.subr.mxu0 0.0
    %1220 = vmatpush1.msra.mxu0 0.0
    %1221 = vmatprep.subr.mxu0 0.0
    %1222 = vmatpush1.msra.mxu0 0.0
    %1223 = vmatprep.mubr.f32.mxu0 0.0
    %1224 = vmatmul.mubr.f32.gmra.mrb[0].mxu0 %v1077
    %v1225 = vpop.f32.mrb[0].mxu0
    %v1226 = vadd.f32 0.0, %v1225
    %v1227 = vpop.f32.mrb[0].mxu0
    %1228 = vdwg.mxu0
    %v1229 = vadd.f32 %v1158, %v1226
    %v1230 = vadd.f32 %v1229, %v219
    %v1231 = vtanh.pop %v1230
    %v1233 = vsel %vm242, %v1150, 0
    %1235 = vmatprep.subr.mxu0 0.0
    %1236 = vmatpush1.msra.mxu0 %v206
    %1237 = vmatprep.subr.mxu0 0.0
    %1238 = vmatpush1.msra.mxu0 %v207
    %1239 = vmatprep.subr.mxu0 0.0
    %1240 = vmatpush1.msra.mxu0 %v208
    %1241 = vmatprep.subr.mxu0 0.0
    %1242 = vmatpush1.msra.mxu0 %v209
    %1243 = vmatprep.subr.mxu0 0.0
    %1244 = vmatpush1.msra.mxu0 0.0
    %1245 = vmatprep.subr.mxu0 0.0
    %1246 = vmatpush1.msra.mxu0 0.0
    %1247 = vmatprep.subr.mxu0 0.0
    %1248 = vmatpush1.msra.mxu0 0.0
    %1249 = vmatprep.subr.mxu0 0.0
    %1250 = vmatpush1.msra.mxu0 0.0
    %1251 = vmatprep.subr.mxu0 0.0
    %1252 = vmatpush1.msra.mxu0 0.0
    %1253 = vmatprep.subr.mxu0 0.0
    %1254 = vmatpush1.msra.mxu0 0.0
    %1255 = vmatprep.subr.mxu0 0.0
    %1256 = vmatpush1.msra.mxu0 0.0
    %1257 = vmatprep.subr.mxu0 0.0
    %1258 = vmatpush1.msra.mxu0 0.0
    %1259 = vmatprep.subr.mxu0 0.0
    %1260 = vmatpush1.msra.mxu0 0.0
    %1261 = vmatprep.subr.mxu0 0.0
    %1262 = vmatpush1.msra.mxu0 0.0
    %1263 = vmatprep.subr.mxu0 0.0
    %1264 = vmatpush1.msra.mxu0 0.0
    %1265 = vmatprep.subr.mxu0 0.0
    %1266 = vmatpush1.msra.mxu0 0.0
    %1267 = vmatprep.subr.mxu0 0.0
    %1268 = vmatpush1.msra.mxu0 0.0
    %1269 = vmatprep.subr.mxu0 0.0
    %1270 = vmatpush1.msra.mxu0 0.0
    %1271 = vmatprep.subr.mxu0 0.0
    %1272 = vmatpush1.msra.mxu0 0.0
    %1273 = vmatprep.subr.mxu0 0.0
    %1274 = vmatpush1.msra.mxu0 0.0
    %1275 = vmatprep.subr.mxu0 0.0
    %1276 = vmatpush1.msra.mxu0 0.0
    %1277 = vmatprep.subr.mxu0 0.0
    %1278 = vmatpush1.msra.mxu0 0.0
    %1279 = vmatprep.subr.mxu0 0.0
    %1280 = vmatpush1.msra.mxu0 0.0
    %1281 = vmatprep.subr.mxu0 0.0
    %1282 = vmatpush1.msra.mxu0 0.0
    %1283 = vmatprep.subr.mxu0 0.0
    %1284 = vmatpush1.msra.mxu0 0.0
    %1285 = vmatprep.subr.mxu0 0.0
    %1286 = vmatpush1.msra.mxu0 0.0
    %1287 = vmatprep.subr.mxu0 0.0
    %1288 = vmatpush1.msra.mxu0 0.0
    %1289 = vmatprep.subr.mxu0 0.0
    %1290 = vmatpush1.msra.mxu0 0.0
    %1291 = vmatprep.subr.mxu0 0.0
    %1292 = vmatpush1.msra.mxu0 0.0
    %1293 = vmatprep.subr.mxu0 0.0
    %1294 = vmatpush1.msra.mxu0 0.0
    %1295 = vmatprep.subr.mxu0 0.0
    %1296 = vmatpush1.msra.mxu0 0.0
    %1297 = vmatprep.subr.mxu0 0.0
    %1298 = vmatpush1.msra.mxu0 0.0
    %1299 = vmatprep.mubr.f32.mxu0 0.0
    %1300 = vmatmul.mubr.f32.gmra.mrb[0].mxu0 %v1233
    %v1301 = vpop.f32.mrb[0].mxu0
    %v1302 = vadd.f32 0.0, %v1301
    %v1303 = vpop.f32.mrb[0].mxu0
    %1304 = vdwg.mxu0
    %v1306 = vsel %vm242, %v1231, 0
    %1308 = vmatprep.subr.mxu0 0.0
    %1309 = vmatpush1.msra.mxu0 %v210
    %1310 = vmatprep.subr.mxu0 0.0
    %1311 = vmatpush1.msra.mxu0 %v211
    %1312 = vmatprep.subr.mxu0 0.0
    %1313 = vmatpush1.msra.mxu0 %v212
    %1314 = vmatprep.subr.mxu0 0.0
    %1315 = vmatpush1.msra.mxu0 %v213
    %1316 = vmatprep.subr.mxu0 0.0
    %1317 = vmatpush1.msra.mxu0 0.0
    %1318 = vmatprep.subr.mxu0 0.0
    %1319 = vmatpush1.msra.mxu0 0.0
    %1320 = vmatprep.subr.mxu0 0.0
    %1321 = vmatpush1.msra.mxu0 0.0
    %1322 = vmatprep.subr.mxu0 0.0
    %1323 = vmatpush1.msra.mxu0 0.0
    %1324 = vmatprep.subr.mxu0 0.0
    %1325 = vmatpush1.msra.mxu0 0.0
    %1326 = vmatprep.subr.mxu0 0.0
    %1327 = vmatpush1.msra.mxu0 0.0
    %1328 = vmatprep.subr.mxu0 0.0
    %1329 = vmatpush1.msra.mxu0 0.0
    %1330 = vmatprep.subr.mxu0 0.0
    %1331 = vmatpush1.msra.mxu0 0.0
    %1332 = vmatprep.subr.mxu0 0.0
    %1333 = vmatpush1.msra.mxu0 0.0
    %1334 = vmatprep.subr.mxu0 0.0
    %1335 = vmatpush1.msra.mxu0 0.0
    %1336 = vmatprep.subr.mxu0 0.0
    %1337 = vmatpush1.msra.mxu0 0.0
    %1338 = vmatprep.subr.mxu0 0.0
    %1339 = vmatpush1.msra.mxu0 0.0
    %1340 = vmatprep.subr.mxu0 0.0
    %1341 = vmatpush1.msra.mxu0 0.0
    %1342 = vmatprep.subr.mxu0 0.0
    %1343 = vmatpush1.msra.mxu0 0.0
    %1344 = vmatprep.subr.mxu0 0.0
    %1345 = vmatpush1.msra.mxu0 0.0
    %1346 = vmatprep.subr.mxu0 0.0
    %1347 = vmatpush1.msra.mxu0 0.0
    %1348 = vmatprep.subr.mxu0 0.0
    %1349 = vmatpush1.msra.mxu0 0.0
    %1350 = vmatprep.subr.mxu0 0.0
    %1351 = vmatpush1.msra.mxu0 0.0
    %1352 = vmatprep.subr.mxu0 0.0
    %1353 = vmatpush1.msra.mxu0 0.0
    %1354 = vmatprep.subr.mxu0 0.0
    %1355 = vmatpush1.msra.mxu0 0.0
    %1356 = vmatprep.subr.mxu0 0.0
    %1357 = vmatpush1.msra.mxu0 0.0
    %1358 = vmatprep.subr.mxu0 0.0
    %1359 = vmatpush1.msra.mxu0 0.0
    %1360 = vmatprep.subr.mxu0 0.0
    %1361 = vmatpush1.msra.mxu0 0.0
    %1362 = vmatprep.subr.mxu0 0.0
    %1363 = vmatpush1.msra.mxu0 0.0
    %1364 = vmatprep.subr.mxu0 0.0
    %1365 = vmatpush1.msra.mxu0 0.0
    %1366 = vmatprep.subr.mxu0 0.0
    %1367 = vmatpush1.msra.mxu0 0.0
    %1368 = vmatprep.subr.mxu0 0.0
    %1369 = vmatpush1.msra.mxu0 0.0
    %1370 = vmatprep.subr.mxu0 0.0
    %1371 = vmatpush1.msra.mxu0 0.0
    %1372 = vmatprep.mubr.f32.mxu0 0.0
    %1373 = vmatmul.mubr.f32.gmra.mrb[0].mxu0 %v1306
    %v1374 = vpop.f32.mrb[0].mxu0
    %v1375 = vadd.f32 %v1302, %v1374
    %v1376 = vpop.f32.mrb[0].mxu0
    %1377 = vdwg.mxu0
    %v1378 = vadd.f32 %v1375, %v227
    %v1379 = vtanh.pop %v1378
    %s1380 = scalar_lea.vmem %s0, 20
    %v1381 = vld [vmem:[%s1380] sm:$0xf]
    %1383 = vset.pattern.permute.xlu0 0
    %1384 = vperm.xlu0 %1383, %v1381
    %v1385 = vpop.permute.xlu0 %1384
    %v1387 = vmul.f32 %v1385, %v239
    %1388 = vmatprep.subr.mxu0 0.0
    %1389 = vmatpush1.msra.mxu0 %v201
    %1390 = vmatprep.subr.mxu0 0.0
    %1391 = vmatpush1.msra.mxu0 %v202
    %1392 = vmatprep.subr.mxu0 0.0
    %1393 = vmatpush1.msra.mxu0 %v203
    %1394 = vmatprep.subr.mxu0 0.0
    %1395 = vmatpush1.msra.mxu0 %v204
    %1396 = vmatprep.subr.mxu0 0.0
    %1397 = vmatpush1.msra.mxu0 0.0
    %1398 = vmatprep.subr.mxu0 0.0
    %1399 = vmatpush1.msra.mxu0 0.0
    %1400 = vmatprep.subr.mxu0 0.0
    %1401 = vmatpush1.msra.mxu0 0.0
    %1402 = vmatprep.subr.mxu0 0.0
    %1403 = vmatpush1.msra.mxu0 0.0
    %1404 = vmatprep.subr.mxu0 0.0
    %1405 = vmatpush1.msra.mxu0 0.0
    %1406 = vmatprep.subr.mxu0 0.0
    %1407 = vmatpush1.msra.mxu0 0.0
    %1408 = vmatprep.subr.mxu0 0.0
    %1409 = vmatpush1.msra.mxu0 0.0
    %1410 = vmatprep.subr.mxu0 0.0
    %1411 = vmatpush1.msra.mxu0 0.0
    %1412 = vmatprep.subr.mxu0 0.0
    %1413 = vmatpush1.msra.mxu0 0.0
    %1414 = vmatprep.subr.mxu0 0.0
    %1415 = vmatpush1.msra.mxu0 0.0
    %1416 = vmatprep.subr.mxu0 0.0
    %1417 = vmatpush1.msra.mxu0 0.0
    %1418 = vmatprep.subr.mxu0 0.0
    %1419 = vmatpush1.msra.mxu0 0.0
    %1420 = vmatprep.subr.mxu0 0.0
    %1421 = vmatpush1.msra.mxu0 0.0
    %1422 = vmatprep.subr.mxu0 0.0
    %1423 = vmatpush1.msra.mxu0 0.0
    %1424 = vmatprep.subr.mxu0 0.0
    %1425 = vmatpush1.msra.mxu0 0.0
    %1426 = vmatprep.subr.mxu0 0.0
    %1427 = vmatpush1.msra.mxu0 0.0
    %1428 = vmatprep.subr.mxu0 0.0
    %1429 = vmatpush1.msra.mxu0 0.0
    %1430 = vmatprep.subr.mxu0 0.0
    %1431 = vmatpush1.msra.mxu0 0.0
    %1432 = vmatprep.subr.mxu0 0.0
    %1433 = vmatpush1.msra.mxu0 0.0
    %1434 = vmatprep.subr.mxu0 0.0
    %1435 = vmatpush1.msra.mxu0 0.0
    %1436 = vmatprep.subr.mxu0 0.0
    %1437 = vmatpush1.msra.mxu0 0.0
    %1438 = vmatprep.subr.mxu0 0.0
    %1439 = vmatpush1.msra.mxu0 0.0
    %1440 = vmatprep.subr.mxu0 0.0
    %1441 = vmatpush1.msra.mxu0 0.0
    %1442 = vmatprep.subr.mxu0 0.0
    %1443 = vmatpush1.msra.mxu0 0.0
    %1444 = vmatprep.subr.mxu0 0.0
    %1445 = vmatpush1.msra.mxu0 0.0
    %1446 = vmatprep.subr.mxu0 0.0
    %1447 = vmatpush1.msra.mxu0 0.0
    %1448 = vmatprep.subr.mxu0 0.0
    %1449 = vmatpush1.msra.mxu0 0.0
    %1450 = vmatprep.subr.mxu0 0.0
    %1451 = vmatpush1.msra.mxu0 0.0
    %1452 = vmatprep.mubr.f32.mxu0 0.0
    %1453 = vmatmul.mubr.f32.gmra.mrb[0].mxu0 %v1306
    %v1454 = vpop.f32.mrb[0].mxu0
    %v1455 = vadd.f32 0.0, %v1454
    %v1456 = vpop.f32.mrb[0].mxu0
    %1457 = vdwg.mxu0
    %v1458 = vadd.f32 %v1387, %v1455
    %v1459 = vadd.f32 %v1458, %v219
    %v1460 = vtanh.pop %v1459
    %v1462 = vsel %vm242, %v1379, 0
    %1464 = vmatprep.subr.mxu0 0.0
    %1465 = vmatpush1.msra.mxu0 %v206
    %1466 = vmatprep.subr.mxu0 0.0
    %1467 = vmatpush1.msra.mxu0 %v207
    %1468 = vmatprep.subr.mxu0 0.0
    %1469 = vmatpush1.msra.mxu0 %v208
    %1470 = vmatprep.subr.mxu0 0.0
    %1471 = vmatpush1.msra.mxu0 %v209
    %1472 = vmatprep.subr.mxu0 0.0
    %1473 = vmatpush1.msra.mxu0 0.0
    %1474 = vmatprep.subr.mxu0 0.0
    %1475 = vmatpush1.msra.mxu0 0.0
    %1476 = vmatprep.subr.mxu0 0.0
    %1477 = vmatpush1.msra.mxu0 0.0
    %1478 = vmatprep.subr.mxu0 0.0
    %1479 = vmatpush1.msra.mxu0 0.0
    %1480 = vmatprep.subr.mxu0 0.0
    %1481 = vmatpush1.msra.mxu0 0.0
    %1482 = vmatprep.subr.mxu0 0.0
    %1483 = vmatpush1.msra.mxu0 0.0
    %1484 = vmatprep.subr.mxu0 0.0
    %1485 = vmatpush1.msra.mxu0 0.0
    %1486 = vmatprep.subr.mxu0 0.0
    %1487 = vmatpush1.msra.mxu0 0.0
    %1488 = vmatprep.subr.mxu0 0.0
    %1489 = vmatpush1.msra.mxu0 0.0
    %1490 = vmatprep.subr.mxu0 0.0
    %1491 = vmatpush1.msra.mxu0 0.0
    %1492 = vmatprep.subr.mxu0 0.0
    %1493 = vmatpush1.msra.mxu0 0.0
    %1494 = vmatprep.subr.mxu0 0.0
    %1495 = vmatpush1.msra.mxu0 0.0
    %1496 = vmatprep.subr.mxu0 0.0
    %1497 = vmatpush1.msra.mxu0 0.0
    %1498 = vmatprep.subr.mxu0 0.0
    %1499 = vmatpush1.msra.mxu0 0.0
    %1500 = vmatprep.subr.mxu0 0.0
    %1501 = vmatpush1.msra.mxu0 0.0
    %1502 = vmatprep.subr.mxu0 0.0
    %1503 = vmatpush1.msra.mxu0 0.0
    %1504 = vmatprep.subr.mxu0 0.0
    %1505 = vmatpush1.msra.mxu0 0.0
    %1506 = vmatprep.subr.mxu0 0.0
    %1507 = vmatpush1.msra.mxu0 0.0
    %1508 = vmatprep.subr.mxu0 0.0
    %1509 = vmatpush1.msra.mxu0 0.0
    %1510 = vmatprep.subr.mxu0 0.0
    %1511 = vmatpush1.msra.mxu0 0.0
    %1512 = vmatprep.subr.mxu0 0.0
    %1513 = vmatpush1.msra.mxu0 0.0
    %1514 = vmatprep.subr.mxu0 0.0
    %1515 = vmatpush1.msra.mxu0 0.0
    %1516 = vmatprep.subr.mxu0 0.0
    %1517 = vmatpush1.msra.mxu0 0.0
    %1518 = vmatprep.subr.mxu0 0.0
    %1519 = vmatpush1.msra.mxu0 0.0
    %1520 = vmatprep.subr.mxu0 0.0
    %1521 = vmatpush1.msra.mxu0 0.0
    %1522 = vmatprep.subr.mxu0 0.0
    %1523 = vmatpush1.msra.mxu0 0.0
    %1524 = vmatprep.subr.mxu0 0.0
    %1525 = vmatpush1.msra.mxu0 0.0
    %1526 = vmatprep.subr.mxu0 0.0
    %1527 = vmatpush1.msra.mxu0 0.0
    %1528 = vmatprep.mubr.f32.mxu0 0.0
    %1529 = vmatmul.mubr.f32.gmra.mrb[0].mxu0 %v1462
    %v1530 = vpop.f32.mrb[0].mxu0
    %v1531 = vadd.f32 0.0, %v1530
    %v1532 = vpop.f32.mrb[0].mxu0
    %1533 = vdwg.mxu0
    %v1535 = vsel %vm242, %v1460, 0
    %1537 = vmatprep.subr.mxu0 0.0
    %1538 = vmatpush1.msra.mxu0 %v210
    %1539 = vmatprep.subr.mxu0 0.0
    %1540 = vmatpush1.msra.mxu0 %v211
    %1541 = vmatprep.subr.mxu0 0.0
    %1542 = vmatpush1.msra.mxu0 %v212
    %1543 = vmatprep.subr.mxu0 0.0
    %1544 = vmatpush1.msra.mxu0 %v213
    %1545 = vmatprep.subr.mxu0 0.0
    %1546 = vmatpush1.msra.mxu0 0.0
    %1547 = vmatprep.subr.mxu0 0.0
    %1548 = vmatpush1.msra.mxu0 0.0
    %1549 = vmatprep.subr.mxu0 0.0
    %1550 = vmatpush1.msra.mxu0 0.0
    %1551 = vmatprep.subr.mxu0 0.0
    %1552 = vmatpush1.msra.mxu0 0.0
    %1553 = vmatprep.subr.mxu0 0.0
    %1554 = vmatpush1.msra.mxu0 0.0
    %1555 = vmatprep.subr.mxu0 0.0
    %1556 = vmatpush1.msra.mxu0 0.0
    %1557 = vmatprep.subr.mxu0 0.0
    %1558 = vmatpush1.msra.mxu0 0.0
    %1559 = vmatprep.subr.mxu0 0.0
    %1560 = vmatpush1.msra.mxu0 0.0
    %1561 = vmatprep.subr.mxu0 0.0
    %1562 = vmatpush1.msra.mxu0 0.0
    %1563 = vmatprep.subr.mxu0 0.0
    %1564 = vmatpush1.msra.mxu0 0.0
    %1565 = vmatprep.subr.mxu0 0.0
    %1566 = vmatpush1.msra.mxu0 0.0
    %1567 = vmatprep.subr.mxu0 0.0
    %1568 = vmatpush1.msra.mxu0 0.0
    %1569 = vmatprep.subr.mxu0 0.0
    %1570 = vmatpush1.msra.mxu0 0.0
    %1571 = vmatprep.subr.mxu0 0.0
    %1572 = vmatpush1.msra.mxu0 0.0
    %1573 = vmatprep.subr.mxu0 0.0
    %1574 = vmatpush1.msra.mxu0 0.0
    %1575 = vmatprep.subr.mxu0 0.0
    %1576 = vmatpush1.msra.mxu0 0.0
    %1577 = vmatprep.subr.mxu0 0.0
    %1578 = vmatpush1.msra.mxu0 0.0
    %1579 = vmatprep.subr.mxu0 0.0
    %1580 = vmatpush1.msra.mxu0 0.0
    %1581 = vmatprep.subr.mxu0 0.0
    %1582 = vmatpush1.msra.mxu0 0.0
    %1583 = vmatprep.subr.mxu0 0.0
    %1584 = vmatpush1.msra.mxu0 0.0
    %1585 = vmatprep.subr.mxu0 0.0
    %1586 = vmatpush1.msra.mxu0 0.0
    %1587 = vmatprep.subr.mxu0 0.0
    %1588 = vmatpush1.msra.mxu0 0.0
    %1589 = vmatprep.subr.mxu0 0.0
    %1590 = vmatpush1.msra.mxu0 0.0
    %1591 = vmatprep.subr.mxu0 0.0
    %1592 = vmatpush1.msra.mxu0 0.0
    %1593 = vmatprep.subr.mxu0 0.0
    %1594 = vmatpush1.msra.mxu0 0.0
    %1595 = vmatprep.subr.mxu0 0.0
    %1596 = vmatpush1.msra.mxu0 0.0
    %1597 = vmatprep.subr.mxu0 0.0
    %1598 = vmatpush1.msra.mxu0 0.0
    %1599 = vmatprep.subr.mxu0 0.0
    %1600 = vmatpush1.msra.mxu0 0.0
    %1601 = vmatprep.mubr.f32.mxu0 0.0
    %1602 = vmatmul.mubr.f32.gmra.mrb[0].mxu0 %v1535
    %v1603 = vpop.f32.mrb[0].mxu0
    %v1604 = vadd.f32 %v1531, %v1603
    %v1605 = vpop.f32.mrb[0].mxu0
    %1606 = vdwg.mxu0
    %v1607 = vadd.f32 %v1604, %v227
    %v1608 = vtanh.pop %v1607
    %s1609 = scalar_lea.vmem %s0, 24
    %v1610 = vld [vmem:[%s1609] sm:$0xf]
    %1612 = vset.pattern.permute.xlu0 0
    %1613 = vperm.xlu0 %1612, %v1610
    %v1614 = vpop.permute.xlu0 %1613
    %v1616 = vmul.f32 %v1614, %v239
    %1617 = vmatprep.subr.mxu0 0.0
    %1618 = vmatpush1.msra.mxu0 %v201
    %1619 = vmatprep.subr.mxu0 0.0
    %1620 = vmatpush1.msra.mxu0 %v202
    %1621 = vmatprep.subr.mxu0 0.0
    %1622 = vmatpush1.msra.mxu0 %v203
    %1623 = vmatprep.subr.mxu0 0.0
    %1624 = vmatpush1.msra.mxu0 %v204
    %1625 = vmatprep.subr.mxu0 0.0
    %1626 = vmatpush1.msra.mxu0 0.0
    %1627 = vmatprep.subr.mxu0 0.0
    %1628 = vmatpush1.msra.mxu0 0.0
    %1629 = vmatprep.subr.mxu0 0.0
    %1630 = vmatpush1.msra.mxu0 0.0
    %1631 = vmatprep.subr.mxu0 0.0
    %1632 = vmatpush1.msra.mxu0 0.0
    %1633 = vmatprep.subr.mxu0 0.0
    %1634 = vmatpush1.msra.mxu0 0.0
    %1635 = vmatprep.subr.mxu0 0.0
    %1636 = vmatpush1.msra.mxu0 0.0
    %1637 = vmatprep.subr.mxu0 0.0
    %1638 = vmatpush1.msra.mxu0 0.0
    %1639 = vmatprep.subr.mxu0 0.0
    %1640 = vmatpush1.msra.mxu0 0.0
    %1641 = vmatprep.subr.mxu0 0.0
    %1642 = vmatpush1.msra.mxu0 0.0
    %1643 = vmatprep.subr.mxu0 0.0
    %1644 = vmatpush1.msra.mxu0 0.0
    %1645 = vmatprep.subr.mxu0 0.0
    %1646 = vmatpush1.msra.mxu0 0.0
    %1647 = vmatprep.subr.mxu0 0.0
    %1648 = vmatpush1.msra.mxu0 0.0
    %1649 = vmatprep.subr.mxu0 0.0
    %1650 = vmatpush1.msra.mxu0 0.0
    %1651 = vmatprep.subr.mxu0 0.0
    %1652 = vmatpush1.msra.mxu0 0.0
    %1653 = vmatprep.subr.mxu0 0.0
    %1654 = vmatpush1.msra.mxu0 0.0
    %1655 = vmatprep.subr.mxu0 0.0
    %1656 = vmatpush1.msra.mxu0 0.0
    %1657 = vmatprep.subr.mxu0 0.0
    %1658 = vmatpush1.msra.mxu0 0.0
    %1659 = vmatprep.subr.mxu0 0.0
    %1660 = vmatpush1.msra.mxu0 0.0
    %1661 = vmatprep.subr.mxu0 0.0
    %1662 = vmatpush1.msra.mxu0 0.0
    %1663 = vmatprep.subr.mxu0 0.0
    %1664 = vmatpush1.msra.mxu0 0.0
    %1665 = vmatprep.subr.mxu0 0.0
    %1666 = vmatpush1.msra.mxu0 0.0
    %1667 = vmatprep.subr.mxu0 0.0
    %1668 = vmatpush1.msra.mxu0 0.0
    %1669 = vmatprep.subr.mxu0 0.0
    %1670 = vmatpush1.msra.mxu0 0.0
    %1671 = vmatprep.subr.mxu0 0.0
    %1672 = vmatpush1.msra.mxu0 0.0
    %1673 = vmatprep.subr.mxu0 0.0
    %1674 = vmatpush1.msra.mxu0 0.0
    %1675 = vmatprep.subr.mxu0 0.0
    %1676 = vmatpush1.msra.mxu0 0.0
    %1677 = vmatprep.subr.mxu0 0.0
    %1678 = vmatpush1.msra.mxu0 0.0
    %1679 = vmatprep.subr.mxu0 0.0
    %1680 = vmatpush1.msra.mxu0 0.0
    %1681 = vmatprep.mubr.f32.mxu0 0.0
    %1682 = vmatmul.mubr.f32.gmra.mrb[0].mxu0 %v1535
    %v1683 = vpop.f32.mrb[0].mxu0
    %v1684 = vadd.f32 0.0, %v1683
    %v1685 = vpop.f32.mrb[0].mxu0
    %1686 = vdwg.mxu0
    %v1687 = vadd.f32 %v1616, %v1684
    %v1688 = vadd.f32 %v1687, %v219
    %v1689 = vtanh.pop %v1688
    %v1691 = vsel %vm242, %v1608, 0
    %1693 = vmatprep.subr.mxu0 0.0
    %1694 = vmatpush1.msra.mxu0 %v206
    %1695 = vmatprep.subr.mxu0 0.0
    %1696 = vmatpush1.msra.mxu0 %v207
    %1697 = vmatprep.subr.mxu0 0.0
    %1698 = vmatpush1.msra.mxu0 %v208
    %1699 = vmatprep.subr.mxu0 0.0
    %1700 = vmatpush1.msra.mxu0 %v209
    %1701 = vmatprep.subr.mxu0 0.0
    %1702 = vmatpush1.msra.mxu0 0.0
    %1703 = vmatprep.subr.mxu0 0.0
    %1704 = vmatpush1.msra.mxu0 0.0
    %1705 = vmatprep.subr.mxu0 0.0
    %1706 = vmatpush1.msra.mxu0 0.0
    %1707 = vmatprep.subr.mxu0 0.0
    %1708 = vmatpush1.msra.mxu0 0.0
    %1709 = vmatprep.subr.mxu0 0.0
    %1710 = vmatpush1.msra.mxu0 0.0
    %1711 = vmatprep.subr.mxu0 0.0
    %1712 = vmatpush1.msra.mxu0 0.0
    %1713 = vmatprep.subr.mxu0 0.0
    %1714 = vmatpush1.msra.mxu0 0.0
    %1715 = vmatprep.subr.mxu0 0.0
    %1716 = vmatpush1.msra.mxu0 0.0
    %1717 = vmatprep.subr.mxu0 0.0
    %1718 = vmatpush1.msra.mxu0 0.0
    %1719 = vmatprep.subr.mxu0 0.0
    %1720 = vmatpush1.msra.mxu0 0.0
    %1721 = vmatprep.subr.mxu0 0.0
    %1722 = vmatpush1.msra.mxu0 0.0
    %1723 = vmatprep.subr.mxu0 0.0
    %1724 = vmatpush1.msra.mxu0 0.0
    %1725 = vmatprep.subr.mxu0 0.0
    %1726 = vmatpush1.msra.mxu0 0.0
    %1727 = vmatprep.subr.mxu0 0.0
    %1728 = vmatpush1.msra.mxu0 0.0
    %1729 = vmatprep.subr.mxu0 0.0
    %1730 = vmatpush1.msra.mxu0 0.0
    %1731 = vmatprep.subr.mxu0 0.0
    %1732 = vmatpush1.msra.mxu0 0.0
    %1733 = vmatprep.subr.mxu0 0.0
    %1734 = vmatpush1.msra.mxu0 0.0
    %1735 = vmatprep.subr.mxu0 0.0
    %1736 = vmatpush1.msra.mxu0 0.0
    %1737 = vmatprep.subr.mxu0 0.0
    %1738 = vmatpush1.msra.mxu0 0.0
    %1739 = vmatprep.subr.mxu0 0.0
    %1740 = vmatpush1.msra.mxu0 0.0
    %1741 = vmatprep.subr.mxu0 0.0
    %1742 = vmatpush1.msra.mxu0 0.0
    %1743 = vmatprep.subr.mxu0 0.0
    %1744 = vmatpush1.msra.mxu0 0.0
    %1745 = vmatprep.subr.mxu0 0.0
    %1746 = vmatpush1.msra.mxu0 0.0
    %1747 = vmatprep.subr.mxu0 0.0
    %1748 = vmatpush1.msra.mxu0 0.0
    %1749 = vmatprep.subr.mxu0 0.0
    %1750 = vmatpush1.msra.mxu0 0.0
    %1751 = vmatprep.subr.mxu0 0.0
    %1752 = vmatpush1.msra.mxu0 0.0
    %1753 = vmatprep.subr.mxu0 0.0
    %1754 = vmatpush1.msra.mxu0 0.0
    %1755 = vmatprep.subr.mxu0 0.0
    %1756 = vmatpush1.msra.mxu0 0.0
    %1757 = vmatprep.mubr.f32.mxu0 0.0
    %1758 = vmatmul.mubr.f32.gmra.mrb[0].mxu0 %v1691
    %v1759 = vpop.f32.mrb[0].mxu0
    %v1760 = vadd.f32 0.0, %v1759
    %v1761 = vpop.f32.mrb[0].mxu0
    %1762 = vdwg.mxu0
    %v1764 = vsel %vm242, %v1689, 0
    %1766 = vmatprep.subr.mxu0 0.0
    %1767 = vmatpush1.msra.mxu0 %v210
    %1768 = vmatprep.subr.mxu0 0.0
    %1769 = vmatpush1.msra.mxu0 %v211
    %1770 = vmatprep.subr.mxu0 0.0
    %1771 = vmatpush1.msra.mxu0 %v212
    %1772 = vmatprep.subr.mxu0 0.0
    %1773 = vmatpush1.msra.mxu0 %v213
    %1774 = vmatprep.subr.mxu0 0.0
    %1775 = vmatpush1.msra.mxu0 0.0
    %1776 = vmatprep.subr.mxu0 0.0
    %1777 = vmatpush1.msra.mxu0 0.0
    %1778 = vmatprep.subr.mxu0 0.0
    %1779 = vmatpush1.msra.mxu0 0.0
    %1780 = vmatprep.subr.mxu0 0.0
    %1781 = vmatpush1.msra.mxu0 0.0
    %1782 = vmatprep.subr.mxu0 0.0
    %1783 = vmatpush1.msra.mxu0 0.0
    %1784 = vmatprep.subr.mxu0 0.0
    %1785 = vmatpush1.msra.mxu0 0.0
    %1786 = vmatprep.subr.mxu0 0.0
    %1787 = vmatpush1.msra.mxu0 0.0
    %1788 = vmatprep.subr.mxu0 0.0
    %1789 = vmatpush1.msra.mxu0 0.0
    %1790 = vmatprep.subr.mxu0 0.0
    %1791 = vmatpush1.msra.mxu0 0.0
    %1792 = vmatprep.subr.mxu0 0.0
    %1793 = vmatpush1.msra.mxu0 0.0
    %1794 = vmatprep.subr.mxu0 0.0
    %1795 = vmatpush1.msra.mxu0 0.0
    %1796 = vmatprep.subr.mxu0 0.0
    %1797 = vmatpush1.msra.mxu0 0.0
    %1798 = vmatprep.subr.mxu0 0.0
    %1799 = vmatpush1.msra.mxu0 0.0
    %1800 = vmatprep.subr.mxu0 0.0
    %1801 = vmatpush1.msra.mxu0 0.0
    %1802 = vmatprep.subr.mxu0 0.0
    %1803 = vmatpush1.msra.mxu0 0.0
    %1804 = vmatprep.subr.mxu0 0.0
    %1805 = vmatpush1.msra.mxu0 0.0
    %1806 = vmatprep.subr.mxu0 0.0
    %1807 = vmatpush1.msra.mxu0 0.0
    %1808 = vmatprep.subr.mxu0 0.0
    %1809 = vmatpush1.msra.mxu0 0.0
    %1810 = vmatprep.subr.mxu0 0.0
    %1811 = vmatpush1.msra.mxu0 0.0
    %1812 = vmatprep.subr.mxu0 0.0
    %1813 = vmatpush1.msra.mxu0 0.0
    %1814 = vmatprep.subr.mxu0 0.0
    %1815 = vmatpush1.msra.mxu0 0.0
    %1816 = vmatprep.subr.mxu0 0.0
    %1817 = vmatpush1.msra.mxu0 0.0
    %1818 = vmatprep.subr.mxu0 0.0
    %1819 = vmatpush1.msra.mxu0 0.0
    %1820 = vmatprep.subr.mxu0 0.0
    %1821 = vmatpush1.msra.mxu0 0.0
    %1822 = vmatprep.subr.mxu0 0.0
    %1823 = vmatpush1.msra.mxu0 0.0
    %1824 = vmatprep.subr.mxu0 0.0
    %1825 = vmatpush1.msra.mxu0 0.0
    %1826 = vmatprep.subr.mxu0 0.0
    %1827 = vmatpush1.msra.mxu0 0.0
    %1828 = vmatprep.subr.mxu0 0.0
    %1829 = vmatpush1.msra.mxu0 0.0
    %1830 = vmatprep.mubr.f32.mxu0 0.0
    %1831 = vmatmul.mubr.f32.gmra.mrb[0].mxu0 %v1764
    %v1832 = vpop.f32.mrb[0].mxu0
    %v1833 = vadd.f32 %v1760, %v1832
    %v1834 = vpop.f32.mrb[0].mxu0
    %1835 = vdwg.mxu0
    %v1836 = vadd.f32 %v1833, %v227
    %v1837 = vtanh.pop %v1836
    %s1838 = scalar_lea.vmem %s0, 28
    %v1839 = vld [vmem:[%s1838] sm:$0xf]
    %1841 = vset.pattern.permute.xlu0 0
    %1842 = vperm.xlu0 %1841, %v1839
    %v1843 = vpop.permute.xlu0 %1842
    %v1845 = vmul.f32 %v1843, %v239
    %1846 = vmatprep.subr.mxu0 0.0
    %1847 = vmatpush1.msra.mxu0 %v201
    %1848 = vmatprep.subr.mxu0 0.0
    %1849 = vmatpush1.msra.mxu0 %v202
    %1850 = vmatprep.subr.mxu0 0.0
    %1851 = vmatpush1.msra.mxu0 %v203
    %1852 = vmatprep.subr.mxu0 0.0
    %1853 = vmatpush1.msra.mxu0 %v204
    %1854 = vmatprep.subr.mxu0 0.0
    %1855 = vmatpush1.msra.mxu0 0.0
    %1856 = vmatprep.subr.mxu0 0.0
    %1857 = vmatpush1.msra.mxu0 0.0
    %1858 = vmatprep.subr.mxu0 0.0
    %1859 = vmatpush1.msra.mxu0 0.0
    %1860 = vmatprep.subr.mxu0 0.0
    %1861 = vmatpush1.msra.mxu0 0.0
    %1862 = vmatprep.subr.mxu0 0.0
    %1863 = vmatpush1.msra.mxu0 0.0
    %1864 = vmatprep.subr.mxu0 0.0
    %1865 = vmatpush1.msra.mxu0 0.0
    %1866 = vmatprep.subr.mxu0 0.0
    %1867 = vmatpush1.msra.mxu0 0.0
    %1868 = vmatprep.subr.mxu0 0.0
    %1869 = vmatpush1.msra.mxu0 0.0
    %1870 = vmatprep.subr.mxu0 0.0
    %1871 = vmatpush1.msra.mxu0 0.0
    %1872 = vmatprep.subr.mxu0 0.0
    %1873 = vmatpush1.msra.mxu0 0.0
    %1874 = vmatprep.subr.mxu0 0.0
    %1875 = vmatpush1.msra.mxu0 0.0
    %1876 = vmatprep.subr.mxu0 0.0
    %1877 = vmatpush1.msra.mxu0 0.0
    %1878 = vmatprep.subr.mxu0 0.0
    %1879 = vmatpush1.msra.mxu0 0.0
    %1880 = vmatprep.subr.mxu0 0.0
    %1881 = vmatpush1.msra.mxu0 0.0
    %1882 = vmatprep.subr.mxu0 0.0
    %1883 = vmatpush1.msra.mxu0 0.0
    %1884 = vmatprep.subr.mxu0 0.0
    %1885 = vmatpush1.msra.mxu0 0.0
    %1886 = vmatprep.subr.mxu0 0.0
    %1887 = vmatpush1.msra.mxu0 0.0
    %1888 = vmatprep.subr.mxu0 0.0
    %1889 = vmatpush1.msra.mxu0 0.0
    %1890 = vmatprep.subr.mxu0 0.0
    %1891 = vmatpush1.msra.mxu0 0.0
    %1892 = vmatprep.subr.mxu0 0.0
    %1893 = vmatpush1.msra.mxu0 0.0
    %1894 = vmatprep.subr.mxu0 0.0
    %1895 = vmatpush1.msra.mxu0 0.0
    %1896 = vmatprep.subr.mxu0 0.0
    %1897 = vmatpush1.msra.mxu0 0.0
    %1898 = vmatprep.subr.mxu0 0.0
    %1899 = vmatpush1.msra.mxu0 0.0
    %1900 = vmatprep.subr.mxu0 0.0
    %1901 = vmatpush1.msra.mxu0 0.0
    %1902 = vmatprep.subr.mxu0 0.0
    %1903 = vmatpush1.msra.mxu0 0.0
    %1904 = vmatprep.subr.mxu0 0.0
    %1905 = vmatpush1.msra.mxu0 0.0
    %1906 = vmatprep.subr.mxu0 0.0
    %1907 = vmatpush1.msra.mxu0 0.0
    %1908 = vmatprep.subr.mxu0 0.0
    %1909 = vmatpush1.msra.mxu0 0.0
    %1910 = vmatprep.mubr.f32.mxu0 0.0
    %1911 = vmatmul.mubr.f32.gmra.mrb[0].mxu0 %v1764
    %v1912 = vpop.f32.mrb[0].mxu0
    %v1913 = vadd.f32 0.0, %v1912
    %v1914 = vpop.f32.mrb[0].mxu0
    %1915 = vdwg.mxu0
    %v1916 = vadd.f32 %v1845, %v1913
    %v1917 = vadd.f32 %v1916, %v219
    %v1918 = vtanh.pop %v1917
    %v1920 = vsel %vm242, %v1837, 0
    %1922 = vmatprep.subr.mxu0 0.0
    %1923 = vmatpush1.msra.mxu0 %v206
    %1924 = vmatprep.subr.mxu0 0.0
    %1925 = vmatpush1.msra.mxu0 %v207
    %1926 = vmatprep.subr.mxu0 0.0
    %1927 = vmatpush1.msra.mxu0 %v208
    %1928 = vmatprep.subr.mxu0 0.0
    %1929 = vmatpush1.msra.mxu0 %v209
    %1930 = vmatprep.subr.mxu0 0.0
    %1931 = vmatpush1.msra.mxu0 0.0
    %1932 = vmatprep.subr.mxu0 0.0
    %1933 = vmatpush1.msra.mxu0 0.0
    %1934 = vmatprep.subr.mxu0 0.0
    %1935 = vmatpush1.msra.mxu0 0.0
    %1936 = vmatprep.subr.mxu0 0.0
    %1937 = vmatpush1.msra.mxu0 0.0
    %1938 = vmatprep.subr.mxu0 0.0
    %1939 = vmatpush1.msra.mxu0 0.0
    %1940 = vmatprep.subr.mxu0 0.0
    %1941 = vmatpush1.msra.mxu0 0.0
    %1942 = vmatprep.subr.mxu0 0.0
    %1943 = vmatpush1.msra.mxu0 0.0
    %1944 = vmatprep.subr.mxu0 0.0
    %1945 = vmatpush1.msra.mxu0 0.0
    %1946 = vmatprep.subr.mxu0 0.0
    %1947 = vmatpush1.msra.mxu0 0.0
    %1948 = vmatprep.subr.mxu0 0.0
    %1949 = vmatpush1.msra.mxu0 0.0
    %1950 = vmatprep.subr.mxu0 0.0
    %1951 = vmatpush1.msra.mxu0 0.0
    %1952 = vmatprep.subr.mxu0 0.0
    %1953 = vmatpush1.msra.mxu0 0.0
    %1954 = vmatprep.subr.mxu0 0.0
    %1955 = vmatpush1.msra.mxu0 0.0
    %1956 = vmatprep.subr.mxu0 0.0
    %1957 = vmatpush1.msra.mxu0 0.0
    %1958 = vmatprep.subr.mxu0 0.0
    %1959 = vmatpush1.msra.mxu0 0.0
    %1960 = vmatprep.subr.mxu0 0.0
    %1961 = vmatpush1.msra.mxu0 0.0
    %1962 = vmatprep.subr.mxu0 0.0
    %1963 = vmatpush1.msra.mxu0 0.0
    %1964 = vmatprep.subr.mxu0 0.0
    %1965 = vmatpush1.msra.mxu0 0.0
    %1966 = vmatprep.subr.mxu0 0.0
    %1967 = vmatpush1.msra.mxu0 0.0
    %1968 = vmatprep.subr.mxu0 0.0
    %1969 = vmatpush1.msra.mxu0 0.0
    %1970 = vmatprep.subr.mxu0 0.0
    %1971 = vmatpush1.msra.mxu0 0.0
    %1972 = vmatprep.subr.mxu0 0.0
    %1973 = vmatpush1.msra.mxu0 0.0
    %1974 = vmatprep.subr.mxu0 0.0
    %1975 = vmatpush1.msra.mxu0 0.0
    %1976 = vmatprep.subr.mxu0 0.0
    %1977 = vmatpush1.msra.mxu0 0.0
    %1978 = vmatprep.subr.mxu0 0.0
    %1979 = vmatpush1.msra.mxu0 0.0
    %1980 = vmatprep.subr.mxu0 0.0
    %1981 = vmatpush1.msra.mxu0 0.0
    %1982 = vmatprep.subr.mxu0 0.0
    %1983 = vmatpush1.msra.mxu0 0.0
    %1984 = vmatprep.subr.mxu0 0.0
    %1985 = vmatpush1.msra.mxu0 0.0
    %1986 = vmatprep.mubr.f32.mxu0 0.0
    %1987 = vmatmul.mubr.f32.gmra.mrb[0].mxu0 %v1920
    %v1988 = vpop.f32.mrb[0].mxu0
    %v1989 = vadd.f32 0.0, %v1988
    %v1990 = vpop.f32.mrb[0].mxu0
    %1991 = vdwg.mxu0
    %v1993 = vsel %vm242, %v1918, 0
    %1995 = vmatprep.subr.mxu0 0.0
    %1996 = vmatpush1.msra.mxu0 %v210
    %1997 = vmatprep.subr.mxu0 0.0
    %1998 = vmatpush1.msra.mxu0 %v211
    %1999 = vmatprep.subr.mxu0 0.0
    %2000 = vmatpush1.msra.mxu0 %v212
    %2001 = vmatprep.subr.mxu0 0.0
    %2002 = vmatpush1.msra.mxu0 %v213
    %2003 = vmatprep.subr.mxu0 0.0
    %2004 = vmatpush1.msra.mxu0 0.0
    %2005 = vmatprep.subr.mxu0 0.0
    %2006 = vmatpush1.msra.mxu0 0.0
    %2007 = vmatprep.subr.mxu0 0.0
    %2008 = vmatpush1.msra.mxu0 0.0
    %2009 = vmatprep.subr.mxu0 0.0
    %2010 = vmatpush1.msra.mxu0 0.0
    %2011 = vmatprep.subr.mxu0 0.0
    %2012 = vmatpush1.msra.mxu0 0.0
    %2013 = vmatprep.subr.mxu0 0.0
    %2014 = vmatpush1.msra.mxu0 0.0
    %2015 = vmatprep.subr.mxu0 0.0
    %2016 = vmatpush1.msra.mxu0 0.0
    %2017 = vmatprep.subr.mxu0 0.0
    %2018 = vmatpush1.msra.mxu0 0.0
    %2019 = vmatprep.subr.mxu0 0.0
    %2020 = vmatpush1.msra.mxu0 0.0
    %2021 = vmatprep.subr.mxu0 0.0
    %2022 = vmatpush1.msra.mxu0 0.0
    %2023 = vmatprep.subr.mxu0 0.0
    %2024 = vmatpush1.msra.mxu0 0.0
    %2025 = vmatprep.subr.mxu0 0.0
    %2026 = vmatpush1.msra.mxu0 0.0
    %2027 = vmatprep.subr.mxu0 0.0
    %2028 = vmatpush1.msra.mxu0 0.0
    %2029 = vmatprep.subr.mxu0 0.0
    %2030 = vmatpush1.msra.mxu0 0.0
    %2031 = vmatprep.subr.mxu0 0.0
    %2032 = vmatpush1.msra.mxu0 0.0
    %2033 = vmatprep.subr.mxu0 0.0
    %2034 = vmatpush1.msra.mxu0 0.0
    %2035 = vmatprep.subr.mxu0 0.0
    %2036 = vmatpush1.msra.mxu0 0.0
    %2037 = vmatprep.subr.mxu0 0.0
    %2038 = vmatpush1.msra.mxu0 0.0
    %2039 = vmatprep.subr.mxu0 0.0
    %2040 = vmatpush1.msra.mxu0 0.0
    %2041 = vmatprep.subr.mxu0 0.0
    %2042 = vmatpush1.msra.mxu0 0.0
    %2043 = vmatprep.subr.mxu0 0.0
    %2044 = vmatpush1.msra.mxu0 0.0
    %2045 = vmatprep.subr.mxu0 0.0
    %2046 = vmatpush1.msra.mxu0 0.0
    %2047 = vmatprep.subr.mxu0 0.0
    %2048 = vmatpush1.msra.mxu0 0.0
    %2049 = vmatprep.subr.mxu0 0.0
    %2050 = vmatpush1.msra.mxu0 0.0
    %2051 = vmatprep.subr.mxu0 0.0
    %2052 = vmatpush1.msra.mxu0 0.0
    %2053 = vmatprep.subr.mxu0 0.0
    %2054 = vmatpush1.msra.mxu0 0.0
    %2055 = vmatprep.subr.mxu0 0.0
    %2056 = vmatpush1.msra.mxu0 0.0
    %2057 = vmatprep.subr.mxu0 0.0
    %2058 = vmatpush1.msra.mxu0 0.0
    %2059 = vmatprep.mubr.f32.mxu0 0.0
    %2060 = vmatmul.mubr.f32.gmra.mrb[0].mxu0 %v1993
    %v2061 = vpop.f32.mrb[0].mxu0
    %v2062 = vadd.f32 %v1989, %v2061
    %v2063 = vpop.f32.mrb[0].mxu0
    %2064 = vdwg.mxu0
    %v2065 = vadd.f32 %v2062, %v227
    %v2066 = vtanh.pop %v2065
    %v2067 = vld [vmem:[#allocation5] sm:$0xff]
    %v2068 = vld [vmem:[#allocation5 + $0x8] sm:$0xff]
    %v2069 = vld [vmem:[#allocation5 + $0x10] sm:$0xff]
    %v2070 = vld [vmem:[#allocation5 + $0x18] sm:$0xff]
    %v2071 = vld [vmem:[#allocation7] sm:$0x1]
    %v2073 = vlaneseq
    %v2074 = vshrl.u32 %v2073, 7
    %v2075 = vsub.s32 0, %v2074
    %v2076 = vrot.slane %v2071, %v2075
    %v2079 = vsel %vm242, %v2066, 0
    %2081 = vmatprep.subr.mxu0 0.0
    %2082 = vmatpush1.msra.mxu0 %v2067
    %2083 = vmatprep.subr.mxu0 0.0
    %2084 = vmatpush1.msra.mxu0 %v2068
    %2085 = vmatprep.subr.mxu0 0.0
    %2086 = vmatpush1.msra.mxu0 %v2069
    %2087 = vmatprep.subr.mxu0 0.0
    %2088 = vmatpush1.msra.mxu0 %v2070
    %2089 = vmatprep.subr.mxu0 0.0
    %2090 = vmatpush1.msra.mxu0 0.0
    %2091 = vmatprep.subr.mxu0 0.0
    %2092 = vmatpush1.msra.mxu0 0.0
    %2093 = vmatprep.subr.mxu0 0.0
    %2094 = vmatpush1.msra.mxu0 0.0
    %2095 = vmatprep.subr.mxu0 0.0
    %2096 = vmatpush1.msra.mxu0 0.0
    %2097 = vmatprep.subr.mxu0 0.0
    %2098 = vmatpush1.msra.mxu0 0.0
    %2099 = vmatprep.subr.mxu0 0.0
    %2100 = vmatpush1.msra.mxu0 0.0
    %2101 = vmatprep.subr.mxu0 0.0
    %2102 = vmatpush1.msra.mxu0 0.0
    %2103 = vmatprep.subr.mxu0 0.0
    %2104 = vmatpush1.msra.mxu0 0.0
    %2105 = vmatprep.subr.mxu0 0.0
    %2106 = vmatpush1.msra.mxu0 0.0
    %2107 = vmatprep.subr.mxu0 0.0
    %2108 = vmatpush1.msra.mxu0 0.0
    %2109 = vmatprep.subr.mxu0 0.0
    %2110 = vmatpush1.msra.mxu0 0.0
    %2111 = vmatprep.subr.mxu0 0.0
    %2112 = vmatpush1.msra.mxu0 0.0
    %2113 = vmatprep.subr.mxu0 0.0
    %2114 = vmatpush1.msra.mxu0 0.0
    %2115 = vmatprep.subr.mxu0 0.0
    %2116 = vmatpush1.msra.mxu0 0.0
    %2117 = vmatprep.subr.mxu0 0.0
    %2118 = vmatpush1.msra.mxu0 0.0
    %2119 = vmatprep.subr.mxu0 0.0
    %2120 = vmatpush1.msra.mxu0 0.0
    %2121 = vmatprep.subr.mxu0 0.0
    %2122 = vmatpush1.msra.mxu0 0.0
    %2123 = vmatprep.subr.mxu0 0.0
    %2124 = vmatpush1.msra.mxu0 0.0
    %2125 = vmatprep.subr.mxu0 0.0
    %2126 = vmatpush1.msra.mxu0 0.0
    %2127 = vmatprep.subr.mxu0 0.0
    %2128 = vmatpush1.msra.mxu0 0.0
    %2129 = vmatprep.subr.mxu0 0.0
    %2130 = vmatpush1.msra.mxu0 0.0
    %2131 = vmatprep.subr.mxu0 0.0
    %2132 = vmatpush1.msra.mxu0 0.0
    %2133 = vmatprep.subr.mxu0 0.0
    %2134 = vmatpush1.msra.mxu0 0.0
    %2135 = vmatprep.subr.mxu0 0.0
    %2136 = vmatpush1.msra.mxu0 0.0
    %2137 = vmatprep.subr.mxu0 0.0
    %2138 = vmatpush1.msra.mxu0 0.0
    %2139 = vmatprep.subr.mxu0 0.0
    %2140 = vmatpush1.msra.mxu0 0.0
    %2141 = vmatprep.subr.mxu0 0.0
    %2142 = vmatpush1.msra.mxu0 0.0
    %2143 = vmatprep.subr.mxu0 0.0
    %2144 = vmatpush1.msra.mxu0 0.0
    %2145 = vmatprep.mubr.f32.mxu0 0.0
    %2146 = vmatmul.mubr.f32.gmra.mrb[0].mxu0 %v2079
    %v2147 = vpop.f32.mrb[0].mxu0
    %v2148 = vadd.f32 %v2076, %v2147
    %v2149 = vpop.f32.mrb[0].mxu0
    %2150 = vdwg.mxu0
    %v2151 = vmax.f32 %v2148, 0.0
    %v2152 = vld [vmem:[%s7] sm:$0xff]
    %v2153 = vld [vmem:[%s7 + $0x8] sm:$0xff]
    %v2154 = vld [vmem:[%s7 + $0x10] sm:$0xff]
    %v2155 = vld [vmem:[%s7 + $0x18] sm:$0xff]
    %v2156 = vld [vmem:[#allocation8] sm:$0x1]
    %v2158 = vlaneseq
    %v2159 = vshrl.u32 %v2158, 7
    %v2160 = vsub.s32 0, %v2159
    %v2161 = vrot.slane %v2156, %v2160
    %v2164 = vsel %vm242, %v2151, 0
    %2166 = vmatprep.subr.mxu0 0.0
    %2167 = vmatpush1.msra.mxu0 %v2152
    %2168 = vmatprep.subr.mxu0 0.0
    %2169 = vmatpush1.msra.mxu0 %v2153
    %2170 = vmatprep.subr.mxu0 0.0
    %2171 = vmatpush1.msra.mxu0 %v2154
    %2172 = vmatprep.subr.mxu0 0.0
    %2173 = vmatpush1.msra.mxu0 %v2155
    %2174 = vmatprep.subr.mxu0 0.0
    %2175 = vmatpush1.msra.mxu0 0.0
    %2176 = vmatprep.subr.mxu0 0.0
    %2177 = vmatpush1.msra.mxu0 0.0
    %2178 = vmatprep.subr.mxu0 0.0
    %2179 = vmatpush1.msra.mxu0 0.0
    %2180 = vmatprep.subr.mxu0 0.0
    %2181 = vmatpush1.msra.mxu0 0.0
    %2182 = vmatprep.subr.mxu0 0.0
    %2183 = vmatpush1.msra.mxu0 0.0
    %2184 = vmatprep.subr.mxu0 0.0
    %2185 = vmatpush1.msra.mxu0 0.0
    %2186 = vmatprep.subr.mxu0 0.0
    %2187 = vmatpush1.msra.mxu0 0.0
    %2188 = vmatprep.subr.mxu0 0.0
    %2189 = vmatpush1.msra.mxu0 0.0
    %2190 = vmatprep.subr.mxu0 0.0
    %2191 = vmatpush1.msra.mxu0 0.0
    %2192 = vmatprep.subr.mxu0 0.0
    %2193 = vmatpush1.msra.mxu0 0.0
    %2194 = vmatprep.subr.mxu0 0.0
    %2195 = vmatpush1.msra.mxu0 0.0
    %2196 = vmatprep.subr.mxu0 0.0
    %2197 = vmatpush1.msra.mxu0 0.0
    %2198 = vmatprep.subr.mxu0 0.0
    %2199 = vmatpush1.msra.mxu0 0.0
    %2200 = vmatprep.subr.mxu0 0.0
    %2201 = vmatpush1.msra.mxu0 0.0
    %2202 = vmatprep.subr.mxu0 0.0
    %2203 = vmatpush1.msra.mxu0 0.0
    %2204 = vmatprep.subr.mxu0 0.0
    %2205 = vmatpush1.msra.mxu0 0.0
    %2206 = vmatprep.subr.mxu0 0.0
    %2207 = vmatpush1.msra.mxu0 0.0
    %2208 = vmatprep.subr.mxu0 0.0
    %2209 = vmatpush1.msra.mxu0 0.0
    %2210 = vmatprep.subr.mxu0 0.0
    %2211 = vmatpush1.msra.mxu0 0.0
    %2212 = vmatprep.subr.mxu0 0.0
    %2213 = vmatpush1.msra.mxu0 0.0
    %2214 = vmatprep.subr.mxu0 0.0
    %2215 = vmatpush1.msra.mxu0 0.0
    %2216 = vmatprep.subr.mxu0 0.0
    %2217 = vmatpush1.msra.mxu0 0.0
    %2218 = vmatprep.subr.mxu0 0.0
    %2219 = vmatpush1.msra.mxu0 0.0
    %2220 = vmatprep.subr.mxu0 0.0
    %2221 = vmatpush1.msra.mxu0 0.0
    %2222 = vmatprep.subr.mxu0 0.0
    %2223 = vmatpush1.msra.mxu0 0.0
    %2224 = vmatprep.subr.mxu0 0.0
    %2225 = vmatpush1.msra.mxu0 0.0
    %2226 = vmatprep.subr.mxu0 0.0
    %2227 = vmatpush1.msra.mxu0 0.0
    %2228 = vmatprep.subr.mxu0 0.0
    %2229 = vmatpush1.msra.mxu0 0.0
    %2230 = vmatprep.mubr.f32.mxu0 0.0
    %2231 = vmatmul.mubr.f32.gmra.mrb[0].mxu0 %v2164
    %v2232 = vpop.f32.mrb[0].mxu0
    %v2233 = vadd.f32 %v2161, %v2232
    %v2234 = vpop.f32.mrb[0].mxu0
    %2235 = vdwg.mxu0
    %vm2236 = vcmask 125952
    %v2237 = vsel %vm2236, %v2233, 0.0
    %2238 = vadd.xlane.f32.xlu0 %v2237
    %v2239 = vpop.xlane.xlu0 %2238
    %v2240 = vrcp.pop 16.0
    %v2241 = vmul.f32 %v2239, %v2240
    %v2242 = vsub.f32 %v2233, %v2241
    %v2243 = vmul.f32 %v2242, %v2242
    %v2244 = vsel %vm2236, %v2243, 0.0
    %2245 = vadd.xlane.f32.xlu0 %v2244
    %v2246 = vpop.xlane.xlu0 %2245
    %v2247 = vmul.f32 %v2246, %v2240
    %v2248 = vadd.f32 %v2247, 1e-05
    %v2249 = vrsqrt.pop %v2248
    %v2250 = vmul.f32 %v2242, %v2249
    %v2251 = vld [vmem:[%s21] sm:$0x1]
    %v2253 = vlaneseq
    %v2254 = vshrl.u32 %v2253, 7
    %v2255 = vsub.s32 0, %v2254
    %v2256 = vrot.slane %v2251, %v2255
    %v2258 = vmul.f32 %v2250, %v2256
    %v2259 = vld [vmem:[%s22] sm:$0x1]
    %v2261 = vlaneseq
    %v2262 = vshrl.u32 %v2261, 7
    %v2263 = vsub.s32 0, %v2262
    %v2264 = vrot.slane %v2259, %v2263
    %v2266 = vadd.f32 %v2258, %v2264
    %v2267 = vmax.f32 %v2266, 0.0
    %v2268 = vld [vmem:[%s9] sm:$0xff]
    %v2269 = vld [vmem:[%s9 + $0x8] sm:$0xff]
    %v2270 = vld [vmem:[#allocation10] sm:$0x1]
    %v2272 = vlaneseq
    %v2273 = vshrl.u32 %v2272, 7
    %v2274 = vsub.s32 0, %v2273
    %v2275 = vrot.slane %v2270, %v2274
    %vm2277 = vcmask 130048
    %v2279 = vsel %vm2277, %v2267, 0
    %2281 = vmatprep.subr.mxu0 0.0
    %2282 = vmatpush1.msra.mxu0 %v2268
    %2283 = vmatprep.subr.mxu0 0.0
    %2284 = vmatpush1.msra.mxu0 %v2269
    %2285 = vmatprep.subr.mxu0 0.0
    %2286 = vmatpush1.msra.mxu0 0.0
    %2287 = vmatprep.subr.mxu0 0.0
    %2288 = vmatpush1.msra.mxu0 0.0
    %2289 = vmatprep.subr.mxu0 0.0
    %2290 = vmatpush1.msra.mxu0 0.0
    %2291 = vmatprep.subr.mxu0 0.0
    %2292 = vmatpush1.msra.mxu0 0.0
    %2293 = vmatprep.subr.mxu0 0.0
    %2294 = vmatpush1.msra.mxu0 0.0
    %2295 = vmatprep.subr.mxu0 0.0
    %2296 = vmatpush1.msra.mxu0 0.0
    %2297 = vmatprep.subr.mxu0 0.0
    %2298 = vmatpush1.msra.mxu0 0.0
    %2299 = vmatprep.subr.mxu0 0.0
    %2300 = vmatpush1.msra.mxu0 0.0
    %2301 = vmatprep.subr.mxu0 0.0
    %2302 = vmatpush1.msra.mxu0 0.0
    %2303 = vmatprep.subr.mxu0 0.0
    %2304 = vmatpush1.msra.mxu0 0.0
    %2305 = vmatprep.subr.mxu0 0.0
    %2306 = vmatpush1.msra.mxu0 0.0
    %2307 = vmatprep.subr.mxu0 0.0
    %2308 = vmatpush1.msra.mxu0 0.0
    %2309 = vmatprep.subr.mxu0 0.0
    %2310 = vmatpush1.msra.mxu0 0.0
    %2311 = vmatprep.subr.mxu0 0.0
    %2312 = vmatpush1.msra.mxu0 0.0
    %2313 = vmatprep.subr.mxu0 0.0
    %2314 = vmatpush1.msra.mxu0 0.0
    %2315 = vmatprep.subr.mxu0 0.0
    %2316 = vmatpush1.msra.mxu0 0.0
    %2317 = vmatprep.subr.mxu0 0.0
    %2318 = vmatpush1.msra.mxu0 0.0
    %2319 = vmatprep.subr.mxu0 0.0
    %2320 = vmatpush1.msra.mxu0 0.0
    %2321 = vmatprep.subr.mxu0 0.0
    %2322 = vmatpush1.msra.mxu0 0.0
    %2323 = vmatprep.subr.mxu0 0.0
    %2324 = vmatpush1.msra.mxu0 0.0
    %2325 = vmatprep.subr.mxu0 0.0
    %2326 = vmatpush1.msra.mxu0 0.0
    %2327 = vmatprep.subr.mxu0 0.0
    %2328 = vmatpush1.msra.mxu0 0.0
    %2329 = vmatprep.subr.mxu0 0.0
    %2330 = vmatpush1.msra.mxu0 0.0
    %2331 = vmatprep.subr.mxu0 0.0
    %2332 = vmatpush1.msra.mxu0 0.0
    %2333 = vmatprep.subr.mxu0 0.0
    %2334 = vmatpush1.msra.mxu0 0.0
    %2335 = vmatprep.subr.mxu0 0.0
    %2336 = vmatpush1.msra.mxu0 0.0
    %2337 = vmatprep.subr.mxu0 0.0
    %2338 = vmatpush1.msra.mxu0 0.0
    %2339 = vmatprep.subr.mxu0 0.0
    %2340 = vmatpush1.msra.mxu0 0.0
    %2341 = vmatprep.subr.mxu0 0.0
    %2342 = vmatpush1.msra.mxu0 0.0
    %2343 = vmatprep.subr.mxu0 0.0
    %2344 = vmatpush1.msra.mxu0 0.0
    %2345 = vmatprep.mubr.f32.mxu0 0.0
    %2346 = vmatmul.mubr.f32.gmra.mrb[0].mxu0 %v2279
    %v2347 = vpop.f32.mrb[0].mxu0
    %v2348 = vadd.f32 %v2275, %v2347
    %v2349 = vpop.f32.mrb[0].mxu0
    %2350 = vdwg.mxu0
    %v2351 = vmax.f32 %v2348, 0.0
    %v2352 = vld [vmem:[%s11] sm:$0xff]
    %v2353 = vld [vmem:[%s11 + $0x8] sm:$0xff]
    %v2354 = vld [vmem:[#allocation11] sm:$0x1]
    %v2356 = vlaneseq
    %v2357 = vshrl.u32 %v2356, 7
    %v2358 = vsub.s32 0, %v2357
    %v2359 = vrot.slane %v2354, %v2358
    %v2362 = vsel %vm2277, %v2351, 0
    %2364 = vmatprep.subr.mxu0 0.0
    %2365 = vmatpush1.msra.mxu0 %v2352
    %2366 = vmatprep.subr.mxu0 0.0
    %2367 = vmatpush1.msra.mxu0 %v2353
    %2368 = vmatprep.subr.mxu0 0.0
    %2369 = vmatpush1.msra.mxu0 0.0
    %2370 = vmatprep.subr.mxu0 0.0
    %2371 = vmatpush1.msra.mxu0 0.0
    %2372 = vmatprep.subr.mxu0 0.0
    %2373 = vmatpush1.msra.mxu0 0.0
    %2374 = vmatprep.subr.mxu0 0.0
    %2375 = vmatpush1.msra.mxu0 0.0
    %2376 = vmatprep.subr.mxu0 0.0
    %2377 = vmatpush1.msra.mxu0 0.0
    %2378 = vmatprep.subr.mxu0 0.0
    %2379 = vmatpush1.msra.mxu0 0.0
    %2380 = vmatprep.subr.mxu0 0.0
    %2381 = vmatpush1.msra.mxu0 0.0
    %2382 = vmatprep.subr.mxu0 0.0
    %2383 = vmatpush1.msra.mxu0 0.0
    %2384 = vmatprep.subr.mxu0 0.0
    %2385 = vmatpush1.msra.mxu0 0.0
    %2386 = vmatprep.subr.mxu0 0.0
    %2387 = vmatpush1.msra.mxu0 0.0
    %2388 = vmatprep.subr.mxu0 0.0
    %2389 = vmatpush1.msra.mxu0 0.0
    %2390 = vmatprep.subr.mxu0 0.0
    %2391 = vmatpush1.msra.mxu0 0.0
    %2392 = vmatprep.subr.mxu0 0.0
    %2393 = vmatpush1.msra.mxu0 0.0
    %2394 = vmatprep.subr.mxu0 0.0
    %2395 = vmatpush1.msra.mxu0 0.0
    %2396 = vmatprep.subr.mxu0 0.0
    %2397 = vmatpush1.msra.mxu0 0.0
    %2398 = vmatprep.subr.mxu0 0.0
    %2399 = vmatpush1.msra.mxu0 0.0
    %2400 = vmatprep.subr.mxu0 0.0
    %2401 = vmatpush1.msra.mxu0 0.0
    %2402 = vmatprep.subr.mxu0 0.0
    %2403 = vmatpush1.msra.mxu0 0.0
    %2404 = vmatprep.subr.mxu0 0.0
    %2405 = vmatpush1.msra.mxu0 0.0
    %2406 = vmatprep.subr.mxu0 0.0
    %2407 = vmatpush1.msra.mxu0 0.0
    %2408 = vmatprep.subr.mxu0 0.0
    %2409 = vmatpush1.msra.mxu0 0.0
    %2410 = vmatprep.subr.mxu0 0.0
    %2411 = vmatpush1.msra.mxu0 0.0
    %2412 = vmatprep.subr.mxu0 0.0
    %2413 = vmatpush1.msra.mxu0 0.0
    %2414 = vmatprep.subr.mxu0 0.0
    %2415 = vmatpush1.msra.mxu0 0.0
    %2416 = vmatprep.subr.mxu0 0.0
    %2417 = vmatpush1.msra.mxu0 0.0
    %2418 = vmatprep.subr.mxu0 0.0
    %2419 = vmatpush1.msra.mxu0 0.0
    %2420 = vmatprep.subr.mxu0 0.0
    %2421 = vmatpush1.msra.mxu0 0.0
    %2422 = vmatprep.subr.mxu0 0.0
    %2423 = vmatpush1.msra.mxu0 0.0
    %2424 = vmatprep.subr.mxu0 0.0
    %2425 = vmatpush1.msra.mxu0 0.0
    %2426 = vmatprep.subr.mxu0 0.0
    %2427 = vmatpush1.msra.mxu0 0.0
    %2428 = vmatprep.mubr.f32.mxu0 0.0
    %2429 = vmatmul.mubr.f32.gmra.mrb[0].mxu0 %v2362
    %v2430 = vpop.f32.mrb[0].mxu0
    %v2431 = vadd.f32 %v2359, %v2430
    %v2432 = vpop.f32.mrb[0].mxu0
    %2433 = vdwg.mxu0
    %v2434 = vsel %vm2236, %v2431, 0.0
    %2435 = vadd.xlane.f32.xlu0 %v2434
    %v2436 = vpop.xlane.xlu0 %2435
    %v2437 = vmul.f32 %v2436, %v2240
    %v2438 = vsub.f32 %v2431, %v2437
    %v2439 = vmul.f32 %v2438, %v2438
    %v2440 = vsel %vm2236, %v2439, 0.0
    %2441 = vadd.xlane.f32.xlu0 %v2440
    %v2442 = vpop.xlane.xlu0 %2441
    %v2443 = vmul.f32 %v2442, %v2240
    %v2444 = vadd.f32 %v2443, 1e-05
    %v2445 = vrsqrt.pop %v2444
    %v2446 = vmul.f32 %v2438, %v2445
    %v2447 = vld [vmem:[%s23] sm:$0x1]
    %v2449 = vlaneseq
    %v2450 = vshrl.u32 %v2449, 7
    %v2451 = vsub.s32 0, %v2450
    %v2452 = vrot.slane %v2447, %v2451
    %v2454 = vmul.f32 %v2446, %v2452
    %v2455 = vld [vmem:[%s24] sm:$0x1]
    %v2457 = vlaneseq
    %v2458 = vshrl.u32 %v2457, 7
    %v2459 = vsub.s32 0, %v2458
    %v2460 = vrot.slane %v2455, %v2459
    %v2462 = vadd.f32 %v2454, %v2460
    %v2463 = vmax.f32 %v2462, 0.0
    %v2464 = vld [vmem:[#allocation13] sm:$0xff]
    %v2465 = vld [vmem:[#allocation13 + $0x8] sm:$0xff]
    %v2466 = vld [vmem:[#allocation14] sm:$0x1]
    %v2468 = vlaneseq
    %v2469 = vshrl.u32 %v2468, 7
    %v2470 = vsub.s32 0, %v2469
    %v2471 = vrot.slane %v2466, %v2470
    %v2474 = vsel %vm2277, %v2463, 0
    %2476 = vmatprep.subr.mxu0 0.0
    %2477 = vmatpush1.msra.mxu0 %v2464
    %2478 = vmatprep.subr.mxu0 0.0
    %2479 = vmatpush1.msra.mxu0 %v2465
    %2480 = vmatprep.subr.mxu0 0.0
    %2481 = vmatpush1.msra.mxu0 0.0
    %2482 = vmatprep.subr.mxu0 0.0
    %2483 = vmatpush1.msra.mxu0 0.0
    %2484 = vmatprep.subr.mxu0 0.0
    %2485 = vmatpush1.msra.mxu0 0.0
    %2486 = vmatprep.subr.mxu0 0.0
    %2487 = vmatpush1.msra.mxu0 0.0
    %2488 = vmatprep.subr.mxu0 0.0
    %2489 = vmatpush1.msra.mxu0 0.0
    %2490 = vmatprep.subr.mxu0 0.0
    %2491 = vmatpush1.msra.mxu0 0.0
    %2492 = vmatprep.subr.mxu0 0.0
    %2493 = vmatpush1.msra.mxu0 0.0
    %2494 = vmatprep.subr.mxu0 0.0
    %2495 = vmatpush1.msra.mxu0 0.0
    %2496 = vmatprep.subr.mxu0 0.0
    %2497 = vmatpush1.msra.mxu0 0.0
    %2498 = vmatprep.subr.mxu0 0.0
    %2499 = vmatpush1.msra.mxu0 0.0
    %2500 = vmatprep.subr.mxu0 0.0
    %2501 = vmatpush1.msra.mxu0 0.0
    %2502 = vmatprep.subr.mxu0 0.0
    %2503 = vmatpush1.msra.mxu0 0.0
    %2504 = vmatprep.subr.mxu0 0.0
    %2505 = vmatpush1.msra.mxu0 0.0
    %2506 = vmatprep.subr.mxu0 0.0
    %2507 = vmatpush1.msra.mxu0 0.0
    %2508 = vmatprep.subr.mxu0 0.0
    %2509 = vmatpush1.msra.mxu0 0.0
    %2510 = vmatprep.subr.mxu0 0.0
    %2511 = vmatpush1.msra.mxu0 0.0
    %2512 = vmatprep.subr.mxu0 0.0
    %2513 = vmatpush1.msra.mxu0 0.0
    %2514 = vmatprep.subr.mxu0 0.0
    %2515 = vmatpush1.msra.mxu0 0.0
    %2516 = vmatprep.subr.mxu0 0.0
    %2517 = vmatpush1.msra.mxu0 0.0
    %2518 = vmatprep.subr.mxu0 0.0
    %2519 = vmatpush1.msra.mxu0 0.0
    %2520 = vmatprep.subr.mxu0 0.0
    %2521 = vmatpush1.msra.mxu0 0.0
    %2522 = vmatprep.subr.mxu0 0.0
    %2523 = vmatpush1.msra.mxu0 0.0
    %2524 = vmatprep.subr.mxu0 0.0
    %2525 = vmatpush1.msra.mxu0 0.0
    %2526 = vmatprep.subr.mxu0 0.0
    %2527 = vmatpush1.msra.mxu0 0.0
    %2528 = vmatprep.subr.mxu0 0.0
    %2529 = vmatpush1.msra.mxu0 0.0
    %2530 = vmatprep.subr.mxu0 0.0
    %2531 = vmatpush1.msra.mxu0 0.0
    %2532 = vmatprep.subr.mxu0 0.0
    %2533 = vmatpush1.msra.mxu0 0.0
    %2534 = vmatprep.subr.mxu0 0.0
    %2535 = vmatpush1.msra.mxu0 0.0
    %2536 = vmatprep.subr.mxu0 0.0
    %2537 = vmatpush1.msra.mxu0 0.0
    %2538 = vmatprep.subr.mxu0 0.0
    %2539 = vmatpush1.msra.mxu0 0.0
    %2540 = vmatprep.mubr.f32.mxu0 0.0
    %2541 = vmatmul.mubr.f32.gmra.mrb[0].mxu0 %v2474
    %v2542 = vpop.f32.mrb[0].mxu0
    %v2543 = vadd.f32 %v2471, %v2542
    %v2544 = vpop.f32.mrb[0].mxu0
    %2545 = vdwg.mxu0
    %v2546 = vmax.f32 %v2543, 0.0
    %v2547 = vld [vmem:[%s15] sm:$0xff]
    %v2548 = vld [vmem:[%s15 + $0x8] sm:$0xff]
    %v2549 = vld [vmem:[%s16] sm:$0x1]
    %v2551 = vlaneseq
    %v2552 = vshrl.u32 %v2551, 7
    %v2553 = vsub.s32 0, %v2552
    %v2554 = vrot.slane %v2549, %v2553
    %v2557 = vsel %vm2277, %v2546, 0
    %2559 = vmatprep.subr.mxu0 0.0
    %2560 = vmatpush1.msra.mxu0 %v2547
    %2561 = vmatprep.subr.mxu0 0.0
    %2562 = vmatpush1.msra.mxu0 %v2548
    %2563 = vmatprep.subr.mxu0 0.0
    %2564 = vmatpush1.msra.mxu0 0.0
    %2565 = vmatprep.subr.mxu0 0.0
    %2566 = vmatpush1.msra.mxu0 0.0
    %2567 = vmatprep.subr.mxu0 0.0
    %2568 = vmatpush1.msra.mxu0 0.0
    %2569 = vmatprep.subr.mxu0 0.0
    %2570 = vmatpush1.msra.mxu0 0.0
    %2571 = vmatprep.subr.mxu0 0.0
    %2572 = vmatpush1.msra.mxu0 0.0
    %2573 = vmatprep.subr.mxu0 0.0
    %2574 = vmatpush1.msra.mxu0 0.0
    %2575 = vmatprep.subr.mxu0 0.0
    %2576 = vmatpush1.msra.mxu0 0.0
    %2577 = vmatprep.subr.mxu0 0.0
    %2578 = vmatpush1.msra.mxu0 0.0
    %2579 = vmatprep.subr.mxu0 0.0
    %2580 = vmatpush1.msra.mxu0 0.0
    %2581 = vmatprep.subr.mxu0 0.0
    %2582 = vmatpush1.msra.mxu0 0.0
    %2583 = vmatprep.subr.mxu0 0.0
    %2584 = vmatpush1.msra.mxu0 0.0
    %2585 = vmatprep.subr.mxu0 0.0
    %2586 = vmatpush1.msra.mxu0 0.0
    %2587 = vmatprep.subr.mxu0 0.0
    %2588 = vmatpush1.msra.mxu0 0.0
    %2589 = vmatprep.subr.mxu0 0.0
    %2590 = vmatpush1.msra.mxu0 0.0
    %2591 = vmatprep.subr.mxu0 0.0
    %2592 = vmatpush1.msra.mxu0 0.0
    %2593 = vmatprep.subr.mxu0 0.0
    %2594 = vmatpush1.msra.mxu0 0.0
    %2595 = vmatprep.subr.mxu0 0.0
    %2596 = vmatpush1.msra.mxu0 0.0
    %2597 = vmatprep.subr.mxu0 0.0
    %2598 = vmatpush1.msra.mxu0 0.0
    %2599 = vmatprep.subr.mxu0 0.0
    %2600 = vmatpush1.msra.mxu0 0.0
    %2601 = vmatprep.subr.mxu0 0.0
    %2602 = vmatpush1.msra.mxu0 0.0
    %2603 = vmatprep.subr.mxu0 0.0
    %2604 = vmatpush1.msra.mxu0 0.0
    %2605 = vmatprep.subr.mxu0 0.0
    %2606 = vmatpush1.msra.mxu0 0.0
    %2607 = vmatprep.subr.mxu0 0.0
    %2608 = vmatpush1.msra.mxu0 0.0
    %2609 = vmatprep.subr.mxu0 0.0
    %2610 = vmatpush1.msra.mxu0 0.0
    %2611 = vmatprep.subr.mxu0 0.0
    %2612 = vmatpush1.msra.mxu0 0.0
    %2613 = vmatprep.subr.mxu0 0.0
    %2614 = vmatpush1.msra.mxu0 0.0
    %2615 = vmatprep.subr.mxu0 0.0
    %2616 = vmatpush1.msra.mxu0 0.0
    %2617 = vmatprep.subr.mxu0 0.0
    %2618 = vmatpush1.msra.mxu0 0.0
    %2619 = vmatprep.subr.mxu0 0.0
    %2620 = vmatpush1.msra.mxu0 0.0
    %2621 = vmatprep.subr.mxu0 0.0
    %2622 = vmatpush1.msra.mxu0 0.0
    %2623 = vmatprep.mubr.f32.mxu0 0.0
    %2624 = vmatmul.mubr.f32.gmra.mrb[0].mxu0 %v2557
    %v2625 = vpop.f32.mrb[0].mxu0
    %v2626 = vadd.f32 %v2554, %v2625
    %v2627 = vpop.f32.mrb[0].mxu0
    %2628 = vdwg.mxu0
    %v2629 = vsel %vm2236, %v2626, 0.0
    %2630 = vadd.xlane.f32.xlu0 %v2629
    %v2631 = vpop.xlane.xlu0 %2630
    %v2632 = vmul.f32 %v2631, %v2240
    %v2633 = vsub.f32 %v2626, %v2632
    %v2634 = vmul.f32 %v2633, %v2633
    %v2635 = vsel %vm2236, %v2634, 0.0
    %2636 = vadd.xlane.f32.xlu0 %v2635
    %v2637 = vpop.xlane.xlu0 %2636
    %v2638 = vmul.f32 %v2637, %v2240
    %v2639 = vadd.f32 %v2638, 1e-05
    %v2640 = vrsqrt.pop %v2639
    %v2641 = vmul.f32 %v2633, %v2640
    %v2642 = vld [vmem:[%s25] sm:$0x1]
    %v2644 = vlaneseq
    %v2645 = vshrl.u32 %v2644, 7
    %v2646 = vsub.s32 0, %v2645
    %v2647 = vrot.slane %v2642, %v2646
    %v2649 = vmul.f32 %v2641, %v2647
    %v2650 = vld [vmem:[%s26] sm:$0x1]
    %v2652 = vlaneseq
    %v2653 = vshrl.u32 %v2652, 7
    %v2654 = vsub.s32 0, %v2653
    %v2655 = vrot.slane %v2650, %v2654
    %v2657 = vadd.f32 %v2649, %v2655
    %v2658 = vmax.f32 %v2657, 0.0
    %v2659 = vld [vmem:[#allocation16] sm:$0xff]
    %v2660 = vld [vmem:[#allocation16 + $0x8] sm:$0xff]
    %v2661 = vld [vmem:[%s18] sm:$0x1]
    %v2663 = vlaneseq
    %v2664 = vshrl.u32 %v2663, 7
    %v2665 = vsub.s32 0, %v2664
    %v2666 = vrot.slane %v2661, %v2665
    %v2669 = vsel %vm2277, %v2658, 0
    %2671 = vmatprep.subr.mxu0 0.0
    %2672 = vmatpush1.msra.mxu0 %v2659
    %2673 = vmatprep.subr.mxu0 0.0
    %2674 = vmatpush1.msra.mxu0 %v2660
    %2675 = vmatprep.subr.mxu0 0.0
    %2676 = vmatpush1.msra.mxu0 0.0
    %2677 = vmatprep.subr.mxu0 0.0
    %2678 = vmatpush1.msra.mxu0 0.0
    %2679 = vmatprep.subr.mxu0 0.0
    %2680 = vmatpush1.msra.mxu0 0.0
    %2681 = vmatprep.subr.mxu0 0.0
    %2682 = vmatpush1.msra.mxu0 0.0
    %2683 = vmatprep.subr.mxu0 0.0
    %2684 = vmatpush1.msra.mxu0 0.0
    %2685 = vmatprep.subr.mxu0 0.0
    %2686 = vmatpush1.msra.mxu0 0.0
    %2687 = vmatprep.subr.mxu0 0.0
    %2688 = vmatpush1.msra.mxu0 0.0
    %2689 = vmatprep.subr.mxu0 0.0
    %2690 = vmatpush1.msra.mxu0 0.0
    %2691 = vmatprep.subr.mxu0 0.0
    %2692 = vmatpush1.msra.mxu0 0.0
    %2693 = vmatprep.subr.mxu0 0.0
    %2694 = vmatpush1.msra.mxu0 0.0
    %2695 = vmatprep.subr.mxu0 0.0
    %2696 = vmatpush1.msra.mxu0 0.0
    %2697 = vmatprep.subr.mxu0 0.0
    %2698 = vmatpush1.msra.mxu0 0.0
    %2699 = vmatprep.subr.mxu0 0.0
    %2700 = vmatpush1.msra.mxu0 0.0
    %2701 = vmatprep.subr.mxu0 0.0
    %2702 = vmatpush1.msra.mxu0 0.0
    %2703 = vmatprep.subr.mxu0 0.0
    %2704 = vmatpush1.msra.mxu0 0.0
    %2705 = vmatprep.subr.mxu0 0.0
    %2706 = vmatpush1.msra.mxu0 0.0
    %2707 = vmatprep.subr.mxu0 0.0
    %2708 = vmatpush1.msra.mxu0 0.0
    %2709 = vmatprep.subr.mxu0 0.0
    %2710 = vmatpush1.msra.mxu0 0.0
    %2711 = vmatprep.subr.mxu0 0.0
    %2712 = vmatpush1.msra.mxu0 0.0
    %2713 = vmatprep.subr.mxu0 0.0
    %2714 = vmatpush1.msra.mxu0 0.0
    %2715 = vmatprep.subr.mxu0 0.0
    %2716 = vmatpush1.msra.mxu0 0.0
    %2717 = vmatprep.subr.mxu0 0.0
    %2718 = vmatpush1.msra.mxu0 0.0
    %2719 = vmatprep.subr.mxu0 0.0
    %2720 = vmatpush1.msra.mxu0 0.0
    %2721 = vmatprep.subr.mxu0 0.0
    %2722 = vmatpush1.msra.mxu0 0.0
    %2723 = vmatprep.subr.mxu0 0.0
    %2724 = vmatpush1.msra.mxu0 0.0
    %2725 = vmatprep.subr.mxu0 0.0
    %2726 = vmatpush1.msra.mxu0 0.0
    %2727 = vmatprep.subr.mxu0 0.0
    %2728 = vmatpush1.msra.mxu0 0.0
    %2729 = vmatprep.subr.mxu0 0.0
    %2730 = vmatpush1.msra.mxu0 0.0
    %2731 = vmatprep.subr.mxu0 0.0
    %2732 = vmatpush1.msra.mxu0 0.0
    %2733 = vmatprep.subr.mxu0 0.0
    %2734 = vmatpush1.msra.mxu0 0.0
    %2735 = vmatprep.mubr.f32.mxu0 0.0
    %2736 = vmatmul.mubr.f32.gmra.mrb[0].mxu0 %v2669
    %v2737 = vpop.f32.mrb[0].mxu0
    %v2738 = vadd.f32 %v2666, %v2737
    %v2739 = vpop.f32.mrb[0].mxu0
    %2740 = vdwg.mxu0
    %v2741 = vmax.f32 %v2738, 0.0
    %v2742 = vld [vmem:[%s19] sm:$0xff]
    %v2743 = vld [vmem:[%s19 + $0x8] sm:$0xff]
    %v2744 = vld [vmem:[#allocation2] sm:$0x1]
    %v2746 = vlaneseq
    %v2747 = vshrl.u32 %v2746, 7
    %v2748 = vsub.s32 0, %v2747
    %v2749 = vrot.slane %v2744, %v2748
    %v2752 = vsel %vm2277, %v2741, 0
    %2754 = vmatprep.subr.mxu0 0.0
    %2755 = vmatpush1.msra.mxu0 %v2742
    %2756 = vmatprep.subr.mxu0 0.0
    %2757 = vmatpush1.msra.mxu0 %v2743
    %2758 = vmatprep.subr.mxu0 0.0
    %2759 = vmatpush1.msra.mxu0 0.0
    %2760 = vmatprep.subr.mxu0 0.0
    %2761 = vmatpush1.msra.mxu0 0.0
    %2762 = vmatprep.subr.mxu0 0.0
    %2763 = vmatpush1.msra.mxu0 0.0
    %2764 = vmatprep.subr.mxu0 0.0
    %2765 = vmatpush1.msra.mxu0 0.0
    %2766 = vmatprep.subr.mxu0 0.0
    %2767 = vmatpush1.msra.mxu0 0.0
    %2768 = vmatprep.subr.mxu0 0.0
    %2769 = vmatpush1.msra.mxu0 0.0
    %2770 = vmatprep.subr.mxu0 0.0
    %2771 = vmatpush1.msra.mxu0 0.0
    %2772 = vmatprep.subr.mxu0 0.0
    %2773 = vmatpush1.msra.mxu0 0.0
    %2774 = vmatprep.subr.mxu0 0.0
    %2775 = vmatpush1.msra.mxu0 0.0
    %2776 = vmatprep.subr.mxu0 0.0
    %2777 = vmatpush1.msra.mxu0 0.0
    %2778 = vmatprep.subr.mxu0 0.0
    %2779 = vmatpush1.msra.mxu0 0.0
    %2780 = vmatprep.subr.mxu0 0.0
    %2781 = vmatpush1.msra.mxu0 0.0
    %2782 = vmatprep.subr.mxu0 0.0
    %2783 = vmatpush1.msra.mxu0 0.0
    %2784 = vmatprep.subr.mxu0 0.0
    %2785 = vmatpush1.msra.mxu0 0.0
    %2786 = vmatprep.subr.mxu0 0.0
    %2787 = vmatpush1.msra.mxu0 0.0
    %2788 = vmatprep.subr.mxu0 0.0
    %2789 = vmatpush1.msra.mxu0 0.0
    %2790 = vmatprep.subr.mxu0 0.0
    %2791 = vmatpush1.msra.mxu0 0.0
    %2792 = vmatprep.subr.mxu0 0.0
    %2793 = vmatpush1.msra.mxu0 0.0
    %2794 = vmatprep.subr.mxu0 0.0
    %2795 = vmatpush1.msra.mxu0 0.0
    %2796 = vmatprep.subr.mxu0 0.0
    %2797 = vmatpush1.msra.mxu0 0.0
    %2798 = vmatprep.subr.mxu0 0.0
    %2799 = vmatpush1.msra.mxu0 0.0
    %2800 = vmatprep.subr.mxu0 0.0
    %2801 = vmatpush1.msra.mxu0 0.0
    %2802 = vmatprep.subr.mxu0 0.0
    %2803 = vmatpush1.msra.mxu0 0.0
    %2804 = vmatprep.subr.mxu0 0.0
    %2805 = vmatpush1.msra.mxu0 0.0
    %2806 = vmatprep.subr.mxu0 0.0
    %2807 = vmatpush1.msra.mxu0 0.0
    %2808 = vmatprep.subr.mxu0 0.0
    %2809 = vmatpush1.msra.mxu0 0.0
    %2810 = vmatprep.subr.mxu0 0.0
    %2811 = vmatpush1.msra.mxu0 0.0
    %2812 = vmatprep.subr.mxu0 0.0
    %2813 = vmatpush1.msra.mxu0 0.0
    %2814 = vmatprep.subr.mxu0 0.0
    %2815 = vmatpush1.msra.mxu0 0.0
    %2816 = vmatprep.subr.mxu0 0.0
    %2817 = vmatpush1.msra.mxu0 0.0
    %2818 = vmatprep.mubr.f32.mxu0 0.0
    %2819 = vmatmul.mubr.f32.gmra.mrb[0].mxu0 %v2752
    %v2820 = vpop.f32.mrb[0].mxu0
    %v2821 = vadd.f32 %v2749, %v2820
    %v2822 = vpop.f32.mrb[0].mxu0
    %2823 = vdwg.mxu0
    %vm2824 = vcmask 3072
    %2825 = vst.msk [vmem:[%s27] sm:$0xf] %vm2824, %v2821
    // Predicated region
    $region146: #{tpu_custom_call.1} parent=1 // pred_check
      _
    $region147: #{tpu_custom_call.1} parent=1 // pred_check_branch
      %2827 = sbr.rel (0) target = $region149
    $region148: #{tpu_custom_call.1} parent=1 // pred_region
      _
    $region149: #{tpu_custom_call.1} parent=1 // pred_fallthru
      _
    // Predicated region
    $region150: #{tpu_custom_call.1} parent=1 // pred_check
      _
    $region151: #{tpu_custom_call.1} parent=1 // pred_check_branch
      %2829 = sbr.rel (0) target = $region153
    $region152: #{tpu_custom_call.1} parent=1 // pred_region
      _
    $region153: #{tpu_custom_call.1} parent=1 // pred_fallthru
      _
    %2830 = vsyncpa [#allocation4], 1
    %2831 = vsyncpa [#allocation6], 1
    %2832 = vsyncpa [#allocation9], 1
    %2833 = vsyncpa [#allocation12], 1
    %2834 = vsyncpa [#allocation15], 1

</llo_original>
